<compile_context>
chip_gen: v7x
topology: tpu7x:2x2x1
jax: 0.10.0
libtpu: 0.0.40
codegen_flags: <defaults>
</compile_context>

<pallas_src>
import functools

import jax
import jax.numpy as jnp
import numpy as np
from jax import lax
from jax.experimental import pallas as pl
from jax.experimental.pallas import tpu as pltpu

BN_EPS = 1e-5

# Storage / MXU-input dtype for activations + GEMM weights.  float32 matches the f32
# reference tightly and keeps v5e elementwise happy; on v6e/v7x jnp.bfloat16 halves
# HBM traffic of this memory-bound GEMM (accumulation remains float32).
ACT_DTYPE = jnp.float32


# ------------------------------ Pallas kernel -------------------------------- #

def _conv_bn_act_kernel(x_ref, w_ref, b_ref, o_ref, *, apply_relu):
    """One fused Conv3d+BN(+bias)+ReLU stage on a row tile.

    x_ref: [tmf, r*K]     folded im2col columns (lane-dense, contiguous DMA)
    w_ref: [r*K, r*Cout]  block-diagonal weights, BN scale folded in (grid-resident)
    b_ref: [1,  r*Cout]   conv-bias + BN shift, folded
    o_ref: [tmf, r*Cout]  lane-dense output tile (r*Cout == 128 in the common case)
    """
    acc = jnp.dot(x_ref[...], w_ref[...], preferred_element_type=jnp.float32)
    acc = acc + b_ref[...]
    if apply_relu:
        acc = jnp.maximum(acc, 0.0)
    o_ref[...] = acc.astype(o_ref.dtype)


# ------------------------------ JAX glue -------------------------------------- #

def _im2col_cols(x_ndhwc, k, pad):
    """Zero-pad and fold the k^3 taps into the channel (contraction) axis.

    Returns a single contiguous [M, k^3*C] slab (tap-major, channel-minor) plus the
    output spatial shape.  Pure data movement (stride-1 convs).
    """
    N, D, H, W, C = x_ndhwc.shape
    xp = jnp.pad(x_ndhwc, ((0, 0), (pad, pad), (pad, pad), (pad, pad), (0, 0)))
    Do = D + 2 * pad - (k - 1)
    Ho = H + 2 * pad - (k - 1)
    Wo = W + 2 * pad - (k - 1)
    cols = []
    for kd in range(k):
        for kh in range(k):
            for kw in range(k):
                cols.append(xp[:, kd:kd + Do, kh:kh + Ho, kw:kw + Wo, :])
    xc = jnp.concatenate(cols, axis=-1)                  # [N, Do, Ho, Wo, k^3*C]
    return xc.reshape(N * Do * Ho * Wo, k * k * k * C), (N, Do, Ho, Wo)


def _pick_tm(M, r, target):
    """Largest tm <= target with M % tm == 0 and tm % (8*r) == 0 (sublane-aligned)."""
    step = 8 * r
    t = min(target, M)
    t -= t % step
    while t >= step:
        if M % t == 0:
            return t
        t -= step
    return None


def conv_bn_act_pallas(x_ndhwc, w_oidhw, bias, gamma, beta, mean, var, *,
                       ksize, pad, apply_relu=True, tm_target=2048):
    """One ConvBlock5d stage: Conv3d (stride 1) + BatchNorm3d (eval) + ReLU, fused."""
    _, _, _, _, Cin = x_ndhwc.shape
    Cout = w_oidhw.shape[0]
    k = ksize

    # Fold BN (eval) + conv bias into the GEMM:  y = conv(x; W*s) + ((b-mean)*s + beta)
    s = gamma * lax.rsqrt(var + BN_EPS)                                        # [Cout]
    w_mat = jnp.transpose(w_oidhw, (2, 3, 4, 1, 0)).reshape(k ** 3 * Cin, Cout)
    w_eff = w_mat * s[None, :]
    b_eff = (bias - mean) * s + beta                                           # [Cout]

    x_cols, (N, Do, Ho, Wo) = _im2col_cols(x_ndhwc, k, pad)
    M, K = x_cols.shape

    # Lane-dense fold: pack r consecutive output rows into the 128-lane axis.
    r = 128 // Cout if (Cout <= 128 and 128 % Cout == 0) else 1
    tm = _pick_tm(M, r, tm_target)
    if tm is None:                       # can't fold / can't tile nicely: fall back
        r = 1
        tm = _pick_tm(M, 1, tm_target)
        if tm is None:
            tm = M                        # tiny M: single full-array block (legal)
    Mf, tmf, Kf, Cf = M // r, tm // r, r * K, r * Cout

    xf = x_cols.reshape(Mf, Kf).astype(ACT_DTYPE)                # contiguous view
    w_bd = jnp.kron(jnp.eye(r, dtype=ACT_DTYPE), w_eff.astype(ACT_DTYPE))  # [r*K, r*Cout]
    b_f = jnp.tile(b_eff, r)[None, :].astype(jnp.float32)                   # [1, r*Cout]

    out_f = pl.pallas_call(
        functools.partial(_conv_bn_act_kernel, apply_relu=apply_relu),
        out_shape=jax.ShapeDtypeStruct((Mf, Cf), jnp.float32),
        grid=(Mf // tmf,),
        in_specs=[
            pl.BlockSpec((tmf, Kf), lambda i: (i, 0)),   # one contiguous slab / step
            pl.BlockSpec((Kf, Cf), lambda i: (0, 0)),    # weights resident across grid
            pl.BlockSpec((1, Cf), lambda i: (0, 0)),
        ],
        out_specs=pl.BlockSpec((tmf, Cf), lambda i: (i, 0)),
        compiler_params=pltpu.CompilerParams(dimension_semantics=("parallel",)),
    )(xf, w_bd, b_f)

    return out_f.reshape(N, Do, Ho, Wo, Cout)


def conv_block5d_forward(x_ncdhw, params):
    """ConvBlock5d forward (eval mode): Conv3d -> BatchNorm3d -> ReLU -> Dropout, chained."""
    x = jnp.transpose(x_ncdhw, (0, 2, 3, 4, 1))          # NCDHW -> NDHWC (channels-last)
    for layer in params["layers"]:
        x = conv_bn_act_pallas(
            x, layer["w"], layer["b"], layer["gamma"], layer["beta"],
            layer["mean"], layer["var"], ksize=layer["ksize"], pad=layer["pad"],
            apply_relu=True)
        # TODO(synk): nn.Dropout(p=0.1) is identity in eval mode; training-mode RNG
        # masking is not implemented here.
    return jnp.transpose(x, (0, 4, 1, 2, 3))             # NDHWC -> NCDHW


# ------------------------------ params & reference ---------------------------- #

def init_params(key, in_chs, base_chs, ksize=3, pad=1):
    # BatchNorm3d is modeled in eval mode; gamma/beta/running mean/var are folded into
    # the conv (values below match a freshly-initialized nn.BatchNorm3d).
    # TODO(synk): training-mode batch statistics are not reproduced.
    layers = []
    keys = jax.random.split(key, len(in_chs))
    for i, (ci, co) in enumerate(zip(in_chs, base_chs)):
        kw_, kb_ = jax.random.split(keys[i])
        fan_in = ci * ksize ** 3
        w = jax.random.normal(kw_, (co, ci, ksize, ksize, ksize), jnp.float32) / np.sqrt(fan_in)
        b = jax.random.normal(kb_, (co,), jnp.float32) * 0.1
        layers.append(dict(
            w=w, b=b,
            gamma=jnp.ones((co,), jnp.float32), beta=jnp.zeros((co,), jnp.float32),
            mean=jnp.zeros((co,), jnp.float32), var=jnp.ones((co,), jnp.float32),
            ksize=ksize, pad=pad))
    return {"layers": layers}


def ref_forward(x_ncdhw, params):
    """Pure-JAX reference (lax.conv_general_dilated + explicit BN/ReLU), eval mode."""
    dn = ("NCDHW", "OIDHW", "NCDHW")
    y = x_ncdhw
    for layer in params["layers"]:
        p = layer["pad"]
        y = lax.conv_general_dilated(y, layer["w"], (1, 1, 1), [(p, p)] * 3,
                                     dimension_numbers=dn)
        y = y + layer["b"][None, :, None, None, None]
        s = layer["gamma"] / jnp.sqrt(layer["var"] + BN_EPS)
        y = (y - layer["mean"][None, :, None, None, None]) * s[None, :, None, None, None] \
            + layer["beta"][None, :, None, None, None]
        y = jnp.maximum(y, 0.0)          # Dropout is identity in eval mode
    return y


# ------------------------------ main ------------------------------------------ #

if __name__ == "__main__":
    # ConvBlock5d(in_chs=(4, 8), base_chs=(8, 8), checkpoint_segments=1, conv_ksize=3,
    #             conv_bias=True, conv_pad=1, dropout=0.1, conv_strides=1,
    #             norm_method='bn', act_methpd='relu')
    in_chs, base_chs = (4, 8), (8, 8)
    N, D, H, W = 2, 16, 16, 16

    key = jax.random.PRNGKey(0)
    kx, kp = jax.random.split(key)
    x = jax.random.normal(kx, (N, in_chs[0], D, H, W), jnp.float32)   # NCDHW like PyTorch
    params = init_params(kp, in_chs, base_chs, ksize=3, pad=1)

    fwd = jax.jit(lambda inp: conv_block5d_forward(inp, params))
    out = jax.block_until_ready(fwd(x))

    assert out.shape == (N, base_chs[-1], D, H, W), out.shape
    ref = ref_forward(x, params)
    np.testing.assert_allclose(np.asarray(out), np.asarray(ref), rtol=2e-3, atol=1e-4)

    print("KERNEL_OK")
</pallas_src>

<mosaic_0001>
module attributes {stable_mosaic.version = 11 : i64} {
  func.func @_conv_bn_act_kernel(%arg0: i32, %arg1: memref<128x1728xf32, #tpu.memory_space<vmem>>, %arg2: memref<1728x128xf32, #tpu.memory_space<vmem>>, %arg3: memref<1x128xf32, #tpu.memory_space<vmem>>, %arg4: memref<128x128xf32, #tpu.memory_space<vmem>>) attributes {dimension_semantics = [#tpu.dimension_semantics<parallel>], iteration_bounds = array<i64: 4>, scalar_prefetch = 0 : i64, scratch_operands = 0 : i64, tpu.core_type = #tpu.core_type<tc>, window_params = [{transform_indices = @transform_0, window_bounds = array<i64: 128, 1728>}, {pipeline_mode = #tpu.pipeline_mode<synchronous>, transform_indices = @transform_1, window_bounds = array<i64: 1728, 128>}, {pipeline_mode = #tpu.pipeline_mode<synchronous>, transform_indices = @transform_2, window_bounds = array<i64: 1, 128>}, {transform_indices = @transform_3, window_bounds = array<i64: 128, 128>}]} {
    %c0 = arith.constant 0 : index
    %c0_0 = arith.constant 0 : index
    %0 = vector.load %arg1[%c0, %c0_0] : memref<128x1728xf32, #tpu.memory_space<vmem>>, vector<128x1728xf32>
    %c0_1 = arith.constant 0 : index
    %c0_2 = arith.constant 0 : index
    %1 = vector.load %arg2[%c0_1, %c0_2] : memref<1728x128xf32, #tpu.memory_space<vmem>>, vector<1728x128xf32>
    %cst = arith.constant dense<0.000000e+00> : vector<128x128xf32>
    %2 = tpu.matmul %0, %1, %cst {dimension_numbers = #tpu.dot_dimension_numbers<[1], [0], [0], [1], [0, 0, 1, 1], [], []>} : vector<128x1728xf32>, vector<1728x128xf32>, vector<128x128xf32> -> vector<128x128xf32>
    %c0_3 = arith.constant 0 : index
    %c0_4 = arith.constant 0 : index
    %3 = vector.load %arg3[%c0_3, %c0_4] : memref<1x128xf32, #tpu.memory_space<vmem>>, vector<1x128xf32>
    %4 = vector.broadcast %3 : vector<1x128xf32> to vector<128x128xf32>
    %5 = arith.addf %2, %4 : vector<128x128xf32>
    %cst_5 = arith.constant 0.000000e+00 : f32
    %6 = vector.broadcast %cst_5 : f32 to vector<128x128xf32>
    %7 = arith.maximumf %5, %6 : vector<128x128xf32>
    %c0_6 = arith.constant 0 : index
    %c0_7 = arith.constant 0 : index
    %8 = vector.load %arg4[%c0_6, %c0_7] : memref<128x128xf32, #tpu.memory_space<vmem>>, vector<128x128xf32>
    tpu.vector_store %arg4[%c0_6, %c0_7], %7 {strides = array<i32>} : memref<128x128xf32, #tpu.memory_space<vmem>>, vector<128x128xf32>,
    return
  }
  func.func @transform_0(%arg0: i32) -> (i32, i32) {
    %c0_i32 = arith.constant 0 : i32
    %c0_i32_0 = arith.constant 0 : i32
    return %arg0, %c0_i32 : i32, i32
  }
  func.func @transform_1(%arg0: i32) -> (i32, i32) {
    %c0_i32 = arith.constant 0 : i32
    %c0_i32_0 = arith.constant 0 : i32
    %c0_i32_1 = arith.constant 0 : i32
    return %c0_i32, %c0_i32_0 : i32, i32
  }
  func.func @transform_2(%arg0: i32) -> (i32, i32) {
    %c0_i32 = arith.constant 0 : i32
    %c0_i32_0 = arith.constant 0 : i32
    %c0_i32_1 = arith.constant 0 : i32
    return %c0_i32, %c0_i32_0 : i32, i32
  }
  func.func @transform_3(%arg0: i32) -> (i32, i32) {
    %c0_i32 = arith.constant 0 : i32
    %c0_i32_0 = arith.constant 0 : i32
    return %arg0, %c0_i32 : i32, i32
  }
}

module attributes {stable_mosaic.version = 11 : i64} {
  func.func @_conv_bn_act_kernel(%arg0: i32, %arg1: memref<128x3456xf32, #tpu.memory_space<vmem>>, %arg2: memref<3456x128xf32, #tpu.memory_space<vmem>>, %arg3: memref<1x128xf32, #tpu.memory_space<vmem>>, %arg4: memref<128x128xf32, #tpu.memory_space<vmem>>) attributes {dimension_semantics = [#tpu.dimension_semantics<parallel>], iteration_bounds = array<i64: 4>, scalar_prefetch = 0 : i64, scratch_operands = 0 : i64, tpu.core_type = #tpu.core_type<tc>, window_params = [{transform_indices = @transform_0, window_bounds = array<i64: 128, 3456>}, {pipeline_mode = #tpu.pipeline_mode<synchronous>, transform_indices = @transform_1, window_bounds = array<i64: 3456, 128>}, {pipeline_mode = #tpu.pipeline_mode<synchronous>, transform_indices = @transform_2, window_bounds = array<i64: 1, 128>}, {transform_indices = @transform_3, window_bounds = array<i64: 128, 128>}]} {
    %c0 = arith.constant 0 : index
    %c0_0 = arith.constant 0 : index
    %0 = vector.load %arg1[%c0, %c0_0] : memref<128x3456xf32, #tpu.memory_space<vmem>>, vector<128x3456xf32>
    %c0_1 = arith.constant 0 : index
    %c0_2 = arith.constant 0 : index
    %1 = vector.load %arg2[%c0_1, %c0_2] : memref<3456x128xf32, #tpu.memory_space<vmem>>, vector<3456x128xf32>
    %cst = arith.constant dense<0.000000e+00> : vector<128x128xf32>
    %2 = tpu.matmul %0, %1, %cst {dimension_numbers = #tpu.dot_dimension_numbers<[1], [0], [0], [1], [0, 0, 1, 1], [], []>} : vector<128x3456xf32>, vector<3456x128xf32>, vector<128x128xf32> -> vector<128x128xf32>
    %c0_3 = arith.constant 0 : index
    %c0_4 = arith.constant 0 : index
    %3 = vector.load %arg3[%c0_3, %c0_4] : memref<1x128xf32, #tpu.memory_space<vmem>>, vector<1x128xf32>
    %4 = vector.broadcast %3 : vector<1x128xf32> to vector<128x128xf32>
    %5 = arith.addf %2, %4 : vector<128x128xf32>
    %cst_5 = arith.constant 0.000000e+00 : f32
    %6 = vector.broadcast %cst_5 : f32 to vector<128x128xf32>
    %7 = arith.maximumf %5, %6 : vector<128x128xf32>
    %c0_6 = arith.constant 0 : index
    %c0_7 = arith.constant 0 : index
    %8 = vector.load %arg4[%c0_6, %c0_7] : memref<128x128xf32, #tpu.memory_space<vmem>>, vector<128x128xf32>
    tpu.vector_store %arg4[%c0_6, %c0_7], %7 {strides = array<i32>} : memref<128x128xf32, #tpu.memory_space<vmem>>, vector<128x128xf32>,
    return
  }
  func.func @transform_0(%arg0: i32) -> (i32, i32) {
    %c0_i32 = arith.constant 0 : i32
    %c0_i32_0 = arith.constant 0 : i32
    return %arg0, %c0_i32 : i32, i32
  }
  func.func @transform_1(%arg0: i32) -> (i32, i32) {
    %c0_i32 = arith.constant 0 : i32
    %c0_i32_0 = arith.constant 0 : i32
    %c0_i32_1 = arith.constant 0 : i32
    return %c0_i32, %c0_i32_0 : i32, i32
  }
  func.func @transform_2(%arg0: i32) -> (i32, i32) {
    %c0_i32 = arith.constant 0 : i32
    %c0_i32_0 = arith.constant 0 : i32
    %c0_i32_1 = arith.constant 0 : i32
    return %c0_i32, %c0_i32_0 : i32, i32
  }
  func.func @transform_3(%arg0: i32) -> (i32, i32) {
    %c0_i32 = arith.constant 0 : i32
    %c0_i32_0 = arith.constant 0 : i32
    return %arg0, %c0_i32 : i32, i32
  }
}

</mosaic_0001>

<llo_original>
// kernel: tile.10
$region0: #{tile.10}
  #allocation0 [shape = 's32[1]{0}', space=sflag, size = 0x4, scoped, tag = 'scoped memory for tile.10']
  %s0 = inlined_call_operand.vmem [shape: f32[8], index: 0, kind: input, shape index: {}]
  %s1 = inlined_call_operand.vmem [shape: f32[16,8], index: 1, kind: output, shape index: {}]
  // Predicated region
  $region2: #{tile.10} parent=0 // pred_check
    _
  $region3: #{tile.10} parent=0 // pred_check_branch
    %3 = sbr.rel (0) target = $region5
  $region4: #{tile.10} parent=0 // pred_region
    _
  $region5: #{tile.10} parent=0 // pred_fallthru
    _
  %v4 = vld [vmem:[%s0] ss:$0 sm:$0xff]
  %5 = vst [vmem:[%s1] sm:$0xff] %v4
  %s6 = scalar_lea.vmem %s1, 8
  %7 = vst [vmem:[%s6] sm:$0xff] %v4

// kernel: tile.11
$region0: #{tile.11}
  %s0 = inlined_call_operand.vmem [shape: f32[16,8], index: 0, kind: input, shape index: {}]
  %s1 = inlined_call_operand.vmem [shape: f32[1,128], index: 1, kind: output, shape index: {}]
  $region1: #{tile.11} parent=0
    #allocation0 [shape = 'u8[4096]{0}', space=vmem, size = 0x1000, scoped, tag = 'scoped mem for output reshape']
    %v2 = vld [vmem:[%s0] sm:$0x1]
    %vm3 = vcmask 64512
    %4 = vst.msk [vmem:[#allocation0] sm:$0x1] %vm3, %v2
    %s5 = scalar_lea.vmem %s0, 15
    %v6 = vld [vmem:[%s5] sm:$0x1]
    %7 = vrot.lane.b32.xlu0 %v6, 120
    %v8 = vpop.permute.xlu0 %7
    %vm9 = vcmask 1048512
    %10 = vst.msk [vmem:[#allocation0] sm:$0x1] %vm9, %v8
    %s11 = scalar_lea.vmem %s0, 14
    %v12 = vld [vmem:[%s11] sm:$0x1]
    %13 = vrot.lane.b32.xlu0 %v12, 112
    %v14 = vpop.permute.xlu0 %13
    %vm15 = vcmask 982912
    %16 = vst.msk [vmem:[#allocation0] sm:$0x1] %vm15, %v14
    %s17 = scalar_lea.vmem %s0, 13
    %v18 = vld [vmem:[%s17] sm:$0x1]
    %19 = vrot.lane.b32.xlu0 %v18, 104
    %v20 = vpop.permute.xlu0 %19
    %vm21 = vcmask 917312
    %22 = vst.msk [vmem:[#allocation0] sm:$0x1] %vm21, %v20
    %s23 = scalar_lea.vmem %s0, 12
    %v24 = vld [vmem:[%s23] sm:$0x1]
    %25 = vrot.lane.b32.xlu0 %v24, 96
    %v26 = vpop.permute.xlu0 %25
    %vm27 = vcmask 851712
    %28 = vst.msk [vmem:[#allocation0] sm:$0x1] %vm27, %v26
    %s29 = scalar_lea.vmem %s0, 11
    %v30 = vld [vmem:[%s29] sm:$0x1]
    %31 = vrot.lane.b32.xlu0 %v30, 88
    %v32 = vpop.permute.xlu0 %31
    %vm33 = vcmask 786112
    %34 = vst.msk [vmem:[#allocation0] sm:$0x1] %vm33, %v32
    %s35 = scalar_lea.vmem %s0, 10
    %v36 = vld [vmem:[%s35] sm:$0x1]
    %37 = vrot.lane.b32.xlu0 %v36, 80
    %v38 = vpop.permute.xlu0 %37
    %vm39 = vcmask 720512
    %40 = vst.msk [vmem:[#allocation0] sm:$0x1] %vm39, %v38
    %s41 = scalar_lea.vmem %s0, 9
    %v42 = vld [vmem:[%s41] sm:$0x1]
    %43 = vrot.lane.b32.xlu0 %v42, 72
    %v44 = vpop.permute.xlu0 %43
    %vm45 = vcmask 654912
    %46 = vst.msk [vmem:[#allocation0] sm:$0x1] %vm45, %v44
    %s47 = scalar_lea.vmem %s0, 8
    %v48 = vld [vmem:[%s47] sm:$0x1]
    %49 = vrot.lane.b32.xlu0 %v48, 64
    %v50 = vpop.permute.xlu0 %49
    %vm51 = vcmask 589312
    %52 = vst.msk [vmem:[#allocation0] sm:$0x1] %vm51, %v50
    %s53 = scalar_lea.vmem %s0, 7
    %v54 = vld [vmem:[%s53] sm:$0x1]
    %55 = vrot.lane.b32.xlu0 %v54, 56
    %v56 = vpop.permute.xlu0 %55
    %vm57 = vcmask 523712
    %58 = vst.msk [vmem:[#allocation0] sm:$0x1] %vm57, %v56
    %s59 = scalar_lea.vmem %s0, 6
    %v60 = vld [vmem:[%s59] sm:$0x1]
    %61 = vrot.lane.b32.xlu0 %v60, 48
    %v62 = vpop.permute.xlu0 %61
    %vm63 = vcmask 458112
    %64 = vst.msk [vmem:[#allocation0] sm:$0x1] %vm63, %v62
    %s65 = scalar_lea.vmem %s0, 5
    %v66 = vld [vmem:[%s65] sm:$0x1]
    %67 = vrot.lane.b32.xlu0 %v66, 40
    %v68 = vpop.permute.xlu0 %67
    %vm69 = vcmask 392512
    %70 = vst.msk [vmem:[#allocation0] sm:$0x1] %vm69, %v68
    %s71 = scalar_lea.vmem %s0, 4
    %v72 = vld [vmem:[%s71] sm:$0x1]
    %73 = vrot.lane.b32.xlu0 %v72, 32
    %v74 = vpop.permute.xlu0 %73
    %vm75 = vcmask 326912
    %76 = vst.msk [vmem:[#allocation0] sm:$0x1] %vm75, %v74
    %s77 = scalar_lea.vmem %s0, 3
    %v78 = vld [vmem:[%s77] sm:$0x1]
    %79 = vrot.lane.b32.xlu0 %v78, 24
    %v80 = vpop.permute.xlu0 %79
    %vm81 = vcmask 261312
    %82 = vst.msk [vmem:[#allocation0] sm:$0x1] %vm81, %v80
    %s83 = scalar_lea.vmem %s0, 2
    %v84 = vld [vmem:[%s83] sm:$0x1]
    %85 = vrot.lane.b32.xlu0 %v84, 16
    %v86 = vpop.permute.xlu0 %85
    %vm87 = vcmask 195712
    %88 = vst.msk [vmem:[#allocation0] sm:$0x1] %vm87, %v86
    %s89 = scalar_lea.vmem %s0, 1
    %v90 = vld [vmem:[%s89] sm:$0x1]
    %91 = vrot.lane.b32.xlu0 %v90, 8
    %v92 = vpop.permute.xlu0 %91
    %vm93 = vcmask 130112
    %94 = vst.msk [vmem:[#allocation0] sm:$0x1] %vm93, %v92
    %s96 = sshllo.u32 0, 1
    %v98 = vld [vmem:[#allocation0] sm:%s96]
    %s99 = sshllo.u32 0, 1
    %100 = vst [vmem:[%s1] sm:%s99] %v98

// kernel: _lambda_.2
$region0: #{_lambda_.2}
  #allocation0 [shape = 'u32[]', space=smem, size = 0x4, offset = 0x4, fixed_abs, tag = 'smem constant byte address 0x4 - core index']
  #allocation1 [shape = 'u32[144,128]{1,0:T(1,128)}', space=vmem, size = 0x12000, scoped, tag = 'internal scratch']
  %s0 = inlined_call_operand.vmem [shape: f32[512,1728], index: 0, kind: input, shape index: {}]
  %s1 = inlined_call_operand.vmem [shape: f32[1728,128], index: 1, kind: input, shape index: {}]
  %s2 = inlined_call_operand.vmem [shape: f32[1,128], index: 2, kind: input, shape index: {}]
  %s3 = inlined_call_operand.vmem [shape: f32[512,128], index: 3, kind: output, shape index: {}]
  %s4 = sld [smem:[#allocation0]]
  $region45: #{_lambda_.2} parent=0
    _
  %s6 = ssub.s32 1, %s4
  %s7 = scalar_select 0, %s6, %s4
  loop: start=0, step=1, limit=6
  $region2: #{_lambda_.2} parent=0 // loop_pre_header
    _
  $region3: #{_lambda_.2} parent=0 // loop_header
    %s9 = sphi 0, %s13
    %p10 = scmp.ge.s32.totalorder %s9, 6
    %s19 = sphi 0, %s21
    %s22 = sphi 0, %s19
    %s23 = sphi 0, %s22
    %s39 = sphi 0, %s23
    %s43 = sphi 0, %s43
    %s45 = sphi 0, %s43
    %s46 = sphi 0, %s45
    %s60 = sphi 0, %s46
    %s64 = sphi 0, %s64
    %s66 = sphi 0, %s64
    %s67 = sphi 0, %s66
    %s81 = sphi 0, %s67
    %s87 = sphi 0, %s89
    %s90 = sphi 0, %s87
    %s91 = sphi 0, %s90
    %s107 = sphi 0, %s91
  $region4: #{_lambda_.2} parent=0 // loop_header_branch
    %12 = sbr.rel (%p10) target = $region8
  $region5: #{_lambda_.2} parent=0 // loop_body
    %s14 = ssub.s32 %s9, 1
    %s15 = ssub.s32 %s9, 2
    %s16 = sadd.s32 %s9, 1
    %s17 = ssub.s32 %s9, %s16
    %p18 = scmp.eq.s32.totalorder %s17, 0
    %s20 = sadd.s32 %s19, 1
    %s21 = scalar_select %p18, %s19, %s20
    %p24 = pneg %p18
    %p25 = scmp.eq.s32.totalorder %s9, 3
    %p26 = por %p24, %p25
    %p27 = scmp.ne.s32.totalorder %s19, %s22
    %p28 = scmp.eq.s32.totalorder %s9, 0
    %p29 = por %p27, %p28
    %p30 = scmp.ne.s32.totalorder %s19, %s22
    %p31 = scmp.eq.s32.totalorder %s14, 3
    %p32 = por %p30, %p31
    %p33 = scmp.ne.s32.totalorder %s22, %s23
    %p34 = scmp.eq.s32.totalorder %s14, 0
    %p35 = por %p33, %p34
    %p36 = scmp.ne.s32.totalorder %s22, %s23
    %p37 = scmp.eq.s32.totalorder %s15, 3
    %p38 = por %p36, %p37
    %p40 = scmp.ne.s32.totalorder %s23, %s39
    %p41 = scmp.eq.s32.totalorder %s15, 0
    %p42 = por %p40, %p41
    %s44 = sadd.s32 %s43, 1
    %p47 = scmp.eq.s32.totalorder %s9, 3
    %p48 = scmp.ne.s32.totalorder %s43, %s45
    %p49 = scmp.eq.s32.totalorder %s9, 0
    %p50 = por %p48, %p49
    %p51 = scmp.ne.s32.totalorder %s43, %s45
    %p52 = scmp.eq.s32.totalorder %s14, 3
    %p53 = por %p51, %p52
    %p54 = scmp.ne.s32.totalorder %s45, %s46
    %p55 = scmp.eq.s32.totalorder %s14, 0
    %p56 = por %p54, %p55
    %p57 = scmp.ne.s32.totalorder %s45, %s46
    %p58 = scmp.eq.s32.totalorder %s15, 3
    %p59 = por %p57, %p58
    %p61 = scmp.ne.s32.totalorder %s46, %s60
    %p62 = scmp.eq.s32.totalorder %s15, 0
    %p63 = por %p61, %p62
    %s65 = sadd.s32 %s64, 1
    %p68 = scmp.eq.s32.totalorder %s9, 3
    %p69 = scmp.ne.s32.totalorder %s64, %s66
    %p70 = scmp.eq.s32.totalorder %s9, 0
    %p71 = por %p69, %p70
    %p72 = scmp.ne.s32.totalorder %s64, %s66
    %p73 = scmp.eq.s32.totalorder %s14, 3
    %p74 = por %p72, %p73
    %p75 = scmp.ne.s32.totalorder %s66, %s67
    %p76 = scmp.eq.s32.totalorder %s14, 0
    %p77 = por %p75, %p76
    %p78 = scmp.ne.s32.totalorder %s66, %s67
    %p79 = scmp.eq.s32.totalorder %s15, 3
    %p80 = por %p78, %p79
    %p82 = scmp.ne.s32.totalorder %s67, %s81
    %p83 = scmp.eq.s32.totalorder %s15, 0
    %p84 = por %p82, %p83
    %s85 = ssub.s32 %s9, %s16
    %p86 = scmp.eq.s32.totalorder %s85, 0
    %s88 = sadd.s32 %s87, 1
    %s89 = scalar_select %p86, %s87, %s88
    %p92 = pneg %p86
    %p93 = scmp.eq.s32.totalorder %s9, 3
    %p94 = por %p92, %p93
    %p95 = scmp.ne.s32.totalorder %s87, %s90
    %p96 = scmp.eq.s32.totalorder %s9, 0
    %p97 = por %p95, %p96
    %p98 = scmp.ne.s32.totalorder %s87, %s90
    %p99 = scmp.eq.s32.totalorder %s14, 3
    %p100 = por %p98, %p99
    %p101 = scmp.ne.s32.totalorder %s90, %s91
    %p102 = scmp.eq.s32.totalorder %s14, 0
    %p103 = por %p101, %p102
    %p104 = scmp.ne.s32.totalorder %s90, %s91
    %p105 = scmp.eq.s32.totalorder %s15, 3
    %p106 = por %p104, %p105
    %p108 = scmp.ne.s32.totalorder %s91, %s107
    %p109 = scmp.eq.s32.totalorder %s15, 0
    %p110 = por %p108, %p109
    %p111 = scmp.le.s32.totalorder 1, %s9
    %p112 = scmp.lt.s32.totalorder %s9, 5
    %p113 = pnand %p111, %p112
    %p114 = pneg %p113
    // Predicated region
    $region9: #{_lambda_.2} parent=5 // pred_check
      _
    $region10: #{_lambda_.2} parent=5 // pred_check_branch
      %116 = sbr.rel (%p113) target = $region12
    $region11: #{_lambda_.2} parent=5 // pred_region
      %s117 = ssub.s32 %s9, 1
      // Predicated region
      $region13: #{_lambda_.2} parent=11 // pred_check
        %p118 = pneg %p56
      $region14: #{_lambda_.2} parent=11 // pred_check_branch
        %120 = sbr.rel (%p118) target = $region16
      $region15: #{_lambda_.2} parent=11 // pred_region
        _
      $region16: #{_lambda_.2} parent=11 // pred_fallthru
        _
      // Predicated region
      $region17: #{_lambda_.2} parent=11 // pred_check
        %p121 = pneg %p77
      $region18: #{_lambda_.2} parent=11 // pred_check_branch
        %123 = sbr.rel (%p121) target = $region20
      $region19: #{_lambda_.2} parent=11 // pred_region
        _
      $region20: #{_lambda_.2} parent=11 // pred_fallthru
        _
    $region12: #{_lambda_.2} parent=5 // pred_fallthru
      _
    %p124 = scmp.lt.s32.totalorder %s9, 4
    // Predicated region
    $region21: #{_lambda_.2} parent=5 // pred_check
      %p125 = pneg %p124
    $region22: #{_lambda_.2} parent=5 // pred_check_branch
      %127 = sbr.rel (%p125) target = $region24
    $region23: #{_lambda_.2} parent=5 // pred_region
      // Predicated region
      $region25: #{_lambda_.2} parent=23 // pred_check
        %p128 = pneg %p29
      $region26: #{_lambda_.2} parent=23 // pred_check_branch
        %130 = sbr.rel (%p128) target = $region28
      $region27: #{_lambda_.2} parent=23 // pred_region
        %s131 = smul.u32 16, %s9
        %p132 = scmp.lt.s32.totalorder %s131, 63
        %s133 = scalar_select %p132, %s131, 63
        %s134 = smul.addr %s133, 14
        %s135 = smul.addr %s134, 8
        %s136 = scalar_lea.vmem %s0, %s135
        %s137 = smul.u32 16, %s9
      $region28: #{_lambda_.2} parent=23 // pred_fallthru
        _
    $region24: #{_lambda_.2} parent=5 // pred_fallthru
      _
    %p138 = scmp.le.s32.totalorder 1, %s9
    %p139 = scmp.lt.s32.totalorder %s9, 5
    %p140 = pnand %p138, %p139
    %p141 = pneg %p140
    // Predicated region
    $region29: #{_lambda_.2} parent=5 // pred_check
      _
    $region30: #{_lambda_.2} parent=5 // pred_check_branch
      %143 = sbr.rel (%p140) target = $region32
    $region31: #{_lambda_.2} parent=5 // pred_region
      %s144 = ssub.s32 %s9, 1
      %s145 = smul.u32 16, %s14
      %p146 = scmp.lt.s32.totalorder %s145, 63
      %s147 = scalar_select %p146, %s145, 63
      %s148 = smul.addr %s147, 14
      %s149 = smul.addr %s148, 8
      %s150 = scalar_lea.vmem %s0, %s149
      %p151 = pneg %p35
      %p152 = pneg %p32
      %p153 = pneg %p56
      %p154 = pneg %p53
      %p155 = pneg %p77
      %p156 = pneg %p74
      %p157 = pneg %p103
      %p158 = pneg %p100
      %s159 = smul.u32 16, %s14
      %p160 = scmp.lt.s32.totalorder %s159, 63
      %s161 = scalar_select %p160, %s159, 63
      %s162 = smul.addr %s161, 8
      %s163 = scalar_lea.vmem %s3, %s162
      %s164 = smul.u32 16, %s14
      %p165 = scmp.lt.s32.totalorder %s164, 63
      %s166 = scalar_select %p165, %s164, 63
      %s167 = smul.addr %s166, 14
      %s168 = smul.addr %s167, 8
      %s169 = scalar_lea.vmem %s0, %s168
      %s170 = smul.u32 16, %s14
      %s171 = smul.u32 16, %s14
      %p172 = scmp.lt.s32.totalorder %s171, 63
      %s173 = scalar_select %p172, %s171, 63
      %s174 = smul.addr %s173, 8
      %s175 = scalar_lea.vmem %s3, %s174
      %s176 = smul.u32 16, %s14
      %v177 = vld [vmem:[%s169] sm:$0xff]
      %v178 = vld [vmem:[%s169 + $0x8] sm:$0xff]
      %v179 = vld [vmem:[%s169 + $0x10] sm:$0xff]
      %v180 = vld [vmem:[%s169 + $0x18] sm:$0xff]
      %v181 = vld [vmem:[%s169 + $0x20] sm:$0xff]
      %v182 = vld [vmem:[%s169 + $0x28] sm:$0xff]
      %v183 = vld [vmem:[%s169 + $0x30] sm:$0xff]
      %v184 = vld [vmem:[%s169 + $0x38] sm:$0xff]
      %v185 = vld [vmem:[%s169 + $0x40] sm:$0xff]
      %v186 = vld [vmem:[%s169 + $0x48] sm:$0xff]
      %v187 = vld [vmem:[%s169 + $0x50] sm:$0xff]
      %v188 = vld [vmem:[%s169 + $0x58] sm:$0xff]
      %v189 = vld [vmem:[%s169 + $0x60] sm:$0xff]
      %v190 = vld [vmem:[%s169 + $0x68] sm:$0xff]
      %v191 = vld [vmem:[%s169 + $0x70] sm:$0xff]
      %v192 = vld [vmem:[%s169 + $0x78] sm:$0xff]
      %v193 = vld [vmem:[%s169 + $0x80] sm:$0xff]
      %v194 = vld [vmem:[%s169 + $0x88] sm:$0xff]
      %v195 = vld [vmem:[%s169 + $0x90] sm:$0xff]
      %v196 = vld [vmem:[%s169 + $0x98] sm:$0xff]
      %v197 = vld [vmem:[%s169 + $0xa0] sm:$0xff]
      %v198 = vld [vmem:[%s169 + $0xa8] sm:$0xff]
      %v199 = vld [vmem:[%s169 + $0xb0] sm:$0xff]
      %v200 = vld [vmem:[%s169 + $0xb8] sm:$0xff]
      %v201 = vld [vmem:[%s169 + $0xc0] sm:$0xff]
      %v202 = vld [vmem:[%s169 + $0xc8] sm:$0xff]
      %v203 = vld [vmem:[%s169 + $0xd0] sm:$0xff]
      %v204 = vld [vmem:[%s169 + $0xd8] sm:$0xff]
      %v205 = vld [vmem:[%s169 + $0xe0] sm:$0xff]
      %v206 = vld [vmem:[%s169 + $0xe8] sm:$0xff]
      %v207 = vld [vmem:[%s169 + $0xf0] sm:$0xff]
      %v208 = vld [vmem:[%s169 + $0xf8] sm:$0xff]
      %v209 = vld [vmem:[%s169 + $0x100] sm:$0xff]
      %v210 = vld [vmem:[%s169 + $0x108] sm:$0xff]
      %v211 = vld [vmem:[%s169 + $0x110] sm:$0xff]
      %v212 = vld [vmem:[%s169 + $0x118] sm:$0xff]
      %v213 = vld [vmem:[%s169 + $0x120] sm:$0xff]
      %v214 = vld [vmem:[%s169 + $0x128] sm:$0xff]
      %v215 = vld [vmem:[%s169 + $0x130] sm:$0xff]
      %v216 = vld [vmem:[%s169 + $0x138] sm:$0xff]
      %v217 = vld [vmem:[%s169 + $0x140] sm:$0xff]
      %v218 = vld [vmem:[%s169 + $0x148] sm:$0xff]
      %v219 = vld [vmem:[%s169 + $0x150] sm:$0xff]
      %v220 = vld [vmem:[%s169 + $0x158] sm:$0xff]
      %v221 = vld [vmem:[%s169 + $0x160] sm:$0xff]
      %v222 = vld [vmem:[%s169 + $0x168] sm:$0xff]
      %v223 = vld [vmem:[%s169 + $0x170] sm:$0xff]
      %v224 = vld [vmem:[%s169 + $0x178] sm:$0xff]
      %v225 = vld [vmem:[%s169 + $0x180] sm:$0xff]
      %v226 = vld [vmem:[%s169 + $0x188] sm:$0xff]
      %v227 = vld [vmem:[%s169 + $0x190] sm:$0xff]
      %v228 = vld [vmem:[%s169 + $0x198] sm:$0xff]
      %v229 = vld [vmem:[%s169 + $0x1a0] sm:$0xff]
      %v230 = vld [vmem:[%s169 + $0x1a8] sm:$0xff]
      %v231 = vld [vmem:[%s169 + $0x1b0] sm:$0xff]
      %v232 = vld [vmem:[%s169 + $0x1b8] sm:$0xff]
      %v233 = vld [vmem:[%s169 + $0x1c0] sm:$0xff]
      %v234 = vld [vmem:[%s169 + $0x1c8] sm:$0xff]
      %v235 = vld [vmem:[%s169 + $0x1d0] sm:$0xff]
      %v236 = vld [vmem:[%s169 + $0x1d8] sm:$0xff]
      %v237 = vld [vmem:[%s169 + $0x1e0] sm:$0xff]
      %v238 = vld [vmem:[%s169 + $0x1e8] sm:$0xff]
      %v239 = vld [vmem:[%s169 + $0x1f0] sm:$0xff]
      %v240 = vld [vmem:[%s169 + $0x1f8] sm:$0xff]
      %v241 = vld [vmem:[%s169 + $0x200] sm:$0xff]
      %v242 = vld [vmem:[%s169 + $0x208] sm:$0xff]
      %v243 = vld [vmem:[%s169 + $0x210] sm:$0xff]
      %v244 = vld [vmem:[%s169 + $0x218] sm:$0xff]
      %v245 = vld [vmem:[%s169 + $0x220] sm:$0xff]
      %v246 = vld [vmem:[%s169 + $0x228] sm:$0xff]
      %v247 = vld [vmem:[%s169 + $0x230] sm:$0xff]
      %v248 = vld [vmem:[%s169 + $0x238] sm:$0xff]
      %v249 = vld [vmem:[%s169 + $0x240] sm:$0xff]
      %v250 = vld [vmem:[%s169 + $0x248] sm:$0xff]
      %v251 = vld [vmem:[%s169 + $0x250] sm:$0xff]
      %v252 = vld [vmem:[%s169 + $0x258] sm:$0xff]
      %v253 = vld [vmem:[%s169 + $0x260] sm:$0xff]
      %v254 = vld [vmem:[%s169 + $0x268] sm:$0xff]
      %v255 = vld [vmem:[%s169 + $0x270] sm:$0xff]
      %v256 = vld [vmem:[%s169 + $0x278] sm:$0xff]
      %v257 = vld [vmem:[%s169 + $0x280] sm:$0xff]
      %v258 = vld [vmem:[%s169 + $0x288] sm:$0xff]
      %v259 = vld [vmem:[%s169 + $0x290] sm:$0xff]
      %v260 = vld [vmem:[%s169 + $0x298] sm:$0xff]
      %v261 = vld [vmem:[%s169 + $0x2a0] sm:$0xff]
      %v262 = vld [vmem:[%s169 + $0x2a8] sm:$0xff]
      %v263 = vld [vmem:[%s169 + $0x2b0] sm:$0xff]
      %v264 = vld [vmem:[%s169 + $0x2b8] sm:$0xff]
      %v265 = vld [vmem:[%s169 + $0x2c0] sm:$0xff]
      %v266 = vld [vmem:[%s169 + $0x2c8] sm:$0xff]
      %v267 = vld [vmem:[%s169 + $0x2d0] sm:$0xff]
      %v268 = vld [vmem:[%s169 + $0x2d8] sm:$0xff]
      %v269 = vld [vmem:[%s169 + $0x2e0] sm:$0xff]
      %v270 = vld [vmem:[%s169 + $0x2e8] sm:$0xff]
      %v271 = vld [vmem:[%s169 + $0x2f0] sm:$0xff]
      %v272 = vld [vmem:[%s169 + $0x2f8] sm:$0xff]
      %v273 = vld [vmem:[%s169 + $0x300] sm:$0xff]
      %v274 = vld [vmem:[%s169 + $0x308] sm:$0xff]
      %v275 = vld [vmem:[%s169 + $0x310] sm:$0xff]
      %v276 = vld [vmem:[%s169 + $0x318] sm:$0xff]
      %v277 = vld [vmem:[%s169 + $0x320] sm:$0xff]
      %v278 = vld [vmem:[%s169 + $0x328] sm:$0xff]
      %v279 = vld [vmem:[%s169 + $0x330] sm:$0xff]
      %v280 = vld [vmem:[%s169 + $0x338] sm:$0xff]
      %v281 = vld [vmem:[%s169 + $0x340] sm:$0xff]
      %v282 = vld [vmem:[%s169 + $0x348] sm:$0xff]
      %v283 = vld [vmem:[%s169 + $0x350] sm:$0xff]
      %v284 = vld [vmem:[%s169 + $0x358] sm:$0xff]
      %v285 = vld [vmem:[%s169 + $0x360] sm:$0xff]
      %v286 = vld [vmem:[%s169 + $0x368] sm:$0xff]
      %v287 = vld [vmem:[%s169 + $0x370] sm:$0xff]
      %v288 = vld [vmem:[%s169 + $0x378] sm:$0xff]
      %v289 = vld [vmem:[%s169 + $0x380] sm:$0xff]
      %v290 = vld [vmem:[%s169 + $0x388] sm:$0xff]
      %v291 = vld [vmem:[%s169 + $0x390] sm:$0xff]
      %v292 = vld [vmem:[%s169 + $0x398] sm:$0xff]
      %v293 = vld [vmem:[%s169 + $0x3a0] sm:$0xff]
      %v294 = vld [vmem:[%s169 + $0x3a8] sm:$0xff]
      %v295 = vld [vmem:[%s169 + $0x3b0] sm:$0xff]
      %v296 = vld [vmem:[%s169 + $0x3b8] sm:$0xff]
      %v297 = vld [vmem:[%s169 + $0x3c0] sm:$0xff]
      %v298 = vld [vmem:[%s169 + $0x3c8] sm:$0xff]
      %v299 = vld [vmem:[%s169 + $0x3d0] sm:$0xff]
      %v300 = vld [vmem:[%s169 + $0x3d8] sm:$0xff]
      %v301 = vld [vmem:[%s169 + $0x3e0] sm:$0xff]
      %v302 = vld [vmem:[%s169 + $0x3e8] sm:$0xff]
      %v303 = vld [vmem:[%s169 + $0x3f0] sm:$0xff]
      %v304 = vld [vmem:[%s169 + $0x3f8] sm:$0xff]
      %v305 = vld [vmem:[%s169 + $0x400] sm:$0xff]
      %v306 = vld [vmem:[%s169 + $0x408] sm:$0xff]
      %v307 = vld [vmem:[%s169 + $0x410] sm:$0xff]
      %v308 = vld [vmem:[%s169 + $0x418] sm:$0xff]
      %v309 = vld [vmem:[%s169 + $0x420] sm:$0xff]
      %v310 = vld [vmem:[%s169 + $0x428] sm:$0xff]
      %v311 = vld [vmem:[%s169 + $0x430] sm:$0xff]
      %v312 = vld [vmem:[%s169 + $0x438] sm:$0xff]
      %v313 = vld [vmem:[%s169 + $0x440] sm:$0xff]
      %v314 = vld [vmem:[%s169 + $0x448] sm:$0xff]
      %v315 = vld [vmem:[%s169 + $0x450] sm:$0xff]
      %v316 = vld [vmem:[%s169 + $0x458] sm:$0xff]
      %v317 = vld [vmem:[%s169 + $0x460] sm:$0xff]
      %v318 = vld [vmem:[%s169 + $0x468] sm:$0xff]
      %v319 = vld [vmem:[%s169 + $0x470] sm:$0xff]
      %v320 = vld [vmem:[%s169 + $0x478] sm:$0xff]
      %v321 = vld [vmem:[%s169 + $0x480] sm:$0xff]
      %v322 = vld [vmem:[%s169 + $0x488] sm:$0xff]
      %v323 = vld [vmem:[%s169 + $0x490] sm:$0xff]
      %v324 = vld [vmem:[%s169 + $0x498] sm:$0xff]
      %v325 = vld [vmem:[%s169 + $0x4a0] sm:$0xff]
      %v326 = vld [vmem:[%s169 + $0x4a8] sm:$0xff]
      %v327 = vld [vmem:[%s169 + $0x4b0] sm:$0xff]
      %v328 = vld [vmem:[%s169 + $0x4b8] sm:$0xff]
      %v329 = vld [vmem:[%s169 + $0x4c0] sm:$0xff]
      %v330 = vld [vmem:[%s169 + $0x4c8] sm:$0xff]
      %v331 = vld [vmem:[%s169 + $0x4d0] sm:$0xff]
      %v332 = vld [vmem:[%s169 + $0x4d8] sm:$0xff]
      %v333 = vld [vmem:[%s169 + $0x4e0] sm:$0xff]
      %v334 = vld [vmem:[%s169 + $0x4e8] sm:$0xff]
      %v335 = vld [vmem:[%s169 + $0x4f0] sm:$0xff]
      %v336 = vld [vmem:[%s169 + $0x4f8] sm:$0xff]
      %v337 = vld [vmem:[%s169 + $0x500] sm:$0xff]
      %v338 = vld [vmem:[%s169 + $0x508] sm:$0xff]
      %v339 = vld [vmem:[%s169 + $0x510] sm:$0xff]
      %v340 = vld [vmem:[%s169 + $0x518] sm:$0xff]
      %v341 = vld [vmem:[%s169 + $0x520] sm:$0xff]
      %v342 = vld [vmem:[%s169 + $0x528] sm:$0xff]
      %v343 = vld [vmem:[%s169 + $0x530] sm:$0xff]
      %v344 = vld [vmem:[%s169 + $0x538] sm:$0xff]
      %v345 = vld [vmem:[%s169 + $0x540] sm:$0xff]
      %v346 = vld [vmem:[%s169 + $0x548] sm:$0xff]
      %v347 = vld [vmem:[%s169 + $0x550] sm:$0xff]
      %v348 = vld [vmem:[%s169 + $0x558] sm:$0xff]
      %v349 = vld [vmem:[%s169 + $0x560] sm:$0xff]
      %v350 = vld [vmem:[%s169 + $0x568] sm:$0xff]
      %v351 = vld [vmem:[%s169 + $0x570] sm:$0xff]
      %v352 = vld [vmem:[%s169 + $0x578] sm:$0xff]
      %v353 = vld [vmem:[%s169 + $0x580] sm:$0xff]
      %v354 = vld [vmem:[%s169 + $0x588] sm:$0xff]
      %v355 = vld [vmem:[%s169 + $0x590] sm:$0xff]
      %v356 = vld [vmem:[%s169 + $0x598] sm:$0xff]
      %v357 = vld [vmem:[%s169 + $0x5a0] sm:$0xff]
      %v358 = vld [vmem:[%s169 + $0x5a8] sm:$0xff]
      %v359 = vld [vmem:[%s169 + $0x5b0] sm:$0xff]
      %v360 = vld [vmem:[%s169 + $0x5b8] sm:$0xff]
      %v361 = vld [vmem:[%s169 + $0x5c0] sm:$0xff]
      %v362 = vld [vmem:[%s169 + $0x5c8] sm:$0xff]
      %v363 = vld [vmem:[%s169 + $0x5d0] sm:$0xff]
      %v364 = vld [vmem:[%s169 + $0x5d8] sm:$0xff]
      %v365 = vld [vmem:[%s169 + $0x5e0] sm:$0xff]
      %v366 = vld [vmem:[%s169 + $0x5e8] sm:$0xff]
      %v367 = vld [vmem:[%s169 + $0x5f0] sm:$0xff]
      %v368 = vld [vmem:[%s169 + $0x5f8] sm:$0xff]
      %v369 = vld [vmem:[%s169 + $0x600] sm:$0xff]
      %v370 = vld [vmem:[%s169 + $0x608] sm:$0xff]
      %v371 = vld [vmem:[%s169 + $0x610] sm:$0xff]
      %v372 = vld [vmem:[%s169 + $0x618] sm:$0xff]
      %v373 = vld [vmem:[%s169 + $0x620] sm:$0xff]
      %v374 = vld [vmem:[%s169 + $0x628] sm:$0xff]
      %v375 = vld [vmem:[%s169 + $0x630] sm:$0xff]
      %v376 = vld [vmem:[%s169 + $0x638] sm:$0xff]
      %v377 = vld [vmem:[%s169 + $0x640] sm:$0xff]
      %v378 = vld [vmem:[%s169 + $0x648] sm:$0xff]
      %v379 = vld [vmem:[%s169 + $0x650] sm:$0xff]
      %v380 = vld [vmem:[%s169 + $0x658] sm:$0xff]
      %v381 = vld [vmem:[%s169 + $0x660] sm:$0xff]
      %v382 = vld [vmem:[%s169 + $0x668] sm:$0xff]
      %v383 = vld [vmem:[%s169 + $0x670] sm:$0xff]
      %v384 = vld [vmem:[%s169 + $0x678] sm:$0xff]
      %v385 = vld [vmem:[%s169 + $0x680] sm:$0xff]
      %v386 = vld [vmem:[%s169 + $0x688] sm:$0xff]
      %v387 = vld [vmem:[%s169 + $0x690] sm:$0xff]
      %v388 = vld [vmem:[%s169 + $0x698] sm:$0xff]
      %v389 = vld [vmem:[%s169 + $0x6a0] sm:$0xff]
      %v390 = vld [vmem:[%s169 + $0x6a8] sm:$0xff]
      %v391 = vld [vmem:[%s169 + $0x6b0] sm:$0xff]
      %v392 = vld [vmem:[%s169 + $0x6b8] sm:$0xff]
      %v393 = vld [vmem:[%s169 + $0x6c0] sm:$0xff]
      %v394 = vld [vmem:[%s169 + $0x6c8] sm:$0xff]
      %v395 = vld [vmem:[%s169 + $0x6d0] sm:$0xff]
      %v396 = vld [vmem:[%s169 + $0x6d8] sm:$0xff]
      %v397 = vld [vmem:[%s169 + $0x6e0] sm:$0xff]
      %v398 = vld [vmem:[%s169 + $0x6e8] sm:$0xff]
      %v399 = vld [vmem:[%s169 + $0x6f0] sm:$0xff]
      %v400 = vld [vmem:[%s169 + $0x6f8] sm:$0xff]
      %v401 = vld [vmem:[%s1] sm:$0xff]
      %v402 = vld [vmem:[%s1 + $0x8] sm:$0xff]
      %v403 = vld [vmem:[%s1 + $0x10] sm:$0xff]
      %v404 = vld [vmem:[%s1 + $0x18] sm:$0xff]
      %v405 = vld [vmem:[%s1 + $0x20] sm:$0xff]
      %v406 = vld [vmem:[%s1 + $0x28] sm:$0xff]
      %v407 = vld [vmem:[%s1 + $0x30] sm:$0xff]
      %v408 = vld [vmem:[%s1 + $0x38] sm:$0xff]
      %v409 = vld [vmem:[%s1 + $0x40] sm:$0xff]
      %v410 = vld [vmem:[%s1 + $0x48] sm:$0xff]
      %v411 = vld [vmem:[%s1 + $0x50] sm:$0xff]
      %v412 = vld [vmem:[%s1 + $0x58] sm:$0xff]
      %v413 = vld [vmem:[%s1 + $0x60] sm:$0xff]
      %v414 = vld [vmem:[%s1 + $0x68] sm:$0xff]
      %v415 = vld [vmem:[%s1 + $0x70] sm:$0xff]
      %v416 = vld [vmem:[%s1 + $0x78] sm:$0xff]
      %v417 = vld [vmem:[%s1 + $0x80] sm:$0xff]
      %v418 = vld [vmem:[%s1 + $0x88] sm:$0xff]
      %v419 = vld [vmem:[%s1 + $0x90] sm:$0xff]
      %v420 = vld [vmem:[%s1 + $0x98] sm:$0xff]
      %v421 = vld [vmem:[%s1 + $0xa0] sm:$0xff]
      %v422 = vld [vmem:[%s1 + $0xa8] sm:$0xff]
      %v423 = vld [vmem:[%s1 + $0xb0] sm:$0xff]
      %v424 = vld [vmem:[%s1 + $0xb8] sm:$0xff]
      %v425 = vld [vmem:[%s1 + $0xc0] sm:$0xff]
      %v426 = vld [vmem:[%s1 + $0xc8] sm:$0xff]
      %v427 = vld [vmem:[%s1 + $0xd0] sm:$0xff]
      %v428 = vld [vmem:[%s1 + $0xd8] sm:$0xff]
      %v429 = vld [vmem:[%s1 + $0xe0] sm:$0xff]
      %v430 = vld [vmem:[%s1 + $0xe8] sm:$0xff]
      %v431 = vld [vmem:[%s1 + $0xf0] sm:$0xff]
      %v432 = vld [vmem:[%s1 + $0xf8] sm:$0xff]
      %v433 = vld [vmem:[%s1 + $0x100] sm:$0xff]
      %v434 = vld [vmem:[%s1 + $0x108] sm:$0xff]
      %v435 = vld [vmem:[%s1 + $0x110] sm:$0xff]
      %v436 = vld [vmem:[%s1 + $0x118] sm:$0xff]
      %v437 = vld [vmem:[%s1 + $0x120] sm:$0xff]
      %v438 = vld [vmem:[%s1 + $0x128] sm:$0xff]
      %v439 = vld [vmem:[%s1 + $0x130] sm:$0xff]
      %v440 = vld [vmem:[%s1 + $0x138] sm:$0xff]
      %v441 = vld [vmem:[%s1 + $0x140] sm:$0xff]
      %v442 = vld [vmem:[%s1 + $0x148] sm:$0xff]
      %v443 = vld [vmem:[%s1 + $0x150] sm:$0xff]
      %v444 = vld [vmem:[%s1 + $0x158] sm:$0xff]
      %v445 = vld [vmem:[%s1 + $0x160] sm:$0xff]
      %v446 = vld [vmem:[%s1 + $0x168] sm:$0xff]
      %v447 = vld [vmem:[%s1 + $0x170] sm:$0xff]
      %v448 = vld [vmem:[%s1 + $0x178] sm:$0xff]
      %v449 = vld [vmem:[%s1 + $0x180] sm:$0xff]
      %v450 = vld [vmem:[%s1 + $0x188] sm:$0xff]
      %v451 = vld [vmem:[%s1 + $0x190] sm:$0xff]
      %v452 = vld [vmem:[%s1 + $0x198] sm:$0xff]
      %v453 = vld [vmem:[%s1 + $0x1a0] sm:$0xff]
      %v454 = vld [vmem:[%s1 + $0x1a8] sm:$0xff]
      %v455 = vld [vmem:[%s1 + $0x1b0] sm:$0xff]
      %v456 = vld [vmem:[%s1 + $0x1b8] sm:$0xff]
      %v457 = vld [vmem:[%s1 + $0x1c0] sm:$0xff]
      %v458 = vld [vmem:[%s1 + $0x1c8] sm:$0xff]
      %v459 = vld [vmem:[%s1 + $0x1d0] sm:$0xff]
      %v460 = vld [vmem:[%s1 + $0x1d8] sm:$0xff]
      %v461 = vld [vmem:[%s1 + $0x1e0] sm:$0xff]
      %v462 = vld [vmem:[%s1 + $0x1e8] sm:$0xff]
      %v463 = vld [vmem:[%s1 + $0x1f0] sm:$0xff]
      %v464 = vld [vmem:[%s1 + $0x1f8] sm:$0xff]
      %v465 = vld [vmem:[%s1 + $0x200] sm:$0xff]
      %v466 = vld [vmem:[%s1 + $0x208] sm:$0xff]
      %v467 = vld [vmem:[%s1 + $0x210] sm:$0xff]
      %v468 = vld [vmem:[%s1 + $0x218] sm:$0xff]
      %v469 = vld [vmem:[%s1 + $0x220] sm:$0xff]
      %v470 = vld [vmem:[%s1 + $0x228] sm:$0xff]
      %v471 = vld [vmem:[%s1 + $0x230] sm:$0xff]
      %v472 = vld [vmem:[%s1 + $0x238] sm:$0xff]
      %v473 = vld [vmem:[%s1 + $0x240] sm:$0xff]
      %v474 = vld [vmem:[%s1 + $0x248] sm:$0xff]
      %v475 = vld [vmem:[%s1 + $0x250] sm:$0xff]
      %v476 = vld [vmem:[%s1 + $0x258] sm:$0xff]
      %v477 = vld [vmem:[%s1 + $0x260] sm:$0xff]
      %v478 = vld [vmem:[%s1 + $0x268] sm:$0xff]
      %v479 = vld [vmem:[%s1 + $0x270] sm:$0xff]
      %v480 = vld [vmem:[%s1 + $0x278] sm:$0xff]
      %v481 = vld [vmem:[%s1 + $0x280] sm:$0xff]
      %v482 = vld [vmem:[%s1 + $0x288] sm:$0xff]
      %v483 = vld [vmem:[%s1 + $0x290] sm:$0xff]
      %v484 = vld [vmem:[%s1 + $0x298] sm:$0xff]
      %v485 = vld [vmem:[%s1 + $0x2a0] sm:$0xff]
      %v486 = vld [vmem:[%s1 + $0x2a8] sm:$0xff]
      %v487 = vld [vmem:[%s1 + $0x2b0] sm:$0xff]
      %v488 = vld [vmem:[%s1 + $0x2b8] sm:$0xff]
      %v489 = vld [vmem:[%s1 + $0x2c0] sm:$0xff]
      %v490 = vld [vmem:[%s1 + $0x2c8] sm:$0xff]
      %v491 = vld [vmem:[%s1 + $0x2d0] sm:$0xff]
      %v492 = vld [vmem:[%s1 + $0x2d8] sm:$0xff]
      %v493 = vld [vmem:[%s1 + $0x2e0] sm:$0xff]
      %v494 = vld [vmem:[%s1 + $0x2e8] sm:$0xff]
      %v495 = vld [vmem:[%s1 + $0x2f0] sm:$0xff]
      %v496 = vld [vmem:[%s1 + $0x2f8] sm:$0xff]
      %v497 = vld [vmem:[%s1 + $0x300] sm:$0xff]
      %v498 = vld [vmem:[%s1 + $0x308] sm:$0xff]
      %v499 = vld [vmem:[%s1 + $0x310] sm:$0xff]
      %v500 = vld [vmem:[%s1 + $0x318] sm:$0xff]
      %v501 = vld [vmem:[%s1 + $0x320] sm:$0xff]
      %v502 = vld [vmem:[%s1 + $0x328] sm:$0xff]
      %v503 = vld [vmem:[%s1 + $0x330] sm:$0xff]
      %v504 = vld [vmem:[%s1 + $0x338] sm:$0xff]
      %v505 = vld [vmem:[%s1 + $0x340] sm:$0xff]
      %v506 = vld [vmem:[%s1 + $0x348] sm:$0xff]
      %v507 = vld [vmem:[%s1 + $0x350] sm:$0xff]
      %v508 = vld [vmem:[%s1 + $0x358] sm:$0xff]
      %v509 = vld [vmem:[%s1 + $0x360] sm:$0xff]
      %v510 = vld [vmem:[%s1 + $0x368] sm:$0xff]
      %v511 = vld [vmem:[%s1 + $0x370] sm:$0xff]
      %v512 = vld [vmem:[%s1 + $0x378] sm:$0xff]
      %v513 = vld [vmem:[%s1 + $0x380] sm:$0xff]
      %v514 = vld [vmem:[%s1 + $0x388] sm:$0xff]
      %v515 = vld [vmem:[%s1 + $0x390] sm:$0xff]
      %v516 = vld [vmem:[%s1 + $0x398] sm:$0xff]
      %v517 = vld [vmem:[%s1 + $0x3a0] sm:$0xff]
      %v518 = vld [vmem:[%s1 + $0x3a8] sm:$0xff]
      %v519 = vld [vmem:[%s1 + $0x3b0] sm:$0xff]
      %v520 = vld [vmem:[%s1 + $0x3b8] sm:$0xff]
      %v521 = vld [vmem:[%s1 + $0x3c0] sm:$0xff]
      %v522 = vld [vmem:[%s1 + $0x3c8] sm:$0xff]
      %v523 = vld [vmem:[%s1 + $0x3d0] sm:$0xff]
      %v524 = vld [vmem:[%s1 + $0x3d8] sm:$0xff]
      %v525 = vld [vmem:[%s1 + $0x3e0] sm:$0xff]
      %v526 = vld [vmem:[%s1 + $0x3e8] sm:$0xff]
      %v527 = vld [vmem:[%s1 + $0x3f0] sm:$0xff]
      %v528 = vld [vmem:[%s1 + $0x3f8] sm:$0xff]
      %v529 = vld [vmem:[%s1 + $0x400] sm:$0xff]
      %v530 = vld [vmem:[%s1 + $0x408] sm:$0xff]
      %v531 = vld [vmem:[%s1 + $0x410] sm:$0xff]
      %v532 = vld [vmem:[%s1 + $0x418] sm:$0xff]
      %v533 = vld [vmem:[%s1 + $0x420] sm:$0xff]
      %v534 = vld [vmem:[%s1 + $0x428] sm:$0xff]
      %v535 = vld [vmem:[%s1 + $0x430] sm:$0xff]
      %v536 = vld [vmem:[%s1 + $0x438] sm:$0xff]
      %v537 = vld [vmem:[%s1 + $0x440] sm:$0xff]
      %v538 = vld [vmem:[%s1 + $0x448] sm:$0xff]
      %v539 = vld [vmem:[%s1 + $0x450] sm:$0xff]
      %v540 = vld [vmem:[%s1 + $0x458] sm:$0xff]
      %v541 = vld [vmem:[%s1 + $0x460] sm:$0xff]
      %v542 = vld [vmem:[%s1 + $0x468] sm:$0xff]
      %v543 = vld [vmem:[%s1 + $0x470] sm:$0xff]
      %v544 = vld [vmem:[%s1 + $0x478] sm:$0xff]
      %v545 = vld [vmem:[%s1 + $0x480] sm:$0xff]
      %v546 = vld [vmem:[%s1 + $0x488] sm:$0xff]
      %v547 = vld [vmem:[%s1 + $0x490] sm:$0xff]
      %v548 = vld [vmem:[%s1 + $0x498] sm:$0xff]
      %v549 = vld [vmem:[%s1 + $0x4a0] sm:$0xff]
      %v550 = vld [vmem:[%s1 + $0x4a8] sm:$0xff]
      %v551 = vld [vmem:[%s1 + $0x4b0] sm:$0xff]
      %v552 = vld [vmem:[%s1 + $0x4b8] sm:$0xff]
      %v553 = vld [vmem:[%s1 + $0x4c0] sm:$0xff]
      %v554 = vld [vmem:[%s1 + $0x4c8] sm:$0xff]
      %v555 = vld [vmem:[%s1 + $0x4d0] sm:$0xff]
      %v556 = vld [vmem:[%s1 + $0x4d8] sm:$0xff]
      %v557 = vld [vmem:[%s1 + $0x4e0] sm:$0xff]
      %v558 = vld [vmem:[%s1 + $0x4e8] sm:$0xff]
      %v559 = vld [vmem:[%s1 + $0x4f0] sm:$0xff]
      %v560 = vld [vmem:[%s1 + $0x4f8] sm:$0xff]
      %v561 = vld [vmem:[%s1 + $0x500] sm:$0xff]
      %v562 = vld [vmem:[%s1 + $0x508] sm:$0xff]
      %v563 = vld [vmem:[%s1 + $0x510] sm:$0xff]
      %v564 = vld [vmem:[%s1 + $0x518] sm:$0xff]
      %v565 = vld [vmem:[%s1 + $0x520] sm:$0xff]
      %v566 = vld [vmem:[%s1 + $0x528] sm:$0xff]
      %v567 = vld [vmem:[%s1 + $0x530] sm:$0xff]
      %v568 = vld [vmem:[%s1 + $0x538] sm:$0xff]
      %v569 = vld [vmem:[%s1 + $0x540] sm:$0xff]
      %v570 = vld [vmem:[%s1 + $0x548] sm:$0xff]
      %v571 = vld [vmem:[%s1 + $0x550] sm:$0xff]
      %v572 = vld [vmem:[%s1 + $0x558] sm:$0xff]
      %v573 = vld [vmem:[%s1 + $0x560] sm:$0xff]
      %v574 = vld [vmem:[%s1 + $0x568] sm:$0xff]
      %v575 = vld [vmem:[%s1 + $0x570] sm:$0xff]
      %v576 = vld [vmem:[%s1 + $0x578] sm:$0xff]
      %v577 = vld [vmem:[%s1 + $0x580] sm:$0xff]
      %v578 = vld [vmem:[%s1 + $0x588] sm:$0xff]
      %v579 = vld [vmem:[%s1 + $0x590] sm:$0xff]
      %v580 = vld [vmem:[%s1 + $0x598] sm:$0xff]
      %v581 = vld [vmem:[%s1 + $0x5a0] sm:$0xff]
      %v582 = vld [vmem:[%s1 + $0x5a8] sm:$0xff]
      %v583 = vld [vmem:[%s1 + $0x5b0] sm:$0xff]
      %v584 = vld [vmem:[%s1 + $0x5b8] sm:$0xff]
      %v585 = vld [vmem:[%s1 + $0x5c0] sm:$0xff]
      %v586 = vld [vmem:[%s1 + $0x5c8] sm:$0xff]
      %v587 = vld [vmem:[%s1 + $0x5d0] sm:$0xff]
      %v588 = vld [vmem:[%s1 + $0x5d8] sm:$0xff]
      %v589 = vld [vmem:[%s1 + $0x5e0] sm:$0xff]
      %v590 = vld [vmem:[%s1 + $0x5e8] sm:$0xff]
      %v591 = vld [vmem:[%s1 + $0x5f0] sm:$0xff]
      %v592 = vld [vmem:[%s1 + $0x5f8] sm:$0xff]
      %v593 = vld [vmem:[%s1 + $0x600] sm:$0xff]
      %v594 = vld [vmem:[%s1 + $0x608] sm:$0xff]
      %v595 = vld [vmem:[%s1 + $0x610] sm:$0xff]
      %v596 = vld [vmem:[%s1 + $0x618] sm:$0xff]
      %v597 = vld [vmem:[%s1 + $0x620] sm:$0xff]
      %v598 = vld [vmem:[%s1 + $0x628] sm:$0xff]
      %v599 = vld [vmem:[%s1 + $0x630] sm:$0xff]
      %v600 = vld [vmem:[%s1 + $0x638] sm:$0xff]
      %v601 = vld [vmem:[%s1 + $0x640] sm:$0xff]
      %v602 = vld [vmem:[%s1 + $0x648] sm:$0xff]
      %v603 = vld [vmem:[%s1 + $0x650] sm:$0xff]
      %v604 = vld [vmem:[%s1 + $0x658] sm:$0xff]
      %v605 = vld [vmem:[%s1 + $0x660] sm:$0xff]
      %v606 = vld [vmem:[%s1 + $0x668] sm:$0xff]
      %v607 = vld [vmem:[%s1 + $0x670] sm:$0xff]
      %v608 = vld [vmem:[%s1 + $0x678] sm:$0xff]
      %v609 = vld [vmem:[%s1 + $0x680] sm:$0xff]
      %v610 = vld [vmem:[%s1 + $0x688] sm:$0xff]
      %v611 = vld [vmem:[%s1 + $0x690] sm:$0xff]
      %v612 = vld [vmem:[%s1 + $0x698] sm:$0xff]
      %v613 = vld [vmem:[%s1 + $0x6a0] sm:$0xff]
      %v614 = vld [vmem:[%s1 + $0x6a8] sm:$0xff]
      %v615 = vld [vmem:[%s1 + $0x6b0] sm:$0xff]
      %v616 = vld [vmem:[%s1 + $0x6b8] sm:$0xff]
      %v617 = vld [vmem:[%s2] sm:$0x1]
      %v619 = vlaneseq
      %v620 = vshrl.u32 %v619, 7
      %v621 = vsub.s32 0, %v620
      %v622 = vrot.slane %v617, %v621
      %vm624 = vcmask 523264
      %v626 = vsel %vm624, %v190, 0
      %v629 = vsel %vm624, %v204, 0
      %v632 = vsel %vm624, %v218, 0
      %v635 = vsel %vm624, %v232, 0
      %v638 = vsel %vm624, %v246, 0
      %v641 = vsel %vm624, %v260, 0
      %v644 = vsel %vm624, %v274, 0
      %v647 = vsel %vm624, %v288, 0
      %v650 = vsel %vm624, %v302, 0
      %v653 = vsel %vm624, %v316, 0
      %v656 = vsel %vm624, %v330, 0
      %v659 = vsel %vm624, %v344, 0
      %v662 = vsel %vm624, %v358, 0
      %v665 = vsel %vm624, %v372, 0
      %v668 = vsel %vm624, %v386, 0
      %v671 = vsel %vm624, %v400, 0
      %673 = vmatprep.subr.mxu0 0.0
      %674 = vmatpush1.msra.mxu0 %v401
      %675 = vmatprep.subr.mxu0 0.0
      %676 = vmatpush1.msra.mxu0 %v402
      %677 = vmatprep.subr.mxu0 0.0
      %678 = vmatpush1.msra.mxu0 %v403
      %679 = vmatprep.subr.mxu0 0.0
      %680 = vmatpush1.msra.mxu0 %v404
      %681 = vmatprep.subr.mxu0 0.0
      %682 = vmatpush1.msra.mxu0 %v405
      %683 = vmatprep.subr.mxu0 0.0
      %684 = vmatpush1.msra.mxu0 %v406
      %685 = vmatprep.subr.mxu0 0.0
      %686 = vmatpush1.msra.mxu0 %v407
      %687 = vmatprep.subr.mxu0 0.0
      %688 = vmatpush1.msra.mxu0 %v408
      %689 = vmatprep.subr.mxu0 0.0
      %690 = vmatpush1.msra.mxu0 %v409
      %691 = vmatprep.subr.mxu0 0.0
      %692 = vmatpush1.msra.mxu0 %v410
      %693 = vmatprep.subr.mxu0 0.0
      %694 = vmatpush1.msra.mxu0 %v411
      %695 = vmatprep.subr.mxu0 0.0
      %696 = vmatpush1.msra.mxu0 %v412
      %697 = vmatprep.subr.mxu0 0.0
      %698 = vmatpush1.msra.mxu0 %v413
      %699 = vmatprep.subr.mxu0 0.0
      %700 = vmatpush1.msra.mxu0 %v414
      %701 = vmatprep.subr.mxu0 0.0
      %702 = vmatpush1.msra.mxu0 %v415
      %703 = vmatprep.subr.mxu0 0.0
      %704 = vmatpush1.msra.mxu0 %v416
      %705 = vmatprep.subr.mxu0 0.0
      %706 = vmatpush1.msra.mxu0 %v417
      %707 = vmatprep.subr.mxu0 0.0
      %708 = vmatpush1.msra.mxu0 %v418
      %709 = vmatprep.subr.mxu0 0.0
      %710 = vmatpush1.msra.mxu0 %v419
      %711 = vmatprep.subr.mxu0 0.0
      %712 = vmatpush1.msra.mxu0 %v420
      %713 = vmatprep.subr.mxu0 0.0
      %714 = vmatpush1.msra.mxu0 %v421
      %715 = vmatprep.subr.mxu0 0.0
      %716 = vmatpush1.msra.mxu0 %v422
      %717 = vmatprep.subr.mxu0 0.0
      %718 = vmatpush1.msra.mxu0 %v423
      %719 = vmatprep.subr.mxu0 0.0
      %720 = vmatpush1.msra.mxu0 %v424
      %721 = vmatprep.subr.mxu0 0.0
      %722 = vmatpush1.msra.mxu0 %v425
      %723 = vmatprep.subr.mxu0 0.0
      %724 = vmatpush1.msra.mxu0 %v426
      %725 = vmatprep.subr.mxu0 0.0
      %726 = vmatpush1.msra.mxu0 %v427
      %727 = vmatprep.subr.mxu0 0.0
      %728 = vmatpush1.msra.mxu0 %v428
      %729 = vmatprep.subr.mxu0 0.0
      %730 = vmatpush1.msra.mxu0 %v429
      %731 = vmatprep.subr.mxu0 0.0
      %732 = vmatpush1.msra.mxu0 %v430
      %733 = vmatprep.subr.mxu0 0.0
      %734 = vmatpush1.msra.mxu0 %v431
      %735 = vmatprep.subr.mxu0 0.0
      %736 = vmatpush1.msra.mxu0 %v432
      %737 = vmatprep.mubr.f32.mxu0 %v178
      %738 = vmatmul.mubr.f32.gmra.mrb[0].mxu0 %v177
      %v739 = vpop.f32.mrb[0].mxu0
      %v740 = vadd.f32 %v622, %v739
      %v741 = vpop.f32.mrb[0].mxu0
      %742 = vmatprep.mubr.f32.mxu0 %v192
      %743 = vmatmul.mubr.f32.gmra.mrb[0].mxu0 %v191
      %v744 = vpop.f32.mrb[0].mxu0
      %v745 = vadd.f32 %v622, %v744
      %v746 = vpop.f32.mrb[0].mxu0
      %747 = vmatprep.mubr.f32.mxu0 %v206
      %748 = vmatmul.mubr.f32.gmra.mrb[0].mxu0 %v205
      %v749 = vpop.f32.mrb[0].mxu0
      %v750 = vadd.f32 %v622, %v749
      %v751 = vpop.f32.mrb[0].mxu0
      %752 = vmatprep.mubr.f32.mxu0 %v220
      %753 = vmatmul.mubr.f32.gmra.mrb[0].mxu0 %v219
      %v754 = vpop.f32.mrb[0].mxu0
      %v755 = vadd.f32 %v622, %v754
      %v756 = vpop.f32.mrb[0].mxu0
      %757 = vmatprep.mubr.f32.mxu0 %v234
      %758 = vmatmul.mubr.f32.gmra.mrb[0].mxu0 %v233
      %v759 = vpop.f32.mrb[0].mxu0
      %v760 = vadd.f32 %v622, %v759
      %v761 = vpop.f32.mrb[0].mxu0
      %762 = vmatprep.mubr.f32.mxu0 %v248
      %763 = vmatmul.mubr.f32.gmra.mrb[0].mxu0 %v247
      %v764 = vpop.f32.mrb[0].mxu0
      %v765 = vadd.f32 %v622, %v764
      %v766 = vpop.f32.mrb[0].mxu0
      %767 = vmatprep.mubr.f32.mxu0 %v262
      %768 = vmatmul.mubr.f32.gmra.mrb[0].mxu0 %v261
      %v769 = vpop.f32.mrb[0].mxu0
      %v770 = vadd.f32 %v622, %v769
      %v771 = vpop.f32.mrb[0].mxu0
      %772 = vmatprep.mubr.f32.mxu0 %v276
      %773 = vmatmul.mubr.f32.gmra.mrb[0].mxu0 %v275
      %v774 = vpop.f32.mrb[0].mxu0
      %v775 = vadd.f32 %v622, %v774
      %v776 = vpop.f32.mrb[0].mxu0
      %777 = vmatprep.mubr.f32.mxu0 %v290
      %778 = vmatmul.mubr.f32.gmra.mrb[0].mxu0 %v289
      %v779 = vpop.f32.mrb[0].mxu0
      %v780 = vadd.f32 %v622, %v779
      %v781 = vpop.f32.mrb[0].mxu0
      %782 = vmatprep.mubr.f32.mxu0 %v304
      %783 = vmatmul.mubr.f32.gmra.mrb[0].mxu0 %v303
      %v784 = vpop.f32.mrb[0].mxu0
      %v785 = vadd.f32 %v622, %v784
      %v786 = vpop.f32.mrb[0].mxu0
      %787 = vmatprep.mubr.f32.mxu0 %v318
      %788 = vmatmul.mubr.f32.gmra.mrb[0].mxu0 %v317
      %v789 = vpop.f32.mrb[0].mxu0
      %v790 = vadd.f32 %v622, %v789
      %v791 = vpop.f32.mrb[0].mxu0
      %792 = vmatprep.mubr.f32.mxu0 %v332
      %793 = vmatmul.mubr.f32.gmra.mrb[0].mxu0 %v331
      %v794 = vpop.f32.mrb[0].mxu0
      %v795 = vadd.f32 %v622, %v794
      %v796 = vpop.f32.mrb[0].mxu0
      %797 = vmatprep.mubr.f32.mxu0 %v346
      %798 = vmatmul.mubr.f32.gmra.mrb[0].mxu0 %v345
      %v799 = vpop.f32.mrb[0].mxu0
      %v800 = vadd.f32 %v622, %v799
      %v801 = vpop.f32.mrb[0].mxu0
      %802 = vmatprep.mubr.f32.mxu0 %v360
      %803 = vmatmul.mubr.f32.gmra.mrb[0].mxu0 %v359
      %v804 = vpop.f32.mrb[0].mxu0
      %v805 = vadd.f32 %v622, %v804
      %v806 = vpop.f32.mrb[0].mxu0
      %807 = vmatprep.mubr.f32.mxu0 %v374
      %808 = vmatmul.mubr.f32.gmra.mrb[0].mxu0 %v373
      %v809 = vpop.f32.mrb[0].mxu0
      %v810 = vadd.f32 %v622, %v809
      %v811 = vpop.f32.mrb[0].mxu0
      %812 = vmatprep.mubr.f32.mxu0 %v388
      %813 = vmatmul.mubr.f32.gmra.mrb[0].mxu0 %v387
      %v814 = vpop.f32.mrb[0].mxu0
      %v815 = vadd.f32 %v622, %v814
      %v816 = vpop.f32.mrb[0].mxu0
      %817 = vdwg.mxu0
      %818 = vmatprep.subr.mxu0 0.0
      %819 = vmatpush1.msra.mxu0 %v433
      %820 = vmatprep.subr.mxu0 0.0
      %821 = vmatpush1.msra.mxu0 %v434
      %822 = vmatprep.subr.mxu0 0.0
      %823 = vmatpush1.msra.mxu0 %v435
      %824 = vmatprep.subr.mxu0 0.0
      %825 = vmatpush1.msra.mxu0 %v436
      %826 = vmatprep.subr.mxu0 0.0
      %827 = vmatpush1.msra.mxu0 %v437
      %828 = vmatprep.subr.mxu0 0.0
      %829 = vmatpush1.msra.mxu0 %v438
      %830 = vmatprep.subr.mxu0 0.0
      %831 = vmatpush1.msra.mxu0 %v439
      %832 = vmatprep.subr.mxu0 0.0
      %833 = vmatpush1.msra.mxu0 %v440
      %834 = vmatprep.subr.mxu0 0.0
      %835 = vmatpush1.msra.mxu0 %v441
      %836 = vmatprep.subr.mxu0 0.0
      %837 = vmatpush1.msra.mxu0 %v442
      %838 = vmatprep.subr.mxu0 0.0
      %839 = vmatpush1.msra.mxu0 %v443
      %840 = vmatprep.subr.mxu0 0.0
      %841 = vmatpush1.msra.mxu0 %v444
      %842 = vmatprep.subr.mxu0 0.0
      %843 = vmatpush1.msra.mxu0 %v445
      %844 = vmatprep.subr.mxu0 0.0
      %845 = vmatpush1.msra.mxu0 %v446
      %846 = vmatprep.subr.mxu0 0.0
      %847 = vmatpush1.msra.mxu0 %v447
      %848 = vmatprep.subr.mxu0 0.0
      %849 = vmatpush1.msra.mxu0 %v448
      %850 = vmatprep.subr.mxu0 0.0
      %851 = vmatpush1.msra.mxu0 %v449
      %852 = vmatprep.subr.mxu0 0.0
      %853 = vmatpush1.msra.mxu0 %v450
      %854 = vmatprep.subr.mxu0 0.0
      %855 = vmatpush1.msra.mxu0 %v451
      %856 = vmatprep.subr.mxu0 0.0
      %857 = vmatpush1.msra.mxu0 %v452
      %858 = vmatprep.subr.mxu0 0.0
      %859 = vmatpush1.msra.mxu0 %v453
      %860 = vmatprep.subr.mxu0 0.0
      %861 = vmatpush1.msra.mxu0 %v454
      %862 = vmatprep.subr.mxu0 0.0
      %863 = vmatpush1.msra.mxu0 %v455
      %864 = vmatprep.subr.mxu0 0.0
      %865 = vmatpush1.msra.mxu0 %v456
      %866 = vmatprep.subr.mxu0 0.0
      %867 = vmatpush1.msra.mxu0 %v457
      %868 = vmatprep.subr.mxu0 0.0
      %869 = vmatpush1.msra.mxu0 %v458
      %870 = vmatprep.subr.mxu0 0.0
      %871 = vmatpush1.msra.mxu0 %v459
      %872 = vmatprep.subr.mxu0 0.0
      %873 = vmatpush1.msra.mxu0 %v460
      %874 = vmatprep.subr.mxu0 0.0
      %875 = vmatpush1.msra.mxu0 %v461
      %876 = vmatprep.subr.mxu0 0.0
      %877 = vmatpush1.msra.mxu0 %v462
      %878 = vmatprep.subr.mxu0 0.0
      %879 = vmatpush1.msra.mxu0 %v463
      %880 = vmatprep.subr.mxu0 0.0
      %881 = vmatpush1.msra.mxu0 %v464
      %882 = vmatprep.mubr.f32.mxu0 %v180
      %883 = vmatmul.mubr.f32.gmra.mrb[0].mxu0 %v179
      %v884 = vpop.f32.mrb[0].mxu0
      %v885 = vadd.f32 %v740, %v884
      %v886 = vpop.f32.mrb[0].mxu0
      %887 = vmatprep.mubr.f32.mxu0 %v194
      %888 = vmatmul.mubr.f32.gmra.mrb[0].mxu0 %v193
      %v889 = vpop.f32.mrb[0].mxu0
      %v890 = vadd.f32 %v745, %v889
      %v891 = vpop.f32.mrb[0].mxu0
      %892 = vmatprep.mubr.f32.mxu0 %v208
      %893 = vmatmul.mubr.f32.gmra.mrb[0].mxu0 %v207
      %v894 = vpop.f32.mrb[0].mxu0
      %v895 = vadd.f32 %v750, %v894
      %v896 = vpop.f32.mrb[0].mxu0
      %897 = vmatprep.mubr.f32.mxu0 %v222
      %898 = vmatmul.mubr.f32.gmra.mrb[0].mxu0 %v221
      %v899 = vpop.f32.mrb[0].mxu0
      %v900 = vadd.f32 %v755, %v899
      %v901 = vpop.f32.mrb[0].mxu0
      %902 = vmatprep.mubr.f32.mxu0 %v236
      %903 = vmatmul.mubr.f32.gmra.mrb[0].mxu0 %v235
      %v904 = vpop.f32.mrb[0].mxu0
      %v905 = vadd.f32 %v760, %v904
      %v906 = vpop.f32.mrb[0].mxu0
      %907 = vmatprep.mubr.f32.mxu0 %v250
      %908 = vmatmul.mubr.f32.gmra.mrb[0].mxu0 %v249
      %v909 = vpop.f32.mrb[0].mxu0
      %v910 = vadd.f32 %v765, %v909
      %v911 = vpop.f32.mrb[0].mxu0
      %912 = vmatprep.mubr.f32.mxu0 %v264
      %913 = vmatmul.mubr.f32.gmra.mrb[0].mxu0 %v263
      %v914 = vpop.f32.mrb[0].mxu0
      %v915 = vadd.f32 %v770, %v914
      %v916 = vpop.f32.mrb[0].mxu0
      %917 = vmatprep.mubr.f32.mxu0 %v278
      %918 = vmatmul.mubr.f32.gmra.mrb[0].mxu0 %v277
      %v919 = vpop.f32.mrb[0].mxu0
      %v920 = vadd.f32 %v775, %v919
      %v921 = vpop.f32.mrb[0].mxu0
      %922 = vmatprep.mubr.f32.mxu0 %v292
      %923 = vmatmul.mubr.f32.gmra.mrb[0].mxu0 %v291
      %v924 = vpop.f32.mrb[0].mxu0
      %v925 = vadd.f32 %v780, %v924
      %v926 = vpop.f32.mrb[0].mxu0
      %927 = vmatprep.mubr.f32.mxu0 %v306
      %928 = vmatmul.mubr.f32.gmra.mrb[0].mxu0 %v305
      %v929 = vpop.f32.mrb[0].mxu0
      %v930 = vadd.f32 %v785, %v929
      %v931 = vpop.f32.mrb[0].mxu0
      %932 = vmatprep.mubr.f32.mxu0 %v320
      %933 = vmatmul.mubr.f32.gmra.mrb[0].mxu0 %v319
      %v934 = vpop.f32.mrb[0].mxu0
      %v935 = vadd.f32 %v790, %v934
      %v936 = vpop.f32.mrb[0].mxu0
      %937 = vmatprep.mubr.f32.mxu0 %v334
      %938 = vmatmul.mubr.f32.gmra.mrb[0].mxu0 %v333
      %v939 = vpop.f32.mrb[0].mxu0
      %v940 = vadd.f32 %v795, %v939
      %v941 = vpop.f32.mrb[0].mxu0
      %942 = vmatprep.mubr.f32.mxu0 %v348
      %943 = vmatmul.mubr.f32.gmra.mrb[0].mxu0 %v347
      %v944 = vpop.f32.mrb[0].mxu0
      %v945 = vadd.f32 %v800, %v944
      %v946 = vpop.f32.mrb[0].mxu0
      %947 = vmatprep.mubr.f32.mxu0 %v362
      %948 = vmatmul.mubr.f32.gmra.mrb[0].mxu0 %v361
      %v949 = vpop.f32.mrb[0].mxu0
      %v950 = vadd.f32 %v805, %v949
      %v951 = vpop.f32.mrb[0].mxu0
      %952 = vmatprep.mubr.f32.mxu0 %v376
      %953 = vmatmul.mubr.f32.gmra.mrb[0].mxu0 %v375
      %v954 = vpop.f32.mrb[0].mxu0
      %v955 = vadd.f32 %v810, %v954
      %v956 = vpop.f32.mrb[0].mxu0
      %957 = vmatprep.mubr.f32.mxu0 %v390
      %958 = vmatmul.mubr.f32.gmra.mrb[0].mxu0 %v389
      %v959 = vpop.f32.mrb[0].mxu0
      %v960 = vadd.f32 %v815, %v959
      %v961 = vpop.f32.mrb[0].mxu0
      %962 = vdwg.mxu0
      %963 = vmatprep.subr.mxu0 0.0
      %964 = vmatpush1.msra.mxu0 %v465
      %965 = vmatprep.subr.mxu0 0.0
      %966 = vmatpush1.msra.mxu0 %v466
      %967 = vmatprep.subr.mxu0 0.0
      %968 = vmatpush1.msra.mxu0 %v467
      %969 = vmatprep.subr.mxu0 0.0
      %970 = vmatpush1.msra.mxu0 %v468
      %971 = vmatprep.subr.mxu0 0.0
      %972 = vmatpush1.msra.mxu0 %v469
      %973 = vmatprep.subr.mxu0 0.0
      %974 = vmatpush1.msra.mxu0 %v470
      %975 = vmatprep.subr.mxu0 0.0
      %976 = vmatpush1.msra.mxu0 %v471
      %977 = vmatprep.subr.mxu0 0.0
      %978 = vmatpush1.msra.mxu0 %v472
      %979 = vmatprep.subr.mxu0 0.0
      %980 = vmatpush1.msra.mxu0 %v473
      %981 = vmatprep.subr.mxu0 0.0
      %982 = vmatpush1.msra.mxu0 %v474
      %983 = vmatprep.subr.mxu0 0.0
      %984 = vmatpush1.msra.mxu0 %v475
      %985 = vmatprep.subr.mxu0 0.0
      %986 = vmatpush1.msra.mxu0 %v476
      %987 = vmatprep.subr.mxu0 0.0
      %988 = vmatpush1.msra.mxu0 %v477
      %989 = vmatprep.subr.mxu0 0.0
      %990 = vmatpush1.msra.mxu0 %v478
      %991 = vmatprep.subr.mxu0 0.0
      %992 = vmatpush1.msra.mxu0 %v479
      %993 = vmatprep.subr.mxu0 0.0
      %994 = vmatpush1.msra.mxu0 %v480
      %995 = vmatprep.subr.mxu0 0.0
      %996 = vmatpush1.msra.mxu0 %v481
      %997 = vmatprep.subr.mxu0 0.0
      %998 = vmatpush1.msra.mxu0 %v482
      %999 = vmatprep.subr.mxu0 0.0
      %1000 = vmatpush1.msra.mxu0 %v483
      %1001 = vmatprep.subr.mxu0 0.0
      %1002 = vmatpush1.msra.mxu0 %v484
      %1003 = vmatprep.subr.mxu0 0.0
      %1004 = vmatpush1.msra.mxu0 %v485
      %1005 = vmatprep.subr.mxu0 0.0
      %1006 = vmatpush1.msra.mxu0 %v486
      %1007 = vmatprep.subr.mxu0 0.0
      %1008 = vmatpush1.msra.mxu0 %v487
      %1009 = vmatprep.subr.mxu0 0.0
      %1010 = vmatpush1.msra.mxu0 %v488
      %1011 = vmatprep.subr.mxu0 0.0
      %1012 = vmatpush1.msra.mxu0 %v489
      %1013 = vmatprep.subr.mxu0 0.0
      %1014 = vmatpush1.msra.mxu0 %v490
      %1015 = vmatprep.subr.mxu0 0.0
      %1016 = vmatpush1.msra.mxu0 %v491
      %1017 = vmatprep.subr.mxu0 0.0
      %1018 = vmatpush1.msra.mxu0 %v492
      %1019 = vmatprep.subr.mxu0 0.0
      %1020 = vmatpush1.msra.mxu0 %v493
      %1021 = vmatprep.subr.mxu0 0.0
      %1022 = vmatpush1.msra.mxu0 %v494
      %1023 = vmatprep.subr.mxu0 0.0
      %1024 = vmatpush1.msra.mxu0 %v495
      %1025 = vmatprep.subr.mxu0 0.0
      %1026 = vmatpush1.msra.mxu0 %v496
      %1027 = vmatprep.mubr.f32.mxu0 %v182
      %1028 = vmatmul.mubr.f32.gmra.mrb[0].mxu0 %v181
      %v1029 = vpop.f32.mrb[0].mxu0
      %v1030 = vadd.f32 %v885, %v1029
      %v1031 = vpop.f32.mrb[0].mxu0
      %1032 = vmatprep.mubr.f32.mxu0 %v196
      %1033 = vmatmul.mubr.f32.gmra.mrb[0].mxu0 %v195
      %v1034 = vpop.f32.mrb[0].mxu0
      %v1035 = vadd.f32 %v890, %v1034
      %v1036 = vpop.f32.mrb[0].mxu0
      %1037 = vmatprep.mubr.f32.mxu0 %v210
      %1038 = vmatmul.mubr.f32.gmra.mrb[0].mxu0 %v209
      %v1039 = vpop.f32.mrb[0].mxu0
      %v1040 = vadd.f32 %v895, %v1039
      %v1041 = vpop.f32.mrb[0].mxu0
      %1042 = vmatprep.mubr.f32.mxu0 %v224
      %1043 = vmatmul.mubr.f32.gmra.mrb[0].mxu0 %v223
      %v1044 = vpop.f32.mrb[0].mxu0
      %v1045 = vadd.f32 %v900, %v1044
      %v1046 = vpop.f32.mrb[0].mxu0
      %1047 = vmatprep.mubr.f32.mxu0 %v238
      %1048 = vmatmul.mubr.f32.gmra.mrb[0].mxu0 %v237
      %v1049 = vpop.f32.mrb[0].mxu0
      %v1050 = vadd.f32 %v905, %v1049
      %v1051 = vpop.f32.mrb[0].mxu0
      %1052 = vmatprep.mubr.f32.mxu0 %v252
      %1053 = vmatmul.mubr.f32.gmra.mrb[0].mxu0 %v251
      %v1054 = vpop.f32.mrb[0].mxu0
      %v1055 = vadd.f32 %v910, %v1054
      %v1056 = vpop.f32.mrb[0].mxu0
      %1057 = vmatprep.mubr.f32.mxu0 %v266
      %1058 = vmatmul.mubr.f32.gmra.mrb[0].mxu0 %v265
      %v1059 = vpop.f32.mrb[0].mxu0
      %v1060 = vadd.f32 %v915, %v1059
      %v1061 = vpop.f32.mrb[0].mxu0
      %1062 = vmatprep.mubr.f32.mxu0 %v280
      %1063 = vmatmul.mubr.f32.gmra.mrb[0].mxu0 %v279
      %v1064 = vpop.f32.mrb[0].mxu0
      %v1065 = vadd.f32 %v920, %v1064
      %v1066 = vpop.f32.mrb[0].mxu0
      %1067 = vmatprep.mubr.f32.mxu0 %v294
      %1068 = vmatmul.mubr.f32.gmra.mrb[0].mxu0 %v293
      %v1069 = vpop.f32.mrb[0].mxu0
      %v1070 = vadd.f32 %v925, %v1069
      %v1071 = vpop.f32.mrb[0].mxu0
      %1072 = vmatprep.mubr.f32.mxu0 %v308
      %1073 = vmatmul.mubr.f32.gmra.mrb[0].mxu0 %v307
      %v1074 = vpop.f32.mrb[0].mxu0
      %v1075 = vadd.f32 %v930, %v1074
      %v1076 = vpop.f32.mrb[0].mxu0
      %1077 = vmatprep.mubr.f32.mxu0 %v322
      %1078 = vmatmul.mubr.f32.gmra.mrb[0].mxu0 %v321
      %v1079 = vpop.f32.mrb[0].mxu0
      %v1080 = vadd.f32 %v935, %v1079
      %v1081 = vpop.f32.mrb[0].mxu0
      %1082 = vmatprep.mubr.f32.mxu0 %v336
      %1083 = vmatmul.mubr.f32.gmra.mrb[0].mxu0 %v335
      %v1084 = vpop.f32.mrb[0].mxu0
      %v1085 = vadd.f32 %v940, %v1084
      %v1086 = vpop.f32.mrb[0].mxu0
      %1087 = vmatprep.mubr.f32.mxu0 %v350
      %1088 = vmatmul.mubr.f32.gmra.mrb[0].mxu0 %v349
      %v1089 = vpop.f32.mrb[0].mxu0
      %v1090 = vadd.f32 %v945, %v1089
      %v1091 = vpop.f32.mrb[0].mxu0
      %1092 = vmatprep.mubr.f32.mxu0 %v364
      %1093 = vmatmul.mubr.f32.gmra.mrb[0].mxu0 %v363
      %v1094 = vpop.f32.mrb[0].mxu0
      %v1095 = vadd.f32 %v950, %v1094
      %v1096 = vpop.f32.mrb[0].mxu0
      %1097 = vmatprep.mubr.f32.mxu0 %v378
      %1098 = vmatmul.mubr.f32.gmra.mrb[0].mxu0 %v377
      %v1099 = vpop.f32.mrb[0].mxu0
      %v1100 = vadd.f32 %v955, %v1099
      %v1101 = vpop.f32.mrb[0].mxu0
      %1102 = vmatprep.mubr.f32.mxu0 %v392
      %1103 = vmatmul.mubr.f32.gmra.mrb[0].mxu0 %v391
      %v1104 = vpop.f32.mrb[0].mxu0
      %v1105 = vadd.f32 %v960, %v1104
      %v1106 = vpop.f32.mrb[0].mxu0
      %1107 = vdwg.mxu0
      %1108 = vmatprep.subr.mxu0 0.0
      %1109 = vmatpush1.msra.mxu0 %v497
      %1110 = vmatprep.subr.mxu0 0.0
      %1111 = vmatpush1.msra.mxu0 %v498
      %1112 = vmatprep.subr.mxu0 0.0
      %1113 = vmatpush1.msra.mxu0 %v499
      %1114 = vmatprep.subr.mxu0 0.0
      %1115 = vmatpush1.msra.mxu0 %v500
      %1116 = vmatprep.subr.mxu0 0.0
      %1117 = vmatpush1.msra.mxu0 %v501
      %1118 = vmatprep.subr.mxu0 0.0
      %1119 = vmatpush1.msra.mxu0 %v502
      %1120 = vmatprep.subr.mxu0 0.0
      %1121 = vmatpush1.msra.mxu0 %v503
      %1122 = vmatprep.subr.mxu0 0.0
      %1123 = vmatpush1.msra.mxu0 %v504
      %1124 = vmatprep.subr.mxu0 0.0
      %1125 = vmatpush1.msra.mxu0 %v505
      %1126 = vmatprep.subr.mxu0 0.0
      %1127 = vmatpush1.msra.mxu0 %v506
      %1128 = vmatprep.subr.mxu0 0.0
      %1129 = vmatpush1.msra.mxu0 %v507
      %1130 = vmatprep.subr.mxu0 0.0
      %1131 = vmatpush1.msra.mxu0 %v508
      %1132 = vmatprep.subr.mxu0 0.0
      %1133 = vmatpush1.msra.mxu0 %v509
      %1134 = vmatprep.subr.mxu0 0.0
      %1135 = vmatpush1.msra.mxu0 %v510
      %1136 = vmatprep.subr.mxu0 0.0
      %1137 = vmatpush1.msra.mxu0 %v511
      %1138 = vmatprep.subr.mxu0 0.0
      %1139 = vmatpush1.msra.mxu0 %v512
      %1140 = vmatprep.subr.mxu0 0.0
      %1141 = vmatpush1.msra.mxu0 %v513
      %1142 = vmatprep.subr.mxu0 0.0
      %1143 = vmatpush1.msra.mxu0 %v514
      %1144 = vmatprep.subr.mxu0 0.0
      %1145 = vmatpush1.msra.mxu0 %v515
      %1146 = vmatprep.subr.mxu0 0.0
      %1147 = vmatpush1.msra.mxu0 %v516
      %1148 = vmatprep.subr.mxu0 0.0
      %1149 = vmatpush1.msra.mxu0 %v517
      %1150 = vmatprep.subr.mxu0 0.0
      %1151 = vmatpush1.msra.mxu0 %v518
      %1152 = vmatprep.subr.mxu0 0.0
      %1153 = vmatpush1.msra.mxu0 %v519
      %1154 = vmatprep.subr.mxu0 0.0
      %1155 = vmatpush1.msra.mxu0 %v520
      %1156 = vmatprep.subr.mxu0 0.0
      %1157 = vmatpush1.msra.mxu0 %v521
      %1158 = vmatprep.subr.mxu0 0.0
      %1159 = vmatpush1.msra.mxu0 %v522
      %1160 = vmatprep.subr.mxu0 0.0
      %1161 = vmatpush1.msra.mxu0 %v523
      %1162 = vmatprep.subr.mxu0 0.0
      %1163 = vmatpush1.msra.mxu0 %v524
      %1164 = vmatprep.subr.mxu0 0.0
      %1165 = vmatpush1.msra.mxu0 %v525
      %1166 = vmatprep.subr.mxu0 0.0
      %1167 = vmatpush1.msra.mxu0 %v526
      %1168 = vmatprep.subr.mxu0 0.0
      %1169 = vmatpush1.msra.mxu0 %v527
      %1170 = vmatprep.subr.mxu0 0.0
      %1171 = vmatpush1.msra.mxu0 %v528
      %1172 = vmatprep.mubr.f32.mxu0 %v184
      %1173 = vmatmul.mubr.f32.gmra.mrb[0].mxu0 %v183
      %v1174 = vpop.f32.mrb[0].mxu0
      %v1175 = vadd.f32 %v1030, %v1174
      %v1176 = vpop.f32.mrb[0].mxu0
      %1177 = vmatprep.mubr.f32.mxu0 %v198
      %1178 = vmatmul.mubr.f32.gmra.mrb[0].mxu0 %v197
      %v1179 = vpop.f32.mrb[0].mxu0
      %v1180 = vadd.f32 %v1035, %v1179
      %v1181 = vpop.f32.mrb[0].mxu0
      %1182 = vmatprep.mubr.f32.mxu0 %v212
      %1183 = vmatmul.mubr.f32.gmra.mrb[0].mxu0 %v211
      %v1184 = vpop.f32.mrb[0].mxu0
      %v1185 = vadd.f32 %v1040, %v1184
      %v1186 = vpop.f32.mrb[0].mxu0
      %1187 = vmatprep.mubr.f32.mxu0 %v226
      %1188 = vmatmul.mubr.f32.gmra.mrb[0].mxu0 %v225
      %v1189 = vpop.f32.mrb[0].mxu0
      %v1190 = vadd.f32 %v1045, %v1189
      %v1191 = vpop.f32.mrb[0].mxu0
      %1192 = vmatprep.mubr.f32.mxu0 %v240
      %1193 = vmatmul.mubr.f32.gmra.mrb[0].mxu0 %v239
      %v1194 = vpop.f32.mrb[0].mxu0
      %v1195 = vadd.f32 %v1050, %v1194
      %v1196 = vpop.f32.mrb[0].mxu0
      %1197 = vmatprep.mubr.f32.mxu0 %v254
      %1198 = vmatmul.mubr.f32.gmra.mrb[0].mxu0 %v253
      %v1199 = vpop.f32.mrb[0].mxu0
      %v1200 = vadd.f32 %v1055, %v1199
      %v1201 = vpop.f32.mrb[0].mxu0
      %1202 = vmatprep.mubr.f32.mxu0 %v268
      %1203 = vmatmul.mubr.f32.gmra.mrb[0].mxu0 %v267
      %v1204 = vpop.f32.mrb[0].mxu0
      %v1205 = vadd.f32 %v1060, %v1204
      %v1206 = vpop.f32.mrb[0].mxu0
      %1207 = vmatprep.mubr.f32.mxu0 %v282
      %1208 = vmatmul.mubr.f32.gmra.mrb[0].mxu0 %v281
      %v1209 = vpop.f32.mrb[0].mxu0
      %v1210 = vadd.f32 %v1065, %v1209
      %v1211 = vpop.f32.mrb[0].mxu0
      %1212 = vmatprep.mubr.f32.mxu0 %v296
      %1213 = vmatmul.mubr.f32.gmra.mrb[0].mxu0 %v295
      %v1214 = vpop.f32.mrb[0].mxu0
      %v1215 = vadd.f32 %v1070, %v1214
      %v1216 = vpop.f32.mrb[0].mxu0
      %1217 = vmatprep.mubr.f32.mxu0 %v310
      %1218 = vmatmul.mubr.f32.gmra.mrb[0].mxu0 %v309
      %v1219 = vpop.f32.mrb[0].mxu0
      %v1220 = vadd.f32 %v1075, %v1219
      %v1221 = vpop.f32.mrb[0].mxu0
      %1222 = vmatprep.mubr.f32.mxu0 %v324
      %1223 = vmatmul.mubr.f32.gmra.mrb[0].mxu0 %v323
      %v1224 = vpop.f32.mrb[0].mxu0
      %v1225 = vadd.f32 %v1080, %v1224
      %v1226 = vpop.f32.mrb[0].mxu0
      %1227 = vmatprep.mubr.f32.mxu0 %v338
      %1228 = vmatmul.mubr.f32.gmra.mrb[0].mxu0 %v337
      %v1229 = vpop.f32.mrb[0].mxu0
      %v1230 = vadd.f32 %v1085, %v1229
      %v1231 = vpop.f32.mrb[0].mxu0
      %1232 = vmatprep.mubr.f32.mxu0 %v352
      %1233 = vmatmul.mubr.f32.gmra.mrb[0].mxu0 %v351
      %v1234 = vpop.f32.mrb[0].mxu0
      %v1235 = vadd.f32 %v1090, %v1234
      %v1236 = vpop.f32.mrb[0].mxu0
      %1237 = vmatprep.mubr.f32.mxu0 %v366
      %1238 = vmatmul.mubr.f32.gmra.mrb[0].mxu0 %v365
      %v1239 = vpop.f32.mrb[0].mxu0
      %v1240 = vadd.f32 %v1095, %v1239
      %v1241 = vpop.f32.mrb[0].mxu0
      %1242 = vmatprep.mubr.f32.mxu0 %v380
      %1243 = vmatmul.mubr.f32.gmra.mrb[0].mxu0 %v379
      %v1244 = vpop.f32.mrb[0].mxu0
      %v1245 = vadd.f32 %v1100, %v1244
      %v1246 = vpop.f32.mrb[0].mxu0
      %1247 = vmatprep.mubr.f32.mxu0 %v394
      %1248 = vmatmul.mubr.f32.gmra.mrb[0].mxu0 %v393
      %v1249 = vpop.f32.mrb[0].mxu0
      %v1250 = vadd.f32 %v1105, %v1249
      %v1251 = vpop.f32.mrb[0].mxu0
      %1252 = vdwg.mxu0
      %1253 = vmatprep.subr.mxu0 0.0
      %1254 = vmatpush1.msra.mxu0 %v529
      %1255 = vmatprep.subr.mxu0 0.0
      %1256 = vmatpush1.msra.mxu0 %v530
      %1257 = vmatprep.subr.mxu0 0.0
      %1258 = vmatpush1.msra.mxu0 %v531
      %1259 = vmatprep.subr.mxu0 0.0
      %1260 = vmatpush1.msra.mxu0 %v532
      %1261 = vmatprep.subr.mxu0 0.0
      %1262 = vmatpush1.msra.mxu0 %v533
      %1263 = vmatprep.subr.mxu0 0.0
      %1264 = vmatpush1.msra.mxu0 %v534
      %1265 = vmatprep.subr.mxu0 0.0
      %1266 = vmatpush1.msra.mxu0 %v535
      %1267 = vmatprep.subr.mxu0 0.0
      %1268 = vmatpush1.msra.mxu0 %v536
      %1269 = vmatprep.subr.mxu0 0.0
      %1270 = vmatpush1.msra.mxu0 %v537
      %1271 = vmatprep.subr.mxu0 0.0
      %1272 = vmatpush1.msra.mxu0 %v538
      %1273 = vmatprep.subr.mxu0 0.0
      %1274 = vmatpush1.msra.mxu0 %v539
      %1275 = vmatprep.subr.mxu0 0.0
      %1276 = vmatpush1.msra.mxu0 %v540
      %1277 = vmatprep.subr.mxu0 0.0
      %1278 = vmatpush1.msra.mxu0 %v541
      %1279 = vmatprep.subr.mxu0 0.0
      %1280 = vmatpush1.msra.mxu0 %v542
      %1281 = vmatprep.subr.mxu0 0.0
      %1282 = vmatpush1.msra.mxu0 %v543
      %1283 = vmatprep.subr.mxu0 0.0
      %1284 = vmatpush1.msra.mxu0 %v544
      %1285 = vmatprep.subr.mxu0 0.0
      %1286 = vmatpush1.msra.mxu0 %v545
      %1287 = vmatprep.subr.mxu0 0.0
      %1288 = vmatpush1.msra.mxu0 %v546
      %1289 = vmatprep.subr.mxu0 0.0
      %1290 = vmatpush1.msra.mxu0 %v547
      %1291 = vmatprep.subr.mxu0 0.0
      %1292 = vmatpush1.msra.mxu0 %v548
      %1293 = vmatprep.subr.mxu0 0.0
      %1294 = vmatpush1.msra.mxu0 %v549
      %1295 = vmatprep.subr.mxu0 0.0
      %1296 = vmatpush1.msra.mxu0 %v550
      %1297 = vmatprep.subr.mxu0 0.0
      %1298 = vmatpush1.msra.mxu0 %v551
      %1299 = vmatprep.subr.mxu0 0.0
      %1300 = vmatpush1.msra.mxu0 %v552
      %1301 = vmatprep.subr.mxu0 0.0
      %1302 = vmatpush1.msra.mxu0 %v553
      %1303 = vmatprep.subr.mxu0 0.0
      %1304 = vmatpush1.msra.mxu0 %v554
      %1305 = vmatprep.subr.mxu0 0.0
      %1306 = vmatpush1.msra.mxu0 %v555
      %1307 = vmatprep.subr.mxu0 0.0
      %1308 = vmatpush1.msra.mxu0 %v556
      %1309 = vmatprep.subr.mxu0 0.0
      %1310 = vmatpush1.msra.mxu0 %v557
      %1311 = vmatprep.subr.mxu0 0.0
      %1312 = vmatpush1.msra.mxu0 %v558
      %1313 = vmatprep.subr.mxu0 0.0
      %1314 = vmatpush1.msra.mxu0 %v559
      %1315 = vmatprep.subr.mxu0 0.0
      %1316 = vmatpush1.msra.mxu0 %v560
      %1317 = vmatprep.mubr.f32.mxu0 %v186
      %1318 = vmatmul.mubr.f32.gmra.mrb[0].mxu0 %v185
      %v1319 = vpop.f32.mrb[0].mxu0
      %v1320 = vadd.f32 %v1175, %v1319
      %v1321 = vpop.f32.mrb[0].mxu0
      %1322 = vmatprep.mubr.f32.mxu0 %v200
      %1323 = vmatmul.mubr.f32.gmra.mrb[0].mxu0 %v199
      %v1324 = vpop.f32.mrb[0].mxu0
      %v1325 = vadd.f32 %v1180, %v1324
      %v1326 = vpop.f32.mrb[0].mxu0
      %1327 = vmatprep.mubr.f32.mxu0 %v214
      %1328 = vmatmul.mubr.f32.gmra.mrb[0].mxu0 %v213
      %v1329 = vpop.f32.mrb[0].mxu0
      %v1330 = vadd.f32 %v1185, %v1329
      %v1331 = vpop.f32.mrb[0].mxu0
      %1332 = vmatprep.mubr.f32.mxu0 %v228
      %1333 = vmatmul.mubr.f32.gmra.mrb[0].mxu0 %v227
      %v1334 = vpop.f32.mrb[0].mxu0
      %v1335 = vadd.f32 %v1190, %v1334
      %v1336 = vpop.f32.mrb[0].mxu0
      %1337 = vmatprep.mubr.f32.mxu0 %v242
      %1338 = vmatmul.mubr.f32.gmra.mrb[0].mxu0 %v241
      %v1339 = vpop.f32.mrb[0].mxu0
      %v1340 = vadd.f32 %v1195, %v1339
      %v1341 = vpop.f32.mrb[0].mxu0
      %1342 = vmatprep.mubr.f32.mxu0 %v256
      %1343 = vmatmul.mubr.f32.gmra.mrb[0].mxu0 %v255
      %v1344 = vpop.f32.mrb[0].mxu0
      %v1345 = vadd.f32 %v1200, %v1344
      %v1346 = vpop.f32.mrb[0].mxu0
      %1347 = vmatprep.mubr.f32.mxu0 %v270
      %1348 = vmatmul.mubr.f32.gmra.mrb[0].mxu0 %v269
      %v1349 = vpop.f32.mrb[0].mxu0
      %v1350 = vadd.f32 %v1205, %v1349
      %v1351 = vpop.f32.mrb[0].mxu0
      %1352 = vmatprep.mubr.f32.mxu0 %v284
      %1353 = vmatmul.mubr.f32.gmra.mrb[0].mxu0 %v283
      %v1354 = vpop.f32.mrb[0].mxu0
      %v1355 = vadd.f32 %v1210, %v1354
      %v1356 = vpop.f32.mrb[0].mxu0
      %1357 = vmatprep.mubr.f32.mxu0 %v298
      %1358 = vmatmul.mubr.f32.gmra.mrb[0].mxu0 %v297
      %v1359 = vpop.f32.mrb[0].mxu0
      %v1360 = vadd.f32 %v1215, %v1359
      %v1361 = vpop.f32.mrb[0].mxu0
      %1362 = vmatprep.mubr.f32.mxu0 %v312
      %1363 = vmatmul.mubr.f32.gmra.mrb[0].mxu0 %v311
      %v1364 = vpop.f32.mrb[0].mxu0
      %v1365 = vadd.f32 %v1220, %v1364
      %v1366 = vpop.f32.mrb[0].mxu0
      %1367 = vmatprep.mubr.f32.mxu0 %v326
      %1368 = vmatmul.mubr.f32.gmra.mrb[0].mxu0 %v325
      %v1369 = vpop.f32.mrb[0].mxu0
      %v1370 = vadd.f32 %v1225, %v1369
      %v1371 = vpop.f32.mrb[0].mxu0
      %1372 = vmatprep.mubr.f32.mxu0 %v340
      %1373 = vmatmul.mubr.f32.gmra.mrb[0].mxu0 %v339
      %v1374 = vpop.f32.mrb[0].mxu0
      %v1375 = vadd.f32 %v1230, %v1374
      %v1376 = vpop.f32.mrb[0].mxu0
      %1377 = vmatprep.mubr.f32.mxu0 %v354
      %1378 = vmatmul.mubr.f32.gmra.mrb[0].mxu0 %v353
      %v1379 = vpop.f32.mrb[0].mxu0
      %v1380 = vadd.f32 %v1235, %v1379
      %v1381 = vpop.f32.mrb[0].mxu0
      %1382 = vmatprep.mubr.f32.mxu0 %v368
      %1383 = vmatmul.mubr.f32.gmra.mrb[0].mxu0 %v367
      %v1384 = vpop.f32.mrb[0].mxu0
      %v1385 = vadd.f32 %v1240, %v1384
      %v1386 = vpop.f32.mrb[0].mxu0
      %1387 = vmatprep.mubr.f32.mxu0 %v382
      %1388 = vmatmul.mubr.f32.gmra.mrb[0].mxu0 %v381
      %v1389 = vpop.f32.mrb[0].mxu0
      %v1390 = vadd.f32 %v1245, %v1389
      %v1391 = vpop.f32.mrb[0].mxu0
      %1392 = vmatprep.mubr.f32.mxu0 %v396
      %1393 = vmatmul.mubr.f32.gmra.mrb[0].mxu0 %v395
      %v1394 = vpop.f32.mrb[0].mxu0
      %v1395 = vadd.f32 %v1250, %v1394
      %v1396 = vpop.f32.mrb[0].mxu0
      %1397 = vdwg.mxu0
      %1398 = vmatprep.subr.mxu0 0.0
      %1399 = vmatpush1.msra.mxu0 %v561
      %1400 = vmatprep.subr.mxu0 0.0
      %1401 = vmatpush1.msra.mxu0 %v562
      %1402 = vmatprep.subr.mxu0 0.0
      %1403 = vmatpush1.msra.mxu0 %v563
      %1404 = vmatprep.subr.mxu0 0.0
      %1405 = vmatpush1.msra.mxu0 %v564
      %1406 = vmatprep.subr.mxu0 0.0
      %1407 = vmatpush1.msra.mxu0 %v565
      %1408 = vmatprep.subr.mxu0 0.0
      %1409 = vmatpush1.msra.mxu0 %v566
      %1410 = vmatprep.subr.mxu0 0.0
      %1411 = vmatpush1.msra.mxu0 %v567
      %1412 = vmatprep.subr.mxu0 0.0
      %1413 = vmatpush1.msra.mxu0 %v568
      %1414 = vmatprep.subr.mxu0 0.0
      %1415 = vmatpush1.msra.mxu0 %v569
      %1416 = vmatprep.subr.mxu0 0.0
      %1417 = vmatpush1.msra.mxu0 %v570
      %1418 = vmatprep.subr.mxu0 0.0
      %1419 = vmatpush1.msra.mxu0 %v571
      %1420 = vmatprep.subr.mxu0 0.0
      %1421 = vmatpush1.msra.mxu0 %v572
      %1422 = vmatprep.subr.mxu0 0.0
      %1423 = vmatpush1.msra.mxu0 %v573
      %1424 = vmatprep.subr.mxu0 0.0
      %1425 = vmatpush1.msra.mxu0 %v574
      %1426 = vmatprep.subr.mxu0 0.0
      %1427 = vmatpush1.msra.mxu0 %v575
      %1428 = vmatprep.subr.mxu0 0.0
      %1429 = vmatpush1.msra.mxu0 %v576
      %1430 = vmatprep.subr.mxu0 0.0
      %1431 = vmatpush1.msra.mxu0 %v577
      %1432 = vmatprep.subr.mxu0 0.0
      %1433 = vmatpush1.msra.mxu0 %v578
      %1434 = vmatprep.subr.mxu0 0.0
      %1435 = vmatpush1.msra.mxu0 %v579
      %1436 = vmatprep.subr.mxu0 0.0
      %1437 = vmatpush1.msra.mxu0 %v580
      %1438 = vmatprep.subr.mxu0 0.0
      %1439 = vmatpush1.msra.mxu0 %v581
      %1440 = vmatprep.subr.mxu0 0.0
      %1441 = vmatpush1.msra.mxu0 %v582
      %1442 = vmatprep.subr.mxu0 0.0
      %1443 = vmatpush1.msra.mxu0 %v583
      %1444 = vmatprep.subr.mxu0 0.0
      %1445 = vmatpush1.msra.mxu0 %v584
      %1446 = vmatprep.subr.mxu0 0.0
      %1447 = vmatpush1.msra.mxu0 %v585
      %1448 = vmatprep.subr.mxu0 0.0
      %1449 = vmatpush1.msra.mxu0 %v586
      %1450 = vmatprep.subr.mxu0 0.0
      %1451 = vmatpush1.msra.mxu0 %v587
      %1452 = vmatprep.subr.mxu0 0.0
      %1453 = vmatpush1.msra.mxu0 %v588
      %1454 = vmatprep.subr.mxu0 0.0
      %1455 = vmatpush1.msra.mxu0 %v589
      %1456 = vmatprep.subr.mxu0 0.0
      %1457 = vmatpush1.msra.mxu0 %v590
      %1458 = vmatprep.subr.mxu0 0.0
      %1459 = vmatpush1.msra.mxu0 %v591
      %1460 = vmatprep.subr.mxu0 0.0
      %1461 = vmatpush1.msra.mxu0 %v592
      %1462 = vmatprep.mubr.f32.mxu0 %v188
      %1463 = vmatmul.mubr.f32.gmra.mrb[0].mxu0 %v187
      %v1464 = vpop.f32.mrb[0].mxu0
      %v1465 = vadd.f32 %v1320, %v1464
      %v1466 = vpop.f32.mrb[0].mxu0
      %1467 = vmatprep.mubr.f32.mxu0 %v202
      %1468 = vmatmul.mubr.f32.gmra.mrb[0].mxu0 %v201
      %v1469 = vpop.f32.mrb[0].mxu0
      %v1470 = vadd.f32 %v1325, %v1469
      %v1471 = vpop.f32.mrb[0].mxu0
      %1472 = vmatprep.mubr.f32.mxu0 %v216
      %1473 = vmatmul.mubr.f32.gmra.mrb[0].mxu0 %v215
      %v1474 = vpop.f32.mrb[0].mxu0
      %v1475 = vadd.f32 %v1330, %v1474
      %v1476 = vpop.f32.mrb[0].mxu0
      %1477 = vmatprep.mubr.f32.mxu0 %v230
      %1478 = vmatmul.mubr.f32.gmra.mrb[0].mxu0 %v229
      %v1479 = vpop.f32.mrb[0].mxu0
      %v1480 = vadd.f32 %v1335, %v1479
      %v1481 = vpop.f32.mrb[0].mxu0
      %1482 = vmatprep.mubr.f32.mxu0 %v244
      %1483 = vmatmul.mubr.f32.gmra.mrb[0].mxu0 %v243
      %v1484 = vpop.f32.mrb[0].mxu0
      %v1485 = vadd.f32 %v1340, %v1484
      %v1486 = vpop.f32.mrb[0].mxu0
      %1487 = vmatprep.mubr.f32.mxu0 %v258
      %1488 = vmatmul.mubr.f32.gmra.mrb[0].mxu0 %v257
      %v1489 = vpop.f32.mrb[0].mxu0
      %v1490 = vadd.f32 %v1345, %v1489
      %v1491 = vpop.f32.mrb[0].mxu0
      %1492 = vmatprep.mubr.f32.mxu0 %v272
      %1493 = vmatmul.mubr.f32.gmra.mrb[0].mxu0 %v271
      %v1494 = vpop.f32.mrb[0].mxu0
      %v1495 = vadd.f32 %v1350, %v1494
      %v1496 = vpop.f32.mrb[0].mxu0
      %1497 = vmatprep.mubr.f32.mxu0 %v286
      %1498 = vmatmul.mubr.f32.gmra.mrb[0].mxu0 %v285
      %v1499 = vpop.f32.mrb[0].mxu0
      %v1500 = vadd.f32 %v1355, %v1499
      %v1501 = vpop.f32.mrb[0].mxu0
      %1502 = vmatprep.mubr.f32.mxu0 %v300
      %1503 = vmatmul.mubr.f32.gmra.mrb[0].mxu0 %v299
      %v1504 = vpop.f32.mrb[0].mxu0
      %v1505 = vadd.f32 %v1360, %v1504
      %v1506 = vpop.f32.mrb[0].mxu0
      %1507 = vmatprep.mubr.f32.mxu0 %v314
      %1508 = vmatmul.mubr.f32.gmra.mrb[0].mxu0 %v313
      %v1509 = vpop.f32.mrb[0].mxu0
      %v1510 = vadd.f32 %v1365, %v1509
      %v1511 = vpop.f32.mrb[0].mxu0
      %1512 = vmatprep.mubr.f32.mxu0 %v328
      %1513 = vmatmul.mubr.f32.gmra.mrb[0].mxu0 %v327
      %v1514 = vpop.f32.mrb[0].mxu0
      %v1515 = vadd.f32 %v1370, %v1514
      %v1516 = vpop.f32.mrb[0].mxu0
      %1517 = vmatprep.mubr.f32.mxu0 %v342
      %1518 = vmatmul.mubr.f32.gmra.mrb[0].mxu0 %v341
      %v1519 = vpop.f32.mrb[0].mxu0
      %v1520 = vadd.f32 %v1375, %v1519
      %v1521 = vpop.f32.mrb[0].mxu0
      %1522 = vmatprep.mubr.f32.mxu0 %v356
      %1523 = vmatmul.mubr.f32.gmra.mrb[0].mxu0 %v355
      %v1524 = vpop.f32.mrb[0].mxu0
      %v1525 = vadd.f32 %v1380, %v1524
      %v1526 = vpop.f32.mrb[0].mxu0
      %1527 = vmatprep.mubr.f32.mxu0 %v370
      %1528 = vmatmul.mubr.f32.gmra.mrb[0].mxu0 %v369
      %v1529 = vpop.f32.mrb[0].mxu0
      %v1530 = vadd.f32 %v1385, %v1529
      %v1531 = vpop.f32.mrb[0].mxu0
      %1532 = vmatprep.mubr.f32.mxu0 %v384
      %1533 = vmatmul.mubr.f32.gmra.mrb[0].mxu0 %v383
      %v1534 = vpop.f32.mrb[0].mxu0
      %v1535 = vadd.f32 %v1390, %v1534
      %v1536 = vpop.f32.mrb[0].mxu0
      %1537 = vmatprep.mubr.f32.mxu0 %v398
      %1538 = vmatmul.mubr.f32.gmra.mrb[0].mxu0 %v397
      %v1539 = vpop.f32.mrb[0].mxu0
      %v1540 = vadd.f32 %v1395, %v1539
      %v1541 = vpop.f32.mrb[0].mxu0
      %1542 = vdwg.mxu0
      %1543 = vmatprep.subr.mxu0 0.0
      %1544 = vmatpush1.msra.mxu0 %v593
      %1545 = vmatprep.subr.mxu0 0.0
      %1546 = vmatpush1.msra.mxu0 %v594
      %1547 = vmatprep.subr.mxu0 0.0
      %1548 = vmatpush1.msra.mxu0 %v595
      %1549 = vmatprep.subr.mxu0 0.0
      %1550 = vmatpush1.msra.mxu0 %v596
      %1551 = vmatprep.subr.mxu0 0.0
      %1552 = vmatpush1.msra.mxu0 %v597
      %1553 = vmatprep.subr.mxu0 0.0
      %1554 = vmatpush1.msra.mxu0 %v598
      %1555 = vmatprep.subr.mxu0 0.0
      %1556 = vmatpush1.msra.mxu0 %v599
      %1557 = vmatprep.subr.mxu0 0.0
      %1558 = vmatpush1.msra.mxu0 %v600
      %1559 = vmatprep.subr.mxu0 0.0
      %1560 = vmatpush1.msra.mxu0 %v601
      %1561 = vmatprep.subr.mxu0 0.0
      %1562 = vmatpush1.msra.mxu0 %v602
      %1563 = vmatprep.subr.mxu0 0.0
      %1564 = vmatpush1.msra.mxu0 %v603
      %1565 = vmatprep.subr.mxu0 0.0
      %1566 = vmatpush1.msra.mxu0 %v604
      %1567 = vmatprep.subr.mxu0 0.0
      %1568 = vmatpush1.msra.mxu0 %v605
      %1569 = vmatprep.subr.mxu0 0.0
      %1570 = vmatpush1.msra.mxu0 %v606
      %1571 = vmatprep.subr.mxu0 0.0
      %1572 = vmatpush1.msra.mxu0 %v607
      %1573 = vmatprep.subr.mxu0 0.0
      %1574 = vmatpush1.msra.mxu0 %v608
      %1575 = vmatprep.subr.mxu0 0.0
      %1576 = vmatpush1.msra.mxu0 %v609
      %1577 = vmatprep.subr.mxu0 0.0
      %1578 = vmatpush1.msra.mxu0 %v610
      %1579 = vmatprep.subr.mxu0 0.0
      %1580 = vmatpush1.msra.mxu0 %v611
      %1581 = vmatprep.subr.mxu0 0.0
      %1582 = vmatpush1.msra.mxu0 %v612
      %1583 = vmatprep.subr.mxu0 0.0
      %1584 = vmatpush1.msra.mxu0 %v613
      %1585 = vmatprep.subr.mxu0 0.0
      %1586 = vmatpush1.msra.mxu0 %v614
      %1587 = vmatprep.subr.mxu0 0.0
      %1588 = vmatpush1.msra.mxu0 %v615
      %1589 = vmatprep.subr.mxu0 0.0
      %1590 = vmatpush1.msra.mxu0 %v616
      %1591 = vmatprep.subr.mxu0 0.0
      %1592 = vmatpush1.msra.mxu0 0.0
      %1593 = vmatprep.subr.mxu0 0.0
      %1594 = vmatpush1.msra.mxu0 0.0
      %1595 = vmatprep.subr.mxu0 0.0
      %1596 = vmatpush1.msra.mxu0 0.0
      %1597 = vmatprep.subr.mxu0 0.0
      %1598 = vmatpush1.msra.mxu0 0.0
      %1599 = vmatprep.subr.mxu0 0.0
      %1600 = vmatpush1.msra.mxu0 0.0
      %1601 = vmatprep.subr.mxu0 0.0
      %1602 = vmatpush1.msra.mxu0 0.0
      %1603 = vmatprep.subr.mxu0 0.0
      %1604 = vmatpush1.msra.mxu0 0.0
      %1605 = vmatprep.subr.mxu0 0.0
      %1606 = vmatpush1.msra.mxu0 0.0
      %1607 = vmatprep.mubr.f32.mxu0 %v626
      %1608 = vmatmul.mubr.f32.gmra.mrb[0].mxu0 %v189
      %v1609 = vpop.f32.mrb[0].mxu0
      %v1610 = vadd.f32 %v1465, %v1609
      %v1611 = vpop.f32.mrb[0].mxu0
      %1612 = vmatprep.mubr.f32.mxu0 %v629
      %1613 = vmatmul.mubr.f32.gmra.mrb[0].mxu0 %v203
      %v1614 = vpop.f32.mrb[0].mxu0
      %v1615 = vadd.f32 %v1470, %v1614
      %v1616 = vpop.f32.mrb[0].mxu0
      %1617 = vmatprep.mubr.f32.mxu0 %v632
      %1618 = vmatmul.mubr.f32.gmra.mrb[0].mxu0 %v217
      %v1619 = vpop.f32.mrb[0].mxu0
      %v1620 = vadd.f32 %v1475, %v1619
      %v1621 = vpop.f32.mrb[0].mxu0
      %1622 = vmatprep.mubr.f32.mxu0 %v635
      %1623 = vmatmul.mubr.f32.gmra.mrb[0].mxu0 %v231
      %v1624 = vpop.f32.mrb[0].mxu0
      %v1625 = vadd.f32 %v1480, %v1624
      %v1626 = vpop.f32.mrb[0].mxu0
      %1627 = vmatprep.mubr.f32.mxu0 %v638
      %1628 = vmatmul.mubr.f32.gmra.mrb[0].mxu0 %v245
      %v1629 = vpop.f32.mrb[0].mxu0
      %v1630 = vadd.f32 %v1485, %v1629
      %v1631 = vpop.f32.mrb[0].mxu0
      %1632 = vmatprep.mubr.f32.mxu0 %v641
      %1633 = vmatmul.mubr.f32.gmra.mrb[0].mxu0 %v259
      %v1634 = vpop.f32.mrb[0].mxu0
      %v1635 = vadd.f32 %v1490, %v1634
      %v1636 = vpop.f32.mrb[0].mxu0
      %1637 = vmatprep.mubr.f32.mxu0 %v644
      %1638 = vmatmul.mubr.f32.gmra.mrb[0].mxu0 %v273
      %v1639 = vpop.f32.mrb[0].mxu0
      %v1640 = vadd.f32 %v1495, %v1639
      %v1641 = vpop.f32.mrb[0].mxu0
      %1642 = vmatprep.mubr.f32.mxu0 %v647
      %1643 = vmatmul.mubr.f32.gmra.mrb[0].mxu0 %v287
      %v1644 = vpop.f32.mrb[0].mxu0
      %v1645 = vadd.f32 %v1500, %v1644
      %v1646 = vpop.f32.mrb[0].mxu0
      %1647 = vmatprep.mubr.f32.mxu0 %v650
      %1648 = vmatmul.mubr.f32.gmra.mrb[0].mxu0 %v301
      %v1649 = vpop.f32.mrb[0].mxu0
      %v1650 = vadd.f32 %v1505, %v1649
      %v1651 = vpop.f32.mrb[0].mxu0
      %1652 = vmatprep.mubr.f32.mxu0 %v653
      %1653 = vmatmul.mubr.f32.gmra.mrb[0].mxu0 %v315
      %v1654 = vpop.f32.mrb[0].mxu0
      %v1655 = vadd.f32 %v1510, %v1654
      %v1656 = vpop.f32.mrb[0].mxu0
      %1657 = vmatprep.mubr.f32.mxu0 %v656
      %1658 = vmatmul.mubr.f32.gmra.mrb[0].mxu0 %v329
      %v1659 = vpop.f32.mrb[0].mxu0
      %v1660 = vadd.f32 %v1515, %v1659
      %v1661 = vpop.f32.mrb[0].mxu0
      %1662 = vmatprep.mubr.f32.mxu0 %v659
      %1663 = vmatmul.mubr.f32.gmra.mrb[0].mxu0 %v343
      %v1664 = vpop.f32.mrb[0].mxu0
      %v1665 = vadd.f32 %v1520, %v1664
      %v1666 = vpop.f32.mrb[0].mxu0
      %1667 = vmatprep.mubr.f32.mxu0 %v662
      %1668 = vmatmul.mubr.f32.gmra.mrb[0].mxu0 %v357
      %v1669 = vpop.f32.mrb[0].mxu0
      %v1670 = vadd.f32 %v1525, %v1669
      %v1671 = vpop.f32.mrb[0].mxu0
      %1672 = vmatprep.mubr.f32.mxu0 %v665
      %1673 = vmatmul.mubr.f32.gmra.mrb[0].mxu0 %v371
      %v1674 = vpop.f32.mrb[0].mxu0
      %v1675 = vadd.f32 %v1530, %v1674
      %v1676 = vpop.f32.mrb[0].mxu0
      %1677 = vmatprep.mubr.f32.mxu0 %v668
      %1678 = vmatmul.mubr.f32.gmra.mrb[0].mxu0 %v385
      %v1679 = vpop.f32.mrb[0].mxu0
      %v1680 = vadd.f32 %v1535, %v1679
      %v1681 = vpop.f32.mrb[0].mxu0
      %1682 = vmatprep.mubr.f32.mxu0 %v671
      %1683 = vmatmul.mubr.f32.gmra.mrb[0].mxu0 %v399
      %v1684 = vpop.f32.mrb[0].mxu0
      %v1685 = vadd.f32 %v1540, %v1684
      %v1686 = vpop.f32.mrb[0].mxu0
      %1687 = vdwg.mxu0
      %v1688 = vmax.f32 %v1610, 0.0
      %v1689 = vmax.f32 %v1615, 0.0
      %v1690 = vmax.f32 %v1620, 0.0
      %v1691 = vmax.f32 %v1625, 0.0
      %v1692 = vmax.f32 %v1630, 0.0
      %v1693 = vmax.f32 %v1635, 0.0
      %v1694 = vmax.f32 %v1640, 0.0
      %v1695 = vmax.f32 %v1645, 0.0
      %v1696 = vmax.f32 %v1650, 0.0
      %v1697 = vmax.f32 %v1655, 0.0
      %v1698 = vmax.f32 %v1660, 0.0
      %v1699 = vmax.f32 %v1665, 0.0
      %v1700 = vmax.f32 %v1670, 0.0
      %v1701 = vmax.f32 %v1675, 0.0
      %v1702 = vmax.f32 %v1680, 0.0
      %v1703 = vmax.f32 %v1685, 0.0
      %1704 = vst [vmem:[%s175] sm:$0xff] %v1688
      %1705 = vst [vmem:[%s175 + $0x8] sm:$0xff] %v1689
      %1706 = vst [vmem:[%s175 + $0x10] sm:$0xff] %v1690
      %1707 = vst [vmem:[%s175 + $0x18] sm:$0xff] %v1691
      %1708 = vst [vmem:[%s175 + $0x20] sm:$0xff] %v1692
      %1709 = vst [vmem:[%s175 + $0x28] sm:$0xff] %v1693
      %1710 = vst [vmem:[%s175 + $0x30] sm:$0xff] %v1694
      %1711 = vst [vmem:[%s175 + $0x38] sm:$0xff] %v1695
      %1712 = vst [vmem:[%s175 + $0x40] sm:$0xff] %v1696
      %1713 = vst [vmem:[%s175 + $0x48] sm:$0xff] %v1697
      %1714 = vst [vmem:[%s175 + $0x50] sm:$0xff] %v1698
      %1715 = vst [vmem:[%s175 + $0x58] sm:$0xff] %v1699
      %1716 = vst [vmem:[%s175 + $0x60] sm:$0xff] %v1700
      %1717 = vst [vmem:[%s175 + $0x68] sm:$0xff] %v1701
      %1718 = vst [vmem:[%s175 + $0x70] sm:$0xff] %v1702
      %1719 = vst [vmem:[%s175 + $0x78] sm:$0xff] %v1703
      %s1720 = smul.u32 16, %s14
      %p1721 = scmp.lt.s32.totalorder %s1720, 63
      %s1722 = scalar_select %p1721, %s1720, 63
      %s1723 = smul.addr %s1722, 8
      %s1724 = scalar_lea.vmem %s3, %s1723
      // Predicated region
      $region33: #{_lambda_.2} parent=31 // pred_check
        %p1725 = pneg %p100
      $region34: #{_lambda_.2} parent=31 // pred_check_branch
        %1727 = sbr.rel (%p1725) target = $region36
      $region35: #{_lambda_.2} parent=31 // pred_region
        %s1728 = smul.u32 16, %s14
      $region36: #{_lambda_.2} parent=31 // pred_fallthru
        _
    $region32: #{_lambda_.2} parent=5 // pred_fallthru
      _
    %p1729 = scmp.le.s32.totalorder 2, %s9
    // Predicated region
    $region37: #{_lambda_.2} parent=5 // pred_check
      %p1730 = pneg %p1729
    $region38: #{_lambda_.2} parent=5 // pred_check_branch
      %1732 = sbr.rel (%p1730) target = $region40
    $region39: #{_lambda_.2} parent=5 // pred_region
      %s1733 = ssub.s32 %s9, 2
      // Predicated region
      $region41: #{_lambda_.2} parent=39 // pred_check
        %p1734 = pneg %p106
      $region42: #{_lambda_.2} parent=39 // pred_check_branch
        %1736 = sbr.rel (%p1734) target = $region44
      $region43: #{_lambda_.2} parent=39 // pred_region
        %s1737 = smul.u32 16, %s15
        %p1738 = scmp.lt.s32.totalorder %s1737, 63
        %s1739 = scalar_select %p1738, %s1737, 63
        %s1740 = smul.addr %s1739, 8
        %s1741 = scalar_lea.vmem %s3, %s1740
      $region44: #{_lambda_.2} parent=39 // pred_fallthru
        _
    $region40: #{_lambda_.2} parent=5 // pred_fallthru
      _
  $region6: #{_lambda_.2} parent=0 // loop_footer
    %s13 = sadd.s32 1, %s9
  $region7: #{_lambda_.2} parent=0 // loop_footer_branch
    %8 = sbr.rel target = $region3
  $region8: #{_lambda_.2} parent=0 // loop_exit
    _

// kernel: _lambda_.3
$region0: #{_lambda_.3}
  #allocation0 [shape = 'u32[]', space=smem, size = 0x4, offset = 0x4, fixed_abs, tag = 'smem constant byte address 0x4 - core index']
  #allocation1 [shape = 'u32[144,128]{1,0:T(1,128)}', space=vmem, size = 0x12000, scoped, tag = 'internal scratch']
  %s0 = inlined_call_operand.vmem [shape: f32[512,3456], index: 0, kind: input, shape index: {}]
  %s1 = inlined_call_operand.vmem [shape: f32[3456,128], index: 1, kind: input, shape index: {}]
  %s2 = inlined_call_operand.vmem [shape: f32[1,128], index: 2, kind: input, shape index: {}]
  %s3 = inlined_call_operand.vmem [shape: f32[512,128], index: 3, kind: output, shape index: {}]
  %s4 = sld [smem:[#allocation0]]
  $region45: #{_lambda_.3} parent=0
    _
  %s6 = ssub.s32 1, %s4
  %s7 = scalar_select 0, %s6, %s4
  loop: start=0, step=1, limit=6
  $region2: #{_lambda_.3} parent=0 // loop_pre_header
    _
  $region3: #{_lambda_.3} parent=0 // loop_header
    %s9 = sphi 0, %s13
    %p10 = scmp.ge.s32.totalorder %s9, 6
    %s19 = sphi 0, %s21
    %s22 = sphi 0, %s19
    %s23 = sphi 0, %s22
    %s39 = sphi 0, %s23
    %s43 = sphi 0, %s43
    %s45 = sphi 0, %s43
    %s46 = sphi 0, %s45
    %s60 = sphi 0, %s46
    %s64 = sphi 0, %s64
    %s66 = sphi 0, %s64
    %s67 = sphi 0, %s66
    %s81 = sphi 0, %s67
    %s87 = sphi 0, %s89
    %s90 = sphi 0, %s87
    %s91 = sphi 0, %s90
    %s107 = sphi 0, %s91
  $region4: #{_lambda_.3} parent=0 // loop_header_branch
    %12 = sbr.rel (%p10) target = $region8
  $region5: #{_lambda_.3} parent=0 // loop_body
    %s14 = ssub.s32 %s9, 1
    %s15 = ssub.s32 %s9, 2
    %s16 = sadd.s32 %s9, 1
    %s17 = ssub.s32 %s9, %s16
    %p18 = scmp.eq.s32.totalorder %s17, 0
    %s20 = sadd.s32 %s19, 1
    %s21 = scalar_select %p18, %s19, %s20
    %p24 = pneg %p18
    %p25 = scmp.eq.s32.totalorder %s9, 3
    %p26 = por %p24, %p25
    %p27 = scmp.ne.s32.totalorder %s19, %s22
    %p28 = scmp.eq.s32.totalorder %s9, 0
    %p29 = por %p27, %p28
    %p30 = scmp.ne.s32.totalorder %s19, %s22
    %p31 = scmp.eq.s32.totalorder %s14, 3
    %p32 = por %p30, %p31
    %p33 = scmp.ne.s32.totalorder %s22, %s23
    %p34 = scmp.eq.s32.totalorder %s14, 0
    %p35 = por %p33, %p34
    %p36 = scmp.ne.s32.totalorder %s22, %s23
    %p37 = scmp.eq.s32.totalorder %s15, 3
    %p38 = por %p36, %p37
    %p40 = scmp.ne.s32.totalorder %s23, %s39
    %p41 = scmp.eq.s32.totalorder %s15, 0
    %p42 = por %p40, %p41
    %s44 = sadd.s32 %s43, 1
    %p47 = scmp.eq.s32.totalorder %s9, 3
    %p48 = scmp.ne.s32.totalorder %s43, %s45
    %p49 = scmp.eq.s32.totalorder %s9, 0
    %p50 = por %p48, %p49
    %p51 = scmp.ne.s32.totalorder %s43, %s45
    %p52 = scmp.eq.s32.totalorder %s14, 3
    %p53 = por %p51, %p52
    %p54 = scmp.ne.s32.totalorder %s45, %s46
    %p55 = scmp.eq.s32.totalorder %s14, 0
    %p56 = por %p54, %p55
    %p57 = scmp.ne.s32.totalorder %s45, %s46
    %p58 = scmp.eq.s32.totalorder %s15, 3
    %p59 = por %p57, %p58
    %p61 = scmp.ne.s32.totalorder %s46, %s60
    %p62 = scmp.eq.s32.totalorder %s15, 0
    %p63 = por %p61, %p62
    %s65 = sadd.s32 %s64, 1
    %p68 = scmp.eq.s32.totalorder %s9, 3
    %p69 = scmp.ne.s32.totalorder %s64, %s66
    %p70 = scmp.eq.s32.totalorder %s9, 0
    %p71 = por %p69, %p70
    %p72 = scmp.ne.s32.totalorder %s64, %s66
    %p73 = scmp.eq.s32.totalorder %s14, 3
    %p74 = por %p72, %p73
    %p75 = scmp.ne.s32.totalorder %s66, %s67
    %p76 = scmp.eq.s32.totalorder %s14, 0
    %p77 = por %p75, %p76
    %p78 = scmp.ne.s32.totalorder %s66, %s67
    %p79 = scmp.eq.s32.totalorder %s15, 3
    %p80 = por %p78, %p79
    %p82 = scmp.ne.s32.totalorder %s67, %s81
    %p83 = scmp.eq.s32.totalorder %s15, 0
    %p84 = por %p82, %p83
    %s85 = ssub.s32 %s9, %s16
    %p86 = scmp.eq.s32.totalorder %s85, 0
    %s88 = sadd.s32 %s87, 1
    %s89 = scalar_select %p86, %s87, %s88
    %p92 = pneg %p86
    %p93 = scmp.eq.s32.totalorder %s9, 3
    %p94 = por %p92, %p93
    %p95 = scmp.ne.s32.totalorder %s87, %s90
    %p96 = scmp.eq.s32.totalorder %s9, 0
    %p97 = por %p95, %p96
    %p98 = scmp.ne.s32.totalorder %s87, %s90
    %p99 = scmp.eq.s32.totalorder %s14, 3
    %p100 = por %p98, %p99
    %p101 = scmp.ne.s32.totalorder %s90, %s91
    %p102 = scmp.eq.s32.totalorder %s14, 0
    %p103 = por %p101, %p102
    %p104 = scmp.ne.s32.totalorder %s90, %s91
    %p105 = scmp.eq.s32.totalorder %s15, 3
    %p106 = por %p104, %p105
    %p108 = scmp.ne.s32.totalorder %s91, %s107
    %p109 = scmp.eq.s32.totalorder %s15, 0
    %p110 = por %p108, %p109
    %p111 = scmp.le.s32.totalorder 1, %s9
    %p112 = scmp.lt.s32.totalorder %s9, 5
    %p113 = pnand %p111, %p112
    %p114 = pneg %p113
    // Predicated region
    $region9: #{_lambda_.3} parent=5 // pred_check
      _
    $region10: #{_lambda_.3} parent=5 // pred_check_branch
      %116 = sbr.rel (%p113) target = $region12
    $region11: #{_lambda_.3} parent=5 // pred_region
      %s117 = ssub.s32 %s9, 1
      // Predicated region
      $region13: #{_lambda_.3} parent=11 // pred_check
        %p118 = pneg %p56
      $region14: #{_lambda_.3} parent=11 // pred_check_branch
        %120 = sbr.rel (%p118) target = $region16
      $region15: #{_lambda_.3} parent=11 // pred_region
        _
      $region16: #{_lambda_.3} parent=11 // pred_fallthru
        _
      // Predicated region
      $region17: #{_lambda_.3} parent=11 // pred_check
        %p121 = pneg %p77
      $region18: #{_lambda_.3} parent=11 // pred_check_branch
        %123 = sbr.rel (%p121) target = $region20
      $region19: #{_lambda_.3} parent=11 // pred_region
        _
      $region20: #{_lambda_.3} parent=11 // pred_fallthru
        _
    $region12: #{_lambda_.3} parent=5 // pred_fallthru
      _
    %p124 = scmp.lt.s32.totalorder %s9, 4
    // Predicated region
    $region21: #{_lambda_.3} parent=5 // pred_check
      %p125 = pneg %p124
    $region22: #{_lambda_.3} parent=5 // pred_check_branch
      %127 = sbr.rel (%p125) target = $region24
    $region23: #{_lambda_.3} parent=5 // pred_region
      // Predicated region
      $region25: #{_lambda_.3} parent=23 // pred_check
        %p128 = pneg %p29
      $region26: #{_lambda_.3} parent=23 // pred_check_branch
        %130 = sbr.rel (%p128) target = $region28
      $region27: #{_lambda_.3} parent=23 // pred_region
        %s131 = smul.u32 16, %s9
        %p132 = scmp.lt.s32.totalorder %s131, 63
        %s133 = scalar_select %p132, %s131, 63
        %s134 = smul.addr %s133, 27
        %s135 = smul.addr %s134, 8
        %s136 = scalar_lea.vmem %s0, %s135
        %s137 = smul.u32 16, %s9
      $region28: #{_lambda_.3} parent=23 // pred_fallthru
        _
    $region24: #{_lambda_.3} parent=5 // pred_fallthru
      _
    %p138 = scmp.le.s32.totalorder 1, %s9
    %p139 = scmp.lt.s32.totalorder %s9, 5
    %p140 = pnand %p138, %p139
    %p141 = pneg %p140
    // Predicated region
    $region29: #{_lambda_.3} parent=5 // pred_check
      _
    $region30: #{_lambda_.3} parent=5 // pred_check_branch
      %143 = sbr.rel (%p140) target = $region32
    $region31: #{_lambda_.3} parent=5 // pred_region
      %s144 = ssub.s32 %s9, 1
      %s145 = smul.u32 16, %s14
      %p146 = scmp.lt.s32.totalorder %s145, 63
      %s147 = scalar_select %p146, %s145, 63
      %s148 = smul.addr %s147, 27
      %s149 = smul.addr %s148, 8
      %s150 = scalar_lea.vmem %s0, %s149
      %p151 = pneg %p35
      %p152 = pneg %p32
      %p153 = pneg %p56
      %p154 = pneg %p53
      %p155 = pneg %p77
      %p156 = pneg %p74
      %p157 = pneg %p103
      %p158 = pneg %p100
      %s159 = smul.u32 16, %s14
      %p160 = scmp.lt.s32.totalorder %s159, 63
      %s161 = scalar_select %p160, %s159, 63
      %s162 = smul.addr %s161, 8
      %s163 = scalar_lea.vmem %s3, %s162
      %s164 = smul.u32 16, %s14
      %p165 = scmp.lt.s32.totalorder %s164, 63
      %s166 = scalar_select %p165, %s164, 63
      %s167 = smul.addr %s166, 27
      %s168 = smul.addr %s167, 8
      %s169 = scalar_lea.vmem %s0, %s168
      %s170 = smul.u32 16, %s14
      %s171 = smul.u32 16, %s14
      %p172 = scmp.lt.s32.totalorder %s171, 63
      %s173 = scalar_select %p172, %s171, 63
      %s174 = smul.addr %s173, 8
      %s175 = scalar_lea.vmem %s3, %s174
      %s176 = smul.u32 16, %s14
      %v177 = vld [vmem:[%s169] sm:$0xff]
      %v178 = vld [vmem:[%s169 + $0x8] sm:$0xff]
      %v179 = vld [vmem:[%s169 + $0x10] sm:$0xff]
      %v180 = vld [vmem:[%s169 + $0x18] sm:$0xff]
      %v181 = vld [vmem:[%s169 + $0x20] sm:$0xff]
      %v182 = vld [vmem:[%s169 + $0x28] sm:$0xff]
      %v183 = vld [vmem:[%s169 + $0x30] sm:$0xff]
      %v184 = vld [vmem:[%s169 + $0x38] sm:$0xff]
      %v185 = vld [vmem:[%s169 + $0x40] sm:$0xff]
      %v186 = vld [vmem:[%s169 + $0x48] sm:$0xff]
      %v187 = vld [vmem:[%s169 + $0x50] sm:$0xff]
      %v188 = vld [vmem:[%s169 + $0x58] sm:$0xff]
      %v189 = vld [vmem:[%s169 + $0x60] sm:$0xff]
      %v190 = vld [vmem:[%s169 + $0x68] sm:$0xff]
      %v191 = vld [vmem:[%s169 + $0x70] sm:$0xff]
      %v192 = vld [vmem:[%s169 + $0x78] sm:$0xff]
      %v193 = vld [vmem:[%s169 + $0x80] sm:$0xff]
      %v194 = vld [vmem:[%s169 + $0x88] sm:$0xff]
      %v195 = vld [vmem:[%s169 + $0x90] sm:$0xff]
      %v196 = vld [vmem:[%s169 + $0x98] sm:$0xff]
      %v197 = vld [vmem:[%s169 + $0xa0] sm:$0xff]
      %v198 = vld [vmem:[%s169 + $0xa8] sm:$0xff]
      %v199 = vld [vmem:[%s169 + $0xb0] sm:$0xff]
      %v200 = vld [vmem:[%s169 + $0xb8] sm:$0xff]
      %v201 = vld [vmem:[%s169 + $0xc0] sm:$0xff]
      %v202 = vld [vmem:[%s169 + $0xc8] sm:$0xff]
      %v203 = vld [vmem:[%s169 + $0xd0] sm:$0xff]
      %v204 = vld [vmem:[%s169 + $0xd8] sm:$0xff]
      %v205 = vld [vmem:[%s169 + $0xe0] sm:$0xff]
      %v206 = vld [vmem:[%s169 + $0xe8] sm:$0xff]
      %v207 = vld [vmem:[%s169 + $0xf0] sm:$0xff]
      %v208 = vld [vmem:[%s169 + $0xf8] sm:$0xff]
      %v209 = vld [vmem:[%s169 + $0x100] sm:$0xff]
      %v210 = vld [vmem:[%s169 + $0x108] sm:$0xff]
      %v211 = vld [vmem:[%s169 + $0x110] sm:$0xff]
      %v212 = vld [vmem:[%s169 + $0x118] sm:$0xff]
      %v213 = vld [vmem:[%s169 + $0x120] sm:$0xff]
      %v214 = vld [vmem:[%s169 + $0x128] sm:$0xff]
      %v215 = vld [vmem:[%s169 + $0x130] sm:$0xff]
      %v216 = vld [vmem:[%s169 + $0x138] sm:$0xff]
      %v217 = vld [vmem:[%s169 + $0x140] sm:$0xff]
      %v218 = vld [vmem:[%s169 + $0x148] sm:$0xff]
      %v219 = vld [vmem:[%s169 + $0x150] sm:$0xff]
      %v220 = vld [vmem:[%s169 + $0x158] sm:$0xff]
      %v221 = vld [vmem:[%s169 + $0x160] sm:$0xff]
      %v222 = vld [vmem:[%s169 + $0x168] sm:$0xff]
      %v223 = vld [vmem:[%s169 + $0x170] sm:$0xff]
      %v224 = vld [vmem:[%s169 + $0x178] sm:$0xff]
      %v225 = vld [vmem:[%s169 + $0x180] sm:$0xff]
      %v226 = vld [vmem:[%s169 + $0x188] sm:$0xff]
      %v227 = vld [vmem:[%s169 + $0x190] sm:$0xff]
      %v228 = vld [vmem:[%s169 + $0x198] sm:$0xff]
      %v229 = vld [vmem:[%s169 + $0x1a0] sm:$0xff]
      %v230 = vld [vmem:[%s169 + $0x1a8] sm:$0xff]
      %v231 = vld [vmem:[%s169 + $0x1b0] sm:$0xff]
      %v232 = vld [vmem:[%s169 + $0x1b8] sm:$0xff]
      %v233 = vld [vmem:[%s169 + $0x1c0] sm:$0xff]
      %v234 = vld [vmem:[%s169 + $0x1c8] sm:$0xff]
      %v235 = vld [vmem:[%s169 + $0x1d0] sm:$0xff]
      %v236 = vld [vmem:[%s169 + $0x1d8] sm:$0xff]
      %v237 = vld [vmem:[%s169 + $0x1e0] sm:$0xff]
      %v238 = vld [vmem:[%s169 + $0x1e8] sm:$0xff]
      %v239 = vld [vmem:[%s169 + $0x1f0] sm:$0xff]
      %v240 = vld [vmem:[%s169 + $0x1f8] sm:$0xff]
      %v241 = vld [vmem:[%s169 + $0x200] sm:$0xff]
      %v242 = vld [vmem:[%s169 + $0x208] sm:$0xff]
      %v243 = vld [vmem:[%s169 + $0x210] sm:$0xff]
      %v244 = vld [vmem:[%s169 + $0x218] sm:$0xff]
      %v245 = vld [vmem:[%s169 + $0x220] sm:$0xff]
      %v246 = vld [vmem:[%s169 + $0x228] sm:$0xff]
      %v247 = vld [vmem:[%s169 + $0x230] sm:$0xff]
      %v248 = vld [vmem:[%s169 + $0x238] sm:$0xff]
      %v249 = vld [vmem:[%s169 + $0x240] sm:$0xff]
      %v250 = vld [vmem:[%s169 + $0x248] sm:$0xff]
      %v251 = vld [vmem:[%s169 + $0x250] sm:$0xff]
      %v252 = vld [vmem:[%s169 + $0x258] sm:$0xff]
      %v253 = vld [vmem:[%s169 + $0x260] sm:$0xff]
      %v254 = vld [vmem:[%s169 + $0x268] sm:$0xff]
      %v255 = vld [vmem:[%s169 + $0x270] sm:$0xff]
      %v256 = vld [vmem:[%s169 + $0x278] sm:$0xff]
      %v257 = vld [vmem:[%s169 + $0x280] sm:$0xff]
      %v258 = vld [vmem:[%s169 + $0x288] sm:$0xff]
      %v259 = vld [vmem:[%s169 + $0x290] sm:$0xff]
      %v260 = vld [vmem:[%s169 + $0x298] sm:$0xff]
      %v261 = vld [vmem:[%s169 + $0x2a0] sm:$0xff]
      %v262 = vld [vmem:[%s169 + $0x2a8] sm:$0xff]
      %v263 = vld [vmem:[%s169 + $0x2b0] sm:$0xff]
      %v264 = vld [vmem:[%s169 + $0x2b8] sm:$0xff]
      %v265 = vld [vmem:[%s169 + $0x2c0] sm:$0xff]
      %v266 = vld [vmem:[%s169 + $0x2c8] sm:$0xff]
      %v267 = vld [vmem:[%s169 + $0x2d0] sm:$0xff]
      %v268 = vld [vmem:[%s169 + $0x2d8] sm:$0xff]
      %v269 = vld [vmem:[%s169 + $0x2e0] sm:$0xff]
      %v270 = vld [vmem:[%s169 + $0x2e8] sm:$0xff]
      %v271 = vld [vmem:[%s169 + $0x2f0] sm:$0xff]
      %v272 = vld [vmem:[%s169 + $0x2f8] sm:$0xff]
      %v273 = vld [vmem:[%s169 + $0x300] sm:$0xff]
      %v274 = vld [vmem:[%s169 + $0x308] sm:$0xff]
      %v275 = vld [vmem:[%s169 + $0x310] sm:$0xff]
      %v276 = vld [vmem:[%s169 + $0x318] sm:$0xff]
      %v277 = vld [vmem:[%s169 + $0x320] sm:$0xff]
      %v278 = vld [vmem:[%s169 + $0x328] sm:$0xff]
      %v279 = vld [vmem:[%s169 + $0x330] sm:$0xff]
      %v280 = vld [vmem:[%s169 + $0x338] sm:$0xff]
      %v281 = vld [vmem:[%s169 + $0x340] sm:$0xff]
      %v282 = vld [vmem:[%s169 + $0x348] sm:$0xff]
      %v283 = vld [vmem:[%s169 + $0x350] sm:$0xff]
      %v284 = vld [vmem:[%s169 + $0x358] sm:$0xff]
      %v285 = vld [vmem:[%s169 + $0x360] sm:$0xff]
      %v286 = vld [vmem:[%s169 + $0x368] sm:$0xff]
      %v287 = vld [vmem:[%s169 + $0x370] sm:$0xff]
      %v288 = vld [vmem:[%s169 + $0x378] sm:$0xff]
      %v289 = vld [vmem:[%s169 + $0x380] sm:$0xff]
      %v290 = vld [vmem:[%s169 + $0x388] sm:$0xff]
      %v291 = vld [vmem:[%s169 + $0x390] sm:$0xff]
      %v292 = vld [vmem:[%s169 + $0x398] sm:$0xff]
      %v293 = vld [vmem:[%s169 + $0x3a0] sm:$0xff]
      %v294 = vld [vmem:[%s169 + $0x3a8] sm:$0xff]
      %v295 = vld [vmem:[%s169 + $0x3b0] sm:$0xff]
      %v296 = vld [vmem:[%s169 + $0x3b8] sm:$0xff]
      %v297 = vld [vmem:[%s169 + $0x3c0] sm:$0xff]
      %v298 = vld [vmem:[%s169 + $0x3c8] sm:$0xff]
      %v299 = vld [vmem:[%s169 + $0x3d0] sm:$0xff]
      %v300 = vld [vmem:[%s169 + $0x3d8] sm:$0xff]
      %v301 = vld [vmem:[%s169 + $0x3e0] sm:$0xff]
      %v302 = vld [vmem:[%s169 + $0x3e8] sm:$0xff]
      %v303 = vld [vmem:[%s169 + $0x3f0] sm:$0xff]
      %v304 = vld [vmem:[%s169 + $0x3f8] sm:$0xff]
      %v305 = vld [vmem:[%s169 + $0x400] sm:$0xff]
      %v306 = vld [vmem:[%s169 + $0x408] sm:$0xff]
      %v307 = vld [vmem:[%s169 + $0x410] sm:$0xff]
      %v308 = vld [vmem:[%s169 + $0x418] sm:$0xff]
      %v309 = vld [vmem:[%s169 + $0x420] sm:$0xff]
      %v310 = vld [vmem:[%s169 + $0x428] sm:$0xff]
      %v311 = vld [vmem:[%s169 + $0x430] sm:$0xff]
      %v312 = vld [vmem:[%s169 + $0x438] sm:$0xff]
      %v313 = vld [vmem:[%s169 + $0x440] sm:$0xff]
      %v314 = vld [vmem:[%s169 + $0x448] sm:$0xff]
      %v315 = vld [vmem:[%s169 + $0x450] sm:$0xff]
      %v316 = vld [vmem:[%s169 + $0x458] sm:$0xff]
      %v317 = vld [vmem:[%s169 + $0x460] sm:$0xff]
      %v318 = vld [vmem:[%s169 + $0x468] sm:$0xff]
      %v319 = vld [vmem:[%s169 + $0x470] sm:$0xff]
      %v320 = vld [vmem:[%s169 + $0x478] sm:$0xff]
      %v321 = vld [vmem:[%s169 + $0x480] sm:$0xff]
      %v322 = vld [vmem:[%s169 + $0x488] sm:$0xff]
      %v323 = vld [vmem:[%s169 + $0x490] sm:$0xff]
      %v324 = vld [vmem:[%s169 + $0x498] sm:$0xff]
      %v325 = vld [vmem:[%s169 + $0x4a0] sm:$0xff]
      %v326 = vld [vmem:[%s169 + $0x4a8] sm:$0xff]
      %v327 = vld [vmem:[%s169 + $0x4b0] sm:$0xff]
      %v328 = vld [vmem:[%s169 + $0x4b8] sm:$0xff]
      %v329 = vld [vmem:[%s169 + $0x4c0] sm:$0xff]
      %v330 = vld [vmem:[%s169 + $0x4c8] sm:$0xff]
      %v331 = vld [vmem:[%s169 + $0x4d0] sm:$0xff]
      %v332 = vld [vmem:[%s169 + $0x4d8] sm:$0xff]
      %v333 = vld [vmem:[%s169 + $0x4e0] sm:$0xff]
      %v334 = vld [vmem:[%s169 + $0x4e8] sm:$0xff]
      %v335 = vld [vmem:[%s169 + $0x4f0] sm:$0xff]
      %v336 = vld [vmem:[%s169 + $0x4f8] sm:$0xff]
      %v337 = vld [vmem:[%s169 + $0x500] sm:$0xff]
      %v338 = vld [vmem:[%s169 + $0x508] sm:$0xff]
      %v339 = vld [vmem:[%s169 + $0x510] sm:$0xff]
      %v340 = vld [vmem:[%s169 + $0x518] sm:$0xff]
      %v341 = vld [vmem:[%s169 + $0x520] sm:$0xff]
      %v342 = vld [vmem:[%s169 + $0x528] sm:$0xff]
      %v343 = vld [vmem:[%s169 + $0x530] sm:$0xff]
      %v344 = vld [vmem:[%s169 + $0x538] sm:$0xff]
      %v345 = vld [vmem:[%s169 + $0x540] sm:$0xff]
      %v346 = vld [vmem:[%s169 + $0x548] sm:$0xff]
      %v347 = vld [vmem:[%s169 + $0x550] sm:$0xff]
      %v348 = vld [vmem:[%s169 + $0x558] sm:$0xff]
      %v349 = vld [vmem:[%s169 + $0x560] sm:$0xff]
      %v350 = vld [vmem:[%s169 + $0x568] sm:$0xff]
      %v351 = vld [vmem:[%s169 + $0x570] sm:$0xff]
      %v352 = vld [vmem:[%s169 + $0x578] sm:$0xff]
      %v353 = vld [vmem:[%s169 + $0x580] sm:$0xff]
      %v354 = vld [vmem:[%s169 + $0x588] sm:$0xff]
      %v355 = vld [vmem:[%s169 + $0x590] sm:$0xff]
      %v356 = vld [vmem:[%s169 + $0x598] sm:$0xff]
      %v357 = vld [vmem:[%s169 + $0x5a0] sm:$0xff]
      %v358 = vld [vmem:[%s169 + $0x5a8] sm:$0xff]
      %v359 = vld [vmem:[%s169 + $0x5b0] sm:$0xff]
      %v360 = vld [vmem:[%s169 + $0x5b8] sm:$0xff]
      %v361 = vld [vmem:[%s169 + $0x5c0] sm:$0xff]
      %v362 = vld [vmem:[%s169 + $0x5c8] sm:$0xff]
      %v363 = vld [vmem:[%s169 + $0x5d0] sm:$0xff]
      %v364 = vld [vmem:[%s169 + $0x5d8] sm:$0xff]
      %v365 = vld [vmem:[%s169 + $0x5e0] sm:$0xff]
      %v366 = vld [vmem:[%s169 + $0x5e8] sm:$0xff]
      %v367 = vld [vmem:[%s169 + $0x5f0] sm:$0xff]
      %v368 = vld [vmem:[%s169 + $0x5f8] sm:$0xff]
      %v369 = vld [vmem:[%s169 + $0x600] sm:$0xff]
      %v370 = vld [vmem:[%s169 + $0x608] sm:$0xff]
      %v371 = vld [vmem:[%s169 + $0x610] sm:$0xff]
      %v372 = vld [vmem:[%s169 + $0x618] sm:$0xff]
      %v373 = vld [vmem:[%s169 + $0x620] sm:$0xff]
      %v374 = vld [vmem:[%s169 + $0x628] sm:$0xff]
      %v375 = vld [vmem:[%s169 + $0x630] sm:$0xff]
      %v376 = vld [vmem:[%s169 + $0x638] sm:$0xff]
      %v377 = vld [vmem:[%s169 + $0x640] sm:$0xff]
      %v378 = vld [vmem:[%s169 + $0x648] sm:$0xff]
      %v379 = vld [vmem:[%s169 + $0x650] sm:$0xff]
      %v380 = vld [vmem:[%s169 + $0x658] sm:$0xff]
      %v381 = vld [vmem:[%s169 + $0x660] sm:$0xff]
      %v382 = vld [vmem:[%s169 + $0x668] sm:$0xff]
      %v383 = vld [vmem:[%s169 + $0x670] sm:$0xff]
      %v384 = vld [vmem:[%s169 + $0x678] sm:$0xff]
      %v385 = vld [vmem:[%s169 + $0x680] sm:$0xff]
      %v386 = vld [vmem:[%s169 + $0x688] sm:$0xff]
      %v387 = vld [vmem:[%s169 + $0x690] sm:$0xff]
      %v388 = vld [vmem:[%s169 + $0x698] sm:$0xff]
      %v389 = vld [vmem:[%s169 + $0x6a0] sm:$0xff]
      %v390 = vld [vmem:[%s169 + $0x6a8] sm:$0xff]
      %v391 = vld [vmem:[%s169 + $0x6b0] sm:$0xff]
      %v392 = vld [vmem:[%s169 + $0x6b8] sm:$0xff]
      %v393 = vld [vmem:[%s169 + $0x6c0] sm:$0xff]
      %v394 = vld [vmem:[%s169 + $0x6c8] sm:$0xff]
      %v395 = vld [vmem:[%s169 + $0x6d0] sm:$0xff]
      %v396 = vld [vmem:[%s169 + $0x6d8] sm:$0xff]
      %v397 = vld [vmem:[%s169 + $0x6e0] sm:$0xff]
      %v398 = vld [vmem:[%s169 + $0x6e8] sm:$0xff]
      %v399 = vld [vmem:[%s169 + $0x6f0] sm:$0xff]
      %v400 = vld [vmem:[%s169 + $0x6f8] sm:$0xff]
      %v401 = vld [vmem:[%s169 + $0x700] sm:$0xff]
      %v402 = vld [vmem:[%s169 + $0x708] sm:$0xff]
      %v403 = vld [vmem:[%s169 + $0x710] sm:$0xff]
      %v404 = vld [vmem:[%s169 + $0x718] sm:$0xff]
      %v405 = vld [vmem:[%s169 + $0x720] sm:$0xff]
      %v406 = vld [vmem:[%s169 + $0x728] sm:$0xff]
      %v407 = vld [vmem:[%s169 + $0x730] sm:$0xff]
      %v408 = vld [vmem:[%s169 + $0x738] sm:$0xff]
      %v409 = vld [vmem:[%s169 + $0x740] sm:$0xff]
      %v410 = vld [vmem:[%s169 + $0x748] sm:$0xff]
      %v411 = vld [vmem:[%s169 + $0x750] sm:$0xff]
      %v412 = vld [vmem:[%s169 + $0x758] sm:$0xff]
      %v413 = vld [vmem:[%s169 + $0x760] sm:$0xff]
      %v414 = vld [vmem:[%s169 + $0x768] sm:$0xff]
      %v415 = vld [vmem:[%s169 + $0x770] sm:$0xff]
      %v416 = vld [vmem:[%s169 + $0x778] sm:$0xff]
      %v417 = vld [vmem:[%s169 + $0x780] sm:$0xff]
      %v418 = vld [vmem:[%s169 + $0x788] sm:$0xff]
      %v419 = vld [vmem:[%s169 + $0x790] sm:$0xff]
      %v420 = vld [vmem:[%s169 + $0x798] sm:$0xff]
      %v421 = vld [vmem:[%s169 + $0x7a0] sm:$0xff]
      %v422 = vld [vmem:[%s169 + $0x7a8] sm:$0xff]
      %v423 = vld [vmem:[%s169 + $0x7b0] sm:$0xff]
      %v424 = vld [vmem:[%s169 + $0x7b8] sm:$0xff]
      %v425 = vld [vmem:[%s169 + $0x7c0] sm:$0xff]
      %v426 = vld [vmem:[%s169 + $0x7c8] sm:$0xff]
      %v427 = vld [vmem:[%s169 + $0x7d0] sm:$0xff]
      %v428 = vld [vmem:[%s169 + $0x7d8] sm:$0xff]
      %v429 = vld [vmem:[%s169 + $0x7e0] sm:$0xff]
      %v430 = vld [vmem:[%s169 + $0x7e8] sm:$0xff]
      %v431 = vld [vmem:[%s169 + $0x7f0] sm:$0xff]
      %v432 = vld [vmem:[%s169 + $0x7f8] sm:$0xff]
      %v433 = vld [vmem:[%s169 + $0x800] sm:$0xff]
      %v434 = vld [vmem:[%s169 + $0x808] sm:$0xff]
      %v435 = vld [vmem:[%s169 + $0x810] sm:$0xff]
      %v436 = vld [vmem:[%s169 + $0x818] sm:$0xff]
      %v437 = vld [vmem:[%s169 + $0x820] sm:$0xff]
      %v438 = vld [vmem:[%s169 + $0x828] sm:$0xff]
      %v439 = vld [vmem:[%s169 + $0x830] sm:$0xff]
      %v440 = vld [vmem:[%s169 + $0x838] sm:$0xff]
      %v441 = vld [vmem:[%s169 + $0x840] sm:$0xff]
      %v442 = vld [vmem:[%s169 + $0x848] sm:$0xff]
      %v443 = vld [vmem:[%s169 + $0x850] sm:$0xff]
      %v444 = vld [vmem:[%s169 + $0x858] sm:$0xff]
      %v445 = vld [vmem:[%s169 + $0x860] sm:$0xff]
      %v446 = vld [vmem:[%s169 + $0x868] sm:$0xff]
      %v447 = vld [vmem:[%s169 + $0x870] sm:$0xff]
      %v448 = vld [vmem:[%s169 + $0x878] sm:$0xff]
      %v449 = vld [vmem:[%s169 + $0x880] sm:$0xff]
      %v450 = vld [vmem:[%s169 + $0x888] sm:$0xff]
      %v451 = vld [vmem:[%s169 + $0x890] sm:$0xff]
      %v452 = vld [vmem:[%s169 + $0x898] sm:$0xff]
      %v453 = vld [vmem:[%s169 + $0x8a0] sm:$0xff]
      %v454 = vld [vmem:[%s169 + $0x8a8] sm:$0xff]
      %v455 = vld [vmem:[%s169 + $0x8b0] sm:$0xff]
      %v456 = vld [vmem:[%s169 + $0x8b8] sm:$0xff]
      %v457 = vld [vmem:[%s169 + $0x8c0] sm:$0xff]
      %v458 = vld [vmem:[%s169 + $0x8c8] sm:$0xff]
      %v459 = vld [vmem:[%s169 + $0x8d0] sm:$0xff]
      %v460 = vld [vmem:[%s169 + $0x8d8] sm:$0xff]
      %v461 = vld [vmem:[%s169 + $0x8e0] sm:$0xff]
      %v462 = vld [vmem:[%s169 + $0x8e8] sm:$0xff]
      %v463 = vld [vmem:[%s169 + $0x8f0] sm:$0xff]
      %v464 = vld [vmem:[%s169 + $0x8f8] sm:$0xff]
      %v465 = vld [vmem:[%s169 + $0x900] sm:$0xff]
      %v466 = vld [vmem:[%s169 + $0x908] sm:$0xff]
      %v467 = vld [vmem:[%s169 + $0x910] sm:$0xff]
      %v468 = vld [vmem:[%s169 + $0x918] sm:$0xff]
      %v469 = vld [vmem:[%s169 + $0x920] sm:$0xff]
      %v470 = vld [vmem:[%s169 + $0x928] sm:$0xff]
      %v471 = vld [vmem:[%s169 + $0x930] sm:$0xff]
      %v472 = vld [vmem:[%s169 + $0x938] sm:$0xff]
      %v473 = vld [vmem:[%s169 + $0x940] sm:$0xff]
      %v474 = vld [vmem:[%s169 + $0x948] sm:$0xff]
      %v475 = vld [vmem:[%s169 + $0x950] sm:$0xff]
      %v476 = vld [vmem:[%s169 + $0x958] sm:$0xff]
      %v477 = vld [vmem:[%s169 + $0x960] sm:$0xff]
      %v478 = vld [vmem:[%s169 + $0x968] sm:$0xff]
      %v479 = vld [vmem:[%s169 + $0x970] sm:$0xff]
      %v480 = vld [vmem:[%s169 + $0x978] sm:$0xff]
      %v481 = vld [vmem:[%s169 + $0x980] sm:$0xff]
      %v482 = vld [vmem:[%s169 + $0x988] sm:$0xff]
      %v483 = vld [vmem:[%s169 + $0x990] sm:$0xff]
      %v484 = vld [vmem:[%s169 + $0x998] sm:$0xff]
      %v485 = vld [vmem:[%s169 + $0x9a0] sm:$0xff]
      %v486 = vld [vmem:[%s169 + $0x9a8] sm:$0xff]
      %v487 = vld [vmem:[%s169 + $0x9b0] sm:$0xff]
      %v488 = vld [vmem:[%s169 + $0x9b8] sm:$0xff]
      %v489 = vld [vmem:[%s169 + $0x9c0] sm:$0xff]
      %v490 = vld [vmem:[%s169 + $0x9c8] sm:$0xff]
      %v491 = vld [vmem:[%s169 + $0x9d0] sm:$0xff]
      %v492 = vld [vmem:[%s169 + $0x9d8] sm:$0xff]
      %v493 = vld [vmem:[%s169 + $0x9e0] sm:$0xff]
      %v494 = vld [vmem:[%s169 + $0x9e8] sm:$0xff]
      %v495 = vld [vmem:[%s169 + $0x9f0] sm:$0xff]
      %v496 = vld [vmem:[%s169 + $0x9f8] sm:$0xff]
      %v497 = vld [vmem:[%s169 + $0xa00] sm:$0xff]
      %v498 = vld [vmem:[%s169 + $0xa08] sm:$0xff]
      %v499 = vld [vmem:[%s169 + $0xa10] sm:$0xff]
      %v500 = vld [vmem:[%s169 + $0xa18] sm:$0xff]
      %v501 = vld [vmem:[%s169 + $0xa20] sm:$0xff]
      %v502 = vld [vmem:[%s169 + $0xa28] sm:$0xff]
      %v503 = vld [vmem:[%s169 + $0xa30] sm:$0xff]
      %v504 = vld [vmem:[%s169 + $0xa38] sm:$0xff]
      %v505 = vld [vmem:[%s169 + $0xa40] sm:$0xff]
      %v506 = vld [vmem:[%s169 + $0xa48] sm:$0xff]
      %v507 = vld [vmem:[%s169 + $0xa50] sm:$0xff]
      %v508 = vld [vmem:[%s169 + $0xa58] sm:$0xff]
      %v509 = vld [vmem:[%s169 + $0xa60] sm:$0xff]
      %v510 = vld [vmem:[%s169 + $0xa68] sm:$0xff]
      %v511 = vld [vmem:[%s169 + $0xa70] sm:$0xff]
      %v512 = vld [vmem:[%s169 + $0xa78] sm:$0xff]
      %v513 = vld [vmem:[%s169 + $0xa80] sm:$0xff]
      %v514 = vld [vmem:[%s169 + $0xa88] sm:$0xff]
      %v515 = vld [vmem:[%s169 + $0xa90] sm:$0xff]
      %v516 = vld [vmem:[%s169 + $0xa98] sm:$0xff]
      %v517 = vld [vmem:[%s169 + $0xaa0] sm:$0xff]
      %v518 = vld [vmem:[%s169 + $0xaa8] sm:$0xff]
      %v519 = vld [vmem:[%s169 + $0xab0] sm:$0xff]
      %v520 = vld [vmem:[%s169 + $0xab8] sm:$0xff]
      %v521 = vld [vmem:[%s169 + $0xac0] sm:$0xff]
      %v522 = vld [vmem:[%s169 + $0xac8] sm:$0xff]
      %v523 = vld [vmem:[%s169 + $0xad0] sm:$0xff]
      %v524 = vld [vmem:[%s169 + $0xad8] sm:$0xff]
      %v525 = vld [vmem:[%s169 + $0xae0] sm:$0xff]
      %v526 = vld [vmem:[%s169 + $0xae8] sm:$0xff]
      %v527 = vld [vmem:[%s169 + $0xaf0] sm:$0xff]
      %v528 = vld [vmem:[%s169 + $0xaf8] sm:$0xff]
      %v529 = vld [vmem:[%s169 + $0xb00] sm:$0xff]
      %v530 = vld [vmem:[%s169 + $0xb08] sm:$0xff]
      %v531 = vld [vmem:[%s169 + $0xb10] sm:$0xff]
      %v532 = vld [vmem:[%s169 + $0xb18] sm:$0xff]
      %v533 = vld [vmem:[%s169 + $0xb20] sm:$0xff]
      %v534 = vld [vmem:[%s169 + $0xb28] sm:$0xff]
      %v535 = vld [vmem:[%s169 + $0xb30] sm:$0xff]
      %v536 = vld [vmem:[%s169 + $0xb38] sm:$0xff]
      %v537 = vld [vmem:[%s169 + $0xb40] sm:$0xff]
      %v538 = vld [vmem:[%s169 + $0xb48] sm:$0xff]
      %v539 = vld [vmem:[%s169 + $0xb50] sm:$0xff]
      %v540 = vld [vmem:[%s169 + $0xb58] sm:$0xff]
      %v541 = vld [vmem:[%s169 + $0xb60] sm:$0xff]
      %v542 = vld [vmem:[%s169 + $0xb68] sm:$0xff]
      %v543 = vld [vmem:[%s169 + $0xb70] sm:$0xff]
      %v544 = vld [vmem:[%s169 + $0xb78] sm:$0xff]
      %v545 = vld [vmem:[%s169 + $0xb80] sm:$0xff]
      %v546 = vld [vmem:[%s169 + $0xb88] sm:$0xff]
      %v547 = vld [vmem:[%s169 + $0xb90] sm:$0xff]
      %v548 = vld [vmem:[%s169 + $0xb98] sm:$0xff]
      %v549 = vld [vmem:[%s169 + $0xba0] sm:$0xff]
      %v550 = vld [vmem:[%s169 + $0xba8] sm:$0xff]
      %v551 = vld [vmem:[%s169 + $0xbb0] sm:$0xff]
      %v552 = vld [vmem:[%s169 + $0xbb8] sm:$0xff]
      %v553 = vld [vmem:[%s169 + $0xbc0] sm:$0xff]
      %v554 = vld [vmem:[%s169 + $0xbc8] sm:$0xff]
      %v555 = vld [vmem:[%s169 + $0xbd0] sm:$0xff]
      %v556 = vld [vmem:[%s169 + $0xbd8] sm:$0xff]
      %v557 = vld [vmem:[%s169 + $0xbe0] sm:$0xff]
      %v558 = vld [vmem:[%s169 + $0xbe8] sm:$0xff]
      %v559 = vld [vmem:[%s169 + $0xbf0] sm:$0xff]
      %v560 = vld [vmem:[%s169 + $0xbf8] sm:$0xff]
      %v561 = vld [vmem:[%s169 + $0xc00] sm:$0xff]
      %v562 = vld [vmem:[%s169 + $0xc08] sm:$0xff]
      %v563 = vld [vmem:[%s169 + $0xc10] sm:$0xff]
      %v564 = vld [vmem:[%s169 + $0xc18] sm:$0xff]
      %v565 = vld [vmem:[%s169 + $0xc20] sm:$0xff]
      %v566 = vld [vmem:[%s169 + $0xc28] sm:$0xff]
      %v567 = vld [vmem:[%s169 + $0xc30] sm:$0xff]
      %v568 = vld [vmem:[%s169 + $0xc38] sm:$0xff]
      %v569 = vld [vmem:[%s169 + $0xc40] sm:$0xff]
      %v570 = vld [vmem:[%s169 + $0xc48] sm:$0xff]
      %v571 = vld [vmem:[%s169 + $0xc50] sm:$0xff]
      %v572 = vld [vmem:[%s169 + $0xc58] sm:$0xff]
      %v573 = vld [vmem:[%s169 + $0xc60] sm:$0xff]
      %v574 = vld [vmem:[%s169 + $0xc68] sm:$0xff]
      %v575 = vld [vmem:[%s169 + $0xc70] sm:$0xff]
      %v576 = vld [vmem:[%s169 + $0xc78] sm:$0xff]
      %v577 = vld [vmem:[%s169 + $0xc80] sm:$0xff]
      %v578 = vld [vmem:[%s169 + $0xc88] sm:$0xff]
      %v579 = vld [vmem:[%s169 + $0xc90] sm:$0xff]
      %v580 = vld [vmem:[%s169 + $0xc98] sm:$0xff]
      %v581 = vld [vmem:[%s169 + $0xca0] sm:$0xff]
      %v582 = vld [vmem:[%s169 + $0xca8] sm:$0xff]
      %v583 = vld [vmem:[%s169 + $0xcb0] sm:$0xff]
      %v584 = vld [vmem:[%s169 + $0xcb8] sm:$0xff]
      %v585 = vld [vmem:[%s169 + $0xcc0] sm:$0xff]
      %v586 = vld [vmem:[%s169 + $0xcc8] sm:$0xff]
      %v587 = vld [vmem:[%s169 + $0xcd0] sm:$0xff]
      %v588 = vld [vmem:[%s169 + $0xcd8] sm:$0xff]
      %v589 = vld [vmem:[%s169 + $0xce0] sm:$0xff]
      %v590 = vld [vmem:[%s169 + $0xce8] sm:$0xff]
      %v591 = vld [vmem:[%s169 + $0xcf0] sm:$0xff]
      %v592 = vld [vmem:[%s169 + $0xcf8] sm:$0xff]
      %v593 = vld [vmem:[%s169 + $0xd00] sm:$0xff]
      %v594 = vld [vmem:[%s169 + $0xd08] sm:$0xff]
      %v595 = vld [vmem:[%s169 + $0xd10] sm:$0xff]
      %v596 = vld [vmem:[%s169 + $0xd18] sm:$0xff]
      %v597 = vld [vmem:[%s169 + $0xd20] sm:$0xff]
      %v598 = vld [vmem:[%s169 + $0xd28] sm:$0xff]
      %v599 = vld [vmem:[%s169 + $0xd30] sm:$0xff]
      %v600 = vld [vmem:[%s169 + $0xd38] sm:$0xff]
      %v601 = vld [vmem:[%s169 + $0xd40] sm:$0xff]
      %v602 = vld [vmem:[%s169 + $0xd48] sm:$0xff]
      %v603 = vld [vmem:[%s169 + $0xd50] sm:$0xff]
      %v604 = vld [vmem:[%s169 + $0xd58] sm:$0xff]
      %v605 = vld [vmem:[%s169 + $0xd60] sm:$0xff]
      %v606 = vld [vmem:[%s169 + $0xd68] sm:$0xff]
      %v607 = vld [vmem:[%s169 + $0xd70] sm:$0xff]
      %v608 = vld [vmem:[%s169 + $0xd78] sm:$0xff]
      %v609 = vld [vmem:[%s1] sm:$0xff]
      %v610 = vld [vmem:[%s1 + $0x8] sm:$0xff]
      %v611 = vld [vmem:[%s1 + $0x10] sm:$0xff]
      %v612 = vld [vmem:[%s1 + $0x18] sm:$0xff]
      %v613 = vld [vmem:[%s1 + $0x20] sm:$0xff]
      %v614 = vld [vmem:[%s1 + $0x28] sm:$0xff]
      %v615 = vld [vmem:[%s1 + $0x30] sm:$0xff]
      %v616 = vld [vmem:[%s1 + $0x38] sm:$0xff]
      %v617 = vld [vmem:[%s1 + $0x40] sm:$0xff]
      %v618 = vld [vmem:[%s1 + $0x48] sm:$0xff]
      %v619 = vld [vmem:[%s1 + $0x50] sm:$0xff]
      %v620 = vld [vmem:[%s1 + $0x58] sm:$0xff]
      %v621 = vld [vmem:[%s1 + $0x60] sm:$0xff]
      %v622 = vld [vmem:[%s1 + $0x68] sm:$0xff]
      %v623 = vld [vmem:[%s1 + $0x70] sm:$0xff]
      %v624 = vld [vmem:[%s1 + $0x78] sm:$0xff]
      %v625 = vld [vmem:[%s1 + $0x80] sm:$0xff]
      %v626 = vld [vmem:[%s1 + $0x88] sm:$0xff]
      %v627 = vld [vmem:[%s1 + $0x90] sm:$0xff]
      %v628 = vld [vmem:[%s1 + $0x98] sm:$0xff]
      %v629 = vld [vmem:[%s1 + $0xa0] sm:$0xff]
      %v630 = vld [vmem:[%s1 + $0xa8] sm:$0xff]
      %v631 = vld [vmem:[%s1 + $0xb0] sm:$0xff]
      %v632 = vld [vmem:[%s1 + $0xb8] sm:$0xff]
      %v633 = vld [vmem:[%s1 + $0xc0] sm:$0xff]
      %v634 = vld [vmem:[%s1 + $0xc8] sm:$0xff]
      %v635 = vld [vmem:[%s1 + $0xd0] sm:$0xff]
      %v636 = vld [vmem:[%s1 + $0xd8] sm:$0xff]
      %v637 = vld [vmem:[%s1 + $0xe0] sm:$0xff]
      %v638 = vld [vmem:[%s1 + $0xe8] sm:$0xff]
      %v639 = vld [vmem:[%s1 + $0xf0] sm:$0xff]
      %v640 = vld [vmem:[%s1 + $0xf8] sm:$0xff]
      %v641 = vld [vmem:[%s1 + $0x100] sm:$0xff]
      %v642 = vld [vmem:[%s1 + $0x108] sm:$0xff]
      %v643 = vld [vmem:[%s1 + $0x110] sm:$0xff]
      %v644 = vld [vmem:[%s1 + $0x118] sm:$0xff]
      %v645 = vld [vmem:[%s1 + $0x120] sm:$0xff]
      %v646 = vld [vmem:[%s1 + $0x128] sm:$0xff]
      %v647 = vld [vmem:[%s1 + $0x130] sm:$0xff]
      %v648 = vld [vmem:[%s1 + $0x138] sm:$0xff]
      %v649 = vld [vmem:[%s1 + $0x140] sm:$0xff]
      %v650 = vld [vmem:[%s1 + $0x148] sm:$0xff]
      %v651 = vld [vmem:[%s1 + $0x150] sm:$0xff]
      %v652 = vld [vmem:[%s1 + $0x158] sm:$0xff]
      %v653 = vld [vmem:[%s1 + $0x160] sm:$0xff]
      %v654 = vld [vmem:[%s1 + $0x168] sm:$0xff]
      %v655 = vld [vmem:[%s1 + $0x170] sm:$0xff]
      %v656 = vld [vmem:[%s1 + $0x178] sm:$0xff]
      %v657 = vld [vmem:[%s1 + $0x180] sm:$0xff]
      %v658 = vld [vmem:[%s1 + $0x188] sm:$0xff]
      %v659 = vld [vmem:[%s1 + $0x190] sm:$0xff]
      %v660 = vld [vmem:[%s1 + $0x198] sm:$0xff]
      %v661 = vld [vmem:[%s1 + $0x1a0] sm:$0xff]
      %v662 = vld [vmem:[%s1 + $0x1a8] sm:$0xff]
      %v663 = vld [vmem:[%s1 + $0x1b0] sm:$0xff]
      %v664 = vld [vmem:[%s1 + $0x1b8] sm:$0xff]
      %v665 = vld [vmem:[%s1 + $0x1c0] sm:$0xff]
      %v666 = vld [vmem:[%s1 + $0x1c8] sm:$0xff]
      %v667 = vld [vmem:[%s1 + $0x1d0] sm:$0xff]
      %v668 = vld [vmem:[%s1 + $0x1d8] sm:$0xff]
      %v669 = vld [vmem:[%s1 + $0x1e0] sm:$0xff]
      %v670 = vld [vmem:[%s1 + $0x1e8] sm:$0xff]
      %v671 = vld [vmem:[%s1 + $0x1f0] sm:$0xff]
      %v672 = vld [vmem:[%s1 + $0x1f8] sm:$0xff]
      %v673 = vld [vmem:[%s1 + $0x200] sm:$0xff]
      %v674 = vld [vmem:[%s1 + $0x208] sm:$0xff]
      %v675 = vld [vmem:[%s1 + $0x210] sm:$0xff]
      %v676 = vld [vmem:[%s1 + $0x218] sm:$0xff]
      %v677 = vld [vmem:[%s1 + $0x220] sm:$0xff]
      %v678 = vld [vmem:[%s1 + $0x228] sm:$0xff]
      %v679 = vld [vmem:[%s1 + $0x230] sm:$0xff]
      %v680 = vld [vmem:[%s1 + $0x238] sm:$0xff]
      %v681 = vld [vmem:[%s1 + $0x240] sm:$0xff]
      %v682 = vld [vmem:[%s1 + $0x248] sm:$0xff]
      %v683 = vld [vmem:[%s1 + $0x250] sm:$0xff]
      %v684 = vld [vmem:[%s1 + $0x258] sm:$0xff]
      %v685 = vld [vmem:[%s1 + $0x260] sm:$0xff]
      %v686 = vld [vmem:[%s1 + $0x268] sm:$0xff]
      %v687 = vld [vmem:[%s1 + $0x270] sm:$0xff]
      %v688 = vld [vmem:[%s1 + $0x278] sm:$0xff]
      %v689 = vld [vmem:[%s1 + $0x280] sm:$0xff]
      %v690 = vld [vmem:[%s1 + $0x288] sm:$0xff]
      %v691 = vld [vmem:[%s1 + $0x290] sm:$0xff]
      %v692 = vld [vmem:[%s1 + $0x298] sm:$0xff]
      %v693 = vld [vmem:[%s1 + $0x2a0] sm:$0xff]
      %v694 = vld [vmem:[%s1 + $0x2a8] sm:$0xff]
      %v695 = vld [vmem:[%s1 + $0x2b0] sm:$0xff]
      %v696 = vld [vmem:[%s1 + $0x2b8] sm:$0xff]
      %v697 = vld [vmem:[%s1 + $0x2c0] sm:$0xff]
      %v698 = vld [vmem:[%s1 + $0x2c8] sm:$0xff]
      %v699 = vld [vmem:[%s1 + $0x2d0] sm:$0xff]
      %v700 = vld [vmem:[%s1 + $0x2d8] sm:$0xff]
      %v701 = vld [vmem:[%s1 + $0x2e0] sm:$0xff]
      %v702 = vld [vmem:[%s1 + $0x2e8] sm:$0xff]
      %v703 = vld [vmem:[%s1 + $0x2f0] sm:$0xff]
      %v704 = vld [vmem:[%s1 + $0x2f8] sm:$0xff]
      %v705 = vld [vmem:[%s1 + $0x300] sm:$0xff]
      %v706 = vld [vmem:[%s1 + $0x308] sm:$0xff]
      %v707 = vld [vmem:[%s1 + $0x310] sm:$0xff]
      %v708 = vld [vmem:[%s1 + $0x318] sm:$0xff]
      %v709 = vld [vmem:[%s1 + $0x320] sm:$0xff]
      %v710 = vld [vmem:[%s1 + $0x328] sm:$0xff]
      %v711 = vld [vmem:[%s1 + $0x330] sm:$0xff]
      %v712 = vld [vmem:[%s1 + $0x338] sm:$0xff]
      %v713 = vld [vmem:[%s1 + $0x340] sm:$0xff]
      %v714 = vld [vmem:[%s1 + $0x348] sm:$0xff]
      %v715 = vld [vmem:[%s1 + $0x350] sm:$0xff]
      %v716 = vld [vmem:[%s1 + $0x358] sm:$0xff]
      %v717 = vld [vmem:[%s1 + $0x360] sm:$0xff]
      %v718 = vld [vmem:[%s1 + $0x368] sm:$0xff]
      %v719 = vld [vmem:[%s1 + $0x370] sm:$0xff]
      %v720 = vld [vmem:[%s1 + $0x378] sm:$0xff]
      %v721 = vld [vmem:[%s1 + $0x380] sm:$0xff]
      %v722 = vld [vmem:[%s1 + $0x388] sm:$0xff]
      %v723 = vld [vmem:[%s1 + $0x390] sm:$0xff]
      %v724 = vld [vmem:[%s1 + $0x398] sm:$0xff]
      %v725 = vld [vmem:[%s1 + $0x3a0] sm:$0xff]
      %v726 = vld [vmem:[%s1 + $0x3a8] sm:$0xff]
      %v727 = vld [vmem:[%s1 + $0x3b0] sm:$0xff]
      %v728 = vld [vmem:[%s1 + $0x3b8] sm:$0xff]
      %v729 = vld [vmem:[%s1 + $0x3c0] sm:$0xff]
      %v730 = vld [vmem:[%s1 + $0x3c8] sm:$0xff]
      %v731 = vld [vmem:[%s1 + $0x3d0] sm:$0xff]
      %v732 = vld [vmem:[%s1 + $0x3d8] sm:$0xff]
      %v733 = vld [vmem:[%s1 + $0x3e0] sm:$0xff]
      %v734 = vld [vmem:[%s1 + $0x3e8] sm:$0xff]
      %v735 = vld [vmem:[%s1 + $0x3f0] sm:$0xff]
      %v736 = vld [vmem:[%s1 + $0x3f8] sm:$0xff]
      %v737 = vld [vmem:[%s1 + $0x400] sm:$0xff]
      %v738 = vld [vmem:[%s1 + $0x408] sm:$0xff]
      %v739 = vld [vmem:[%s1 + $0x410] sm:$0xff]
      %v740 = vld [vmem:[%s1 + $0x418] sm:$0xff]
      %v741 = vld [vmem:[%s1 + $0x420] sm:$0xff]
      %v742 = vld [vmem:[%s1 + $0x428] sm:$0xff]
      %v743 = vld [vmem:[%s1 + $0x430] sm:$0xff]
      %v744 = vld [vmem:[%s1 + $0x438] sm:$0xff]
      %v745 = vld [vmem:[%s1 + $0x440] sm:$0xff]
      %v746 = vld [vmem:[%s1 + $0x448] sm:$0xff]
      %v747 = vld [vmem:[%s1 + $0x450] sm:$0xff]
      %v748 = vld [vmem:[%s1 + $0x458] sm:$0xff]
      %v749 = vld [vmem:[%s1 + $0x460] sm:$0xff]
      %v750 = vld [vmem:[%s1 + $0x468] sm:$0xff]
      %v751 = vld [vmem:[%s1 + $0x470] sm:$0xff]
      %v752 = vld [vmem:[%s1 + $0x478] sm:$0xff]
      %v753 = vld [vmem:[%s1 + $0x480] sm:$0xff]
      %v754 = vld [vmem:[%s1 + $0x488] sm:$0xff]
      %v755 = vld [vmem:[%s1 + $0x490] sm:$0xff]
      %v756 = vld [vmem:[%s1 + $0x498] sm:$0xff]
      %v757 = vld [vmem:[%s1 + $0x4a0] sm:$0xff]
      %v758 = vld [vmem:[%s1 + $0x4a8] sm:$0xff]
      %v759 = vld [vmem:[%s1 + $0x4b0] sm:$0xff]
      %v760 = vld [vmem:[%s1 + $0x4b8] sm:$0xff]
      %v761 = vld [vmem:[%s1 + $0x4c0] sm:$0xff]
      %v762 = vld [vmem:[%s1 + $0x4c8] sm:$0xff]
      %v763 = vld [vmem:[%s1 + $0x4d0] sm:$0xff]
      %v764 = vld [vmem:[%s1 + $0x4d8] sm:$0xff]
      %v765 = vld [vmem:[%s1 + $0x4e0] sm:$0xff]
      %v766 = vld [vmem:[%s1 + $0x4e8] sm:$0xff]
      %v767 = vld [vmem:[%s1 + $0x4f0] sm:$0xff]
      %v768 = vld [vmem:[%s1 + $0x4f8] sm:$0xff]
      %v769 = vld [vmem:[%s1 + $0x500] sm:$0xff]
      %v770 = vld [vmem:[%s1 + $0x508] sm:$0xff]
      %v771 = vld [vmem:[%s1 + $0x510] sm:$0xff]
      %v772 = vld [vmem:[%s1 + $0x518] sm:$0xff]
      %v773 = vld [vmem:[%s1 + $0x520] sm:$0xff]
      %v774 = vld [vmem:[%s1 + $0x528] sm:$0xff]
      %v775 = vld [vmem:[%s1 + $0x530] sm:$0xff]
      %v776 = vld [vmem:[%s1 + $0x538] sm:$0xff]
      %v777 = vld [vmem:[%s1 + $0x540] sm:$0xff]
      %v778 = vld [vmem:[%s1 + $0x548] sm:$0xff]
      %v779 = vld [vmem:[%s1 + $0x550] sm:$0xff]
      %v780 = vld [vmem:[%s1 + $0x558] sm:$0xff]
      %v781 = vld [vmem:[%s1 + $0x560] sm:$0xff]
      %v782 = vld [vmem:[%s1 + $0x568] sm:$0xff]
      %v783 = vld [vmem:[%s1 + $0x570] sm:$0xff]
      %v784 = vld [vmem:[%s1 + $0x578] sm:$0xff]
      %v785 = vld [vmem:[%s1 + $0x580] sm:$0xff]
      %v786 = vld [vmem:[%s1 + $0x588] sm:$0xff]
      %v787 = vld [vmem:[%s1 + $0x590] sm:$0xff]
      %v788 = vld [vmem:[%s1 + $0x598] sm:$0xff]
      %v789 = vld [vmem:[%s1 + $0x5a0] sm:$0xff]
      %v790 = vld [vmem:[%s1 + $0x5a8] sm:$0xff]
      %v791 = vld [vmem:[%s1 + $0x5b0] sm:$0xff]
      %v792 = vld [vmem:[%s1 + $0x5b8] sm:$0xff]
      %v793 = vld [vmem:[%s1 + $0x5c0] sm:$0xff]
      %v794 = vld [vmem:[%s1 + $0x5c8] sm:$0xff]
      %v795 = vld [vmem:[%s1 + $0x5d0] sm:$0xff]
      %v796 = vld [vmem:[%s1 + $0x5d8] sm:$0xff]
      %v797 = vld [vmem:[%s1 + $0x5e0] sm:$0xff]
      %v798 = vld [vmem:[%s1 + $0x5e8] sm:$0xff]
      %v799 = vld [vmem:[%s1 + $0x5f0] sm:$0xff]
      %v800 = vld [vmem:[%s1 + $0x5f8] sm:$0xff]
      %v801 = vld [vmem:[%s1 + $0x600] sm:$0xff]
      %v802 = vld [vmem:[%s1 + $0x608] sm:$0xff]
      %v803 = vld [vmem:[%s1 + $0x610] sm:$0xff]
      %v804 = vld [vmem:[%s1 + $0x618] sm:$0xff]
      %v805 = vld [vmem:[%s1 + $0x620] sm:$0xff]
      %v806 = vld [vmem:[%s1 + $0x628] sm:$0xff]
      %v807 = vld [vmem:[%s1 + $0x630] sm:$0xff]
      %v808 = vld [vmem:[%s1 + $0x638] sm:$0xff]
      %v809 = vld [vmem:[%s1 + $0x640] sm:$0xff]
      %v810 = vld [vmem:[%s1 + $0x648] sm:$0xff]
      %v811 = vld [vmem:[%s1 + $0x650] sm:$0xff]
      %v812 = vld [vmem:[%s1 + $0x658] sm:$0xff]
      %v813 = vld [vmem:[%s1 + $0x660] sm:$0xff]
      %v814 = vld [vmem:[%s1 + $0x668] sm:$0xff]
      %v815 = vld [vmem:[%s1 + $0x670] sm:$0xff]
      %v816 = vld [vmem:[%s1 + $0x678] sm:$0xff]
      %v817 = vld [vmem:[%s1 + $0x680] sm:$0xff]
      %v818 = vld [vmem:[%s1 + $0x688] sm:$0xff]
      %v819 = vld [vmem:[%s1 + $0x690] sm:$0xff]
      %v820 = vld [vmem:[%s1 + $0x698] sm:$0xff]
      %v821 = vld [vmem:[%s1 + $0x6a0] sm:$0xff]
      %v822 = vld [vmem:[%s1 + $0x6a8] sm:$0xff]
      %v823 = vld [vmem:[%s1 + $0x6b0] sm:$0xff]
      %v824 = vld [vmem:[%s1 + $0x6b8] sm:$0xff]
      %v825 = vld [vmem:[%s1 + $0x6c0] sm:$0xff]
      %v826 = vld [vmem:[%s1 + $0x6c8] sm:$0xff]
      %v827 = vld [vmem:[%s1 + $0x6d0] sm:$0xff]
      %v828 = vld [vmem:[%s1 + $0x6d8] sm:$0xff]
      %v829 = vld [vmem:[%s1 + $0x6e0] sm:$0xff]
      %v830 = vld [vmem:[%s1 + $0x6e8] sm:$0xff]
      %v831 = vld [vmem:[%s1 + $0x6f0] sm:$0xff]
      %v832 = vld [vmem:[%s1 + $0x6f8] sm:$0xff]
      %v833 = vld [vmem:[%s1 + $0x700] sm:$0xff]
      %v834 = vld [vmem:[%s1 + $0x708] sm:$0xff]
      %v835 = vld [vmem:[%s1 + $0x710] sm:$0xff]
      %v836 = vld [vmem:[%s1 + $0x718] sm:$0xff]
      %v837 = vld [vmem:[%s1 + $0x720] sm:$0xff]
      %v838 = vld [vmem:[%s1 + $0x728] sm:$0xff]
      %v839 = vld [vmem:[%s1 + $0x730] sm:$0xff]
      %v840 = vld [vmem:[%s1 + $0x738] sm:$0xff]
      %v841 = vld [vmem:[%s1 + $0x740] sm:$0xff]
      %v842 = vld [vmem:[%s1 + $0x748] sm:$0xff]
      %v843 = vld [vmem:[%s1 + $0x750] sm:$0xff]
      %v844 = vld [vmem:[%s1 + $0x758] sm:$0xff]
      %v845 = vld [vmem:[%s1 + $0x760] sm:$0xff]
      %v846 = vld [vmem:[%s1 + $0x768] sm:$0xff]
      %v847 = vld [vmem:[%s1 + $0x770] sm:$0xff]
      %v848 = vld [vmem:[%s1 + $0x778] sm:$0xff]
      %v849 = vld [vmem:[%s1 + $0x780] sm:$0xff]
      %v850 = vld [vmem:[%s1 + $0x788] sm:$0xff]
      %v851 = vld [vmem:[%s1 + $0x790] sm:$0xff]
      %v852 = vld [vmem:[%s1 + $0x798] sm:$0xff]
      %v853 = vld [vmem:[%s1 + $0x7a0] sm:$0xff]
      %v854 = vld [vmem:[%s1 + $0x7a8] sm:$0xff]
      %v855 = vld [vmem:[%s1 + $0x7b0] sm:$0xff]
      %v856 = vld [vmem:[%s1 + $0x7b8] sm:$0xff]
      %v857 = vld [vmem:[%s1 + $0x7c0] sm:$0xff]
      %v858 = vld [vmem:[%s1 + $0x7c8] sm:$0xff]
      %v859 = vld [vmem:[%s1 + $0x7d0] sm:$0xff]
      %v860 = vld [vmem:[%s1 + $0x7d8] sm:$0xff]
      %v861 = vld [vmem:[%s1 + $0x7e0] sm:$0xff]
      %v862 = vld [vmem:[%s1 + $0x7e8] sm:$0xff]
      %v863 = vld [vmem:[%s1 + $0x7f0] sm:$0xff]
      %v864 = vld [vmem:[%s1 + $0x7f8] sm:$0xff]
      %v865 = vld [vmem:[%s1 + $0x800] sm:$0xff]
      %v866 = vld [vmem:[%s1 + $0x808] sm:$0xff]
      %v867 = vld [vmem:[%s1 + $0x810] sm:$0xff]
      %v868 = vld [vmem:[%s1 + $0x818] sm:$0xff]
      %v869 = vld [vmem:[%s1 + $0x820] sm:$0xff]
      %v870 = vld [vmem:[%s1 + $0x828] sm:$0xff]
      %v871 = vld [vmem:[%s1 + $0x830] sm:$0xff]
      %v872 = vld [vmem:[%s1 + $0x838] sm:$0xff]
      %v873 = vld [vmem:[%s1 + $0x840] sm:$0xff]
      %v874 = vld [vmem:[%s1 + $0x848] sm:$0xff]
      %v875 = vld [vmem:[%s1 + $0x850] sm:$0xff]
      %v876 = vld [vmem:[%s1 + $0x858] sm:$0xff]
      %v877 = vld [vmem:[%s1 + $0x860] sm:$0xff]
      %v878 = vld [vmem:[%s1 + $0x868] sm:$0xff]
      %v879 = vld [vmem:[%s1 + $0x870] sm:$0xff]
      %v880 = vld [vmem:[%s1 + $0x878] sm:$0xff]
      %v881 = vld [vmem:[%s1 + $0x880] sm:$0xff]
      %v882 = vld [vmem:[%s1 + $0x888] sm:$0xff]
      %v883 = vld [vmem:[%s1 + $0x890] sm:$0xff]
      %v884 = vld [vmem:[%s1 + $0x898] sm:$0xff]
      %v885 = vld [vmem:[%s1 + $0x8a0] sm:$0xff]
      %v886 = vld [vmem:[%s1 + $0x8a8] sm:$0xff]
      %v887 = vld [vmem:[%s1 + $0x8b0] sm:$0xff]
      %v888 = vld [vmem:[%s1 + $0x8b8] sm:$0xff]
      %v889 = vld [vmem:[%s1 + $0x8c0] sm:$0xff]
      %v890 = vld [vmem:[%s1 + $0x8c8] sm:$0xff]
      %v891 = vld [vmem:[%s1 + $0x8d0] sm:$0xff]
      %v892 = vld [vmem:[%s1 + $0x8d8] sm:$0xff]
      %v893 = vld [vmem:[%s1 + $0x8e0] sm:$0xff]
      %v894 = vld [vmem:[%s1 + $0x8e8] sm:$0xff]
      %v895 = vld [vmem:[%s1 + $0x8f0] sm:$0xff]
      %v896 = vld [vmem:[%s1 + $0x8f8] sm:$0xff]
      %v897 = vld [vmem:[%s1 + $0x900] sm:$0xff]
      %v898 = vld [vmem:[%s1 + $0x908] sm:$0xff]
      %v899 = vld [vmem:[%s1 + $0x910] sm:$0xff]
      %v900 = vld [vmem:[%s1 + $0x918] sm:$0xff]
      %v901 = vld [vmem:[%s1 + $0x920] sm:$0xff]
      %v902 = vld [vmem:[%s1 + $0x928] sm:$0xff]
      %v903 = vld [vmem:[%s1 + $0x930] sm:$0xff]
      %v904 = vld [vmem:[%s1 + $0x938] sm:$0xff]
      %v905 = vld [vmem:[%s1 + $0x940] sm:$0xff]
      %v906 = vld [vmem:[%s1 + $0x948] sm:$0xff]
      %v907 = vld [vmem:[%s1 + $0x950] sm:$0xff]
      %v908 = vld [vmem:[%s1 + $0x958] sm:$0xff]
      %v909 = vld [vmem:[%s1 + $0x960] sm:$0xff]
      %v910 = vld [vmem:[%s1 + $0x968] sm:$0xff]
      %v911 = vld [vmem:[%s1 + $0x970] sm:$0xff]
      %v912 = vld [vmem:[%s1 + $0x978] sm:$0xff]
      %v913 = vld [vmem:[%s1 + $0x980] sm:$0xff]
      %v914 = vld [vmem:[%s1 + $0x988] sm:$0xff]
      %v915 = vld [vmem:[%s1 + $0x990] sm:$0xff]
      %v916 = vld [vmem:[%s1 + $0x998] sm:$0xff]
      %v917 = vld [vmem:[%s1 + $0x9a0] sm:$0xff]
      %v918 = vld [vmem:[%s1 + $0x9a8] sm:$0xff]
      %v919 = vld [vmem:[%s1 + $0x9b0] sm:$0xff]
      %v920 = vld [vmem:[%s1 + $0x9b8] sm:$0xff]
      %v921 = vld [vmem:[%s1 + $0x9c0] sm:$0xff]
      %v922 = vld [vmem:[%s1 + $0x9c8] sm:$0xff]
      %v923 = vld [vmem:[%s1 + $0x9d0] sm:$0xff]
      %v924 = vld [vmem:[%s1 + $0x9d8] sm:$0xff]
      %v925 = vld [vmem:[%s1 + $0x9e0] sm:$0xff]
      %v926 = vld [vmem:[%s1 + $0x9e8] sm:$0xff]
      %v927 = vld [vmem:[%s1 + $0x9f0] sm:$0xff]
      %v928 = vld [vmem:[%s1 + $0x9f8] sm:$0xff]
      %v929 = vld [vmem:[%s1 + $0xa00] sm:$0xff]
      %v930 = vld [vmem:[%s1 + $0xa08] sm:$0xff]
      %v931 = vld [vmem:[%s1 + $0xa10] sm:$0xff]
      %v932 = vld [vmem:[%s1 + $0xa18] sm:$0xff]
      %v933 = vld [vmem:[%s1 + $0xa20] sm:$0xff]
      %v934 = vld [vmem:[%s1 + $0xa28] sm:$0xff]
      %v935 = vld [vmem:[%s1 + $0xa30] sm:$0xff]
      %v936 = vld [vmem:[%s1 + $0xa38] sm:$0xff]
      %v937 = vld [vmem:[%s1 + $0xa40] sm:$0xff]
      %v938 = vld [vmem:[%s1 + $0xa48] sm:$0xff]
      %v939 = vld [vmem:[%s1 + $0xa50] sm:$0xff]
      %v940 = vld [vmem:[%s1 + $0xa58] sm:$0xff]
      %v941 = vld [vmem:[%s1 + $0xa60] sm:$0xff]
      %v942 = vld [vmem:[%s1 + $0xa68] sm:$0xff]
      %v943 = vld [vmem:[%s1 + $0xa70] sm:$0xff]
      %v944 = vld [vmem:[%s1 + $0xa78] sm:$0xff]
      %v945 = vld [vmem:[%s1 + $0xa80] sm:$0xff]
      %v946 = vld [vmem:[%s1 + $0xa88] sm:$0xff]
      %v947 = vld [vmem:[%s1 + $0xa90] sm:$0xff]
      %v948 = vld [vmem:[%s1 + $0xa98] sm:$0xff]
      %v949 = vld [vmem:[%s1 + $0xaa0] sm:$0xff]
      %v950 = vld [vmem:[%s1 + $0xaa8] sm:$0xff]
      %v951 = vld [vmem:[%s1 + $0xab0] sm:$0xff]
      %v952 = vld [vmem:[%s1 + $0xab8] sm:$0xff]
      %v953 = vld [vmem:[%s1 + $0xac0] sm:$0xff]
      %v954 = vld [vmem:[%s1 + $0xac8] sm:$0xff]
      %v955 = vld [vmem:[%s1 + $0xad0] sm:$0xff]
      %v956 = vld [vmem:[%s1 + $0xad8] sm:$0xff]
      %v957 = vld [vmem:[%s1 + $0xae0] sm:$0xff]
      %v958 = vld [vmem:[%s1 + $0xae8] sm:$0xff]
      %v959 = vld [vmem:[%s1 + $0xaf0] sm:$0xff]
      %v960 = vld [vmem:[%s1 + $0xaf8] sm:$0xff]
      %v961 = vld [vmem:[%s1 + $0xb00] sm:$0xff]
      %v962 = vld [vmem:[%s1 + $0xb08] sm:$0xff]
      %v963 = vld [vmem:[%s1 + $0xb10] sm:$0xff]
      %v964 = vld [vmem:[%s1 + $0xb18] sm:$0xff]
      %v965 = vld [vmem:[%s1 + $0xb20] sm:$0xff]
      %v966 = vld [vmem:[%s1 + $0xb28] sm:$0xff]
      %v967 = vld [vmem:[%s1 + $0xb30] sm:$0xff]
      %v968 = vld [vmem:[%s1 + $0xb38] sm:$0xff]
      %v969 = vld [vmem:[%s1 + $0xb40] sm:$0xff]
      %v970 = vld [vmem:[%s1 + $0xb48] sm:$0xff]
      %v971 = vld [vmem:[%s1 + $0xb50] sm:$0xff]
      %v972 = vld [vmem:[%s1 + $0xb58] sm:$0xff]
      %v973 = vld [vmem:[%s1 + $0xb60] sm:$0xff]
      %v974 = vld [vmem:[%s1 + $0xb68] sm:$0xff]
      %v975 = vld [vmem:[%s1 + $0xb70] sm:$0xff]
      %v976 = vld [vmem:[%s1 + $0xb78] sm:$0xff]
      %v977 = vld [vmem:[%s1 + $0xb80] sm:$0xff]
      %v978 = vld [vmem:[%s1 + $0xb88] sm:$0xff]
      %v979 = vld [vmem:[%s1 + $0xb90] sm:$0xff]
      %v980 = vld [vmem:[%s1 + $0xb98] sm:$0xff]
      %v981 = vld [vmem:[%s1 + $0xba0] sm:$0xff]
      %v982 = vld [vmem:[%s1 + $0xba8] sm:$0xff]
      %v983 = vld [vmem:[%s1 + $0xbb0] sm:$0xff]
      %v984 = vld [vmem:[%s1 + $0xbb8] sm:$0xff]
      %v985 = vld [vmem:[%s1 + $0xbc0] sm:$0xff]
      %v986 = vld [vmem:[%s1 + $0xbc8] sm:$0xff]
      %v987 = vld [vmem:[%s1 + $0xbd0] sm:$0xff]
      %v988 = vld [vmem:[%s1 + $0xbd8] sm:$0xff]
      %v989 = vld [vmem:[%s1 + $0xbe0] sm:$0xff]
      %v990 = vld [vmem:[%s1 + $0xbe8] sm:$0xff]
      %v991 = vld [vmem:[%s1 + $0xbf0] sm:$0xff]
      %v992 = vld [vmem:[%s1 + $0xbf8] sm:$0xff]
      %v993 = vld [vmem:[%s1 + $0xc00] sm:$0xff]
      %v994 = vld [vmem:[%s1 + $0xc08] sm:$0xff]
      %v995 = vld [vmem:[%s1 + $0xc10] sm:$0xff]
      %v996 = vld [vmem:[%s1 + $0xc18] sm:$0xff]
      %v997 = vld [vmem:[%s1 + $0xc20] sm:$0xff]
      %v998 = vld [vmem:[%s1 + $0xc28] sm:$0xff]
      %v999 = vld [vmem:[%s1 + $0xc30] sm:$0xff]
      %v1000 = vld [vmem:[%s1 + $0xc38] sm:$0xff]
      %v1001 = vld [vmem:[%s1 + $0xc40] sm:$0xff]
      %v1002 = vld [vmem:[%s1 + $0xc48] sm:$0xff]
      %v1003 = vld [vmem:[%s1 + $0xc50] sm:$0xff]
      %v1004 = vld [vmem:[%s1 + $0xc58] sm:$0xff]
      %v1005 = vld [vmem:[%s1 + $0xc60] sm:$0xff]
      %v1006 = vld [vmem:[%s1 + $0xc68] sm:$0xff]
      %v1007 = vld [vmem:[%s1 + $0xc70] sm:$0xff]
      %v1008 = vld [vmem:[%s1 + $0xc78] sm:$0xff]
      %v1009 = vld [vmem:[%s1 + $0xc80] sm:$0xff]
      %v1010 = vld [vmem:[%s1 + $0xc88] sm:$0xff]
      %v1011 = vld [vmem:[%s1 + $0xc90] sm:$0xff]
      %v1012 = vld [vmem:[%s1 + $0xc98] sm:$0xff]
      %v1013 = vld [vmem:[%s1 + $0xca0] sm:$0xff]
      %v1014 = vld [vmem:[%s1 + $0xca8] sm:$0xff]
      %v1015 = vld [vmem:[%s1 + $0xcb0] sm:$0xff]
      %v1016 = vld [vmem:[%s1 + $0xcb8] sm:$0xff]
      %v1017 = vld [vmem:[%s1 + $0xcc0] sm:$0xff]
      %v1018 = vld [vmem:[%s1 + $0xcc8] sm:$0xff]
      %v1019 = vld [vmem:[%s1 + $0xcd0] sm:$0xff]
      %v1020 = vld [vmem:[%s1 + $0xcd8] sm:$0xff]
      %v1021 = vld [vmem:[%s1 + $0xce0] sm:$0xff]
      %v1022 = vld [vmem:[%s1 + $0xce8] sm:$0xff]
      %v1023 = vld [vmem:[%s1 + $0xcf0] sm:$0xff]
      %v1024 = vld [vmem:[%s1 + $0xcf8] sm:$0xff]
      %v1025 = vld [vmem:[%s1 + $0xd00] sm:$0xff]
      %v1026 = vld [vmem:[%s1 + $0xd08] sm:$0xff]
      %v1027 = vld [vmem:[%s1 + $0xd10] sm:$0xff]
      %v1028 = vld [vmem:[%s1 + $0xd18] sm:$0xff]
      %v1029 = vld [vmem:[%s1 + $0xd20] sm:$0xff]
      %v1030 = vld [vmem:[%s1 + $0xd28] sm:$0xff]
      %v1031 = vld [vmem:[%s1 + $0xd30] sm:$0xff]
      %v1032 = vld [vmem:[%s1 + $0xd38] sm:$0xff]
      %v1033 = vld [vmem:[%s1 + $0xd40] sm:$0xff]
      %v1034 = vld [vmem:[%s1 + $0xd48] sm:$0xff]
      %v1035 = vld [vmem:[%s1 + $0xd50] sm:$0xff]
      %v1036 = vld [vmem:[%s1 + $0xd58] sm:$0xff]
      %v1037 = vld [vmem:[%s1 + $0xd60] sm:$0xff]
      %v1038 = vld [vmem:[%s1 + $0xd68] sm:$0xff]
      %v1039 = vld [vmem:[%s1 + $0xd70] sm:$0xff]
      %v1040 = vld [vmem:[%s1 + $0xd78] sm:$0xff]
      %v1041 = vld [vmem:[%s2] sm:$0x1]
      %v1043 = vlaneseq
      %v1044 = vshrl.u32 %v1043, 7
      %v1045 = vsub.s32 0, %v1044
      %v1046 = vrot.slane %v1041, %v1045
      %1048 = vmatprep.subr.mxu0 0.0
      %1049 = vmatpush1.msra.mxu0 %v609
      %1050 = vmatprep.subr.mxu0 0.0
      %1051 = vmatpush1.msra.mxu0 %v610
      %1052 = vmatprep.subr.mxu0 0.0
      %1053 = vmatpush1.msra.mxu0 %v611
      %1054 = vmatprep.subr.mxu0 0.0
      %1055 = vmatpush1.msra.mxu0 %v612
      %1056 = vmatprep.subr.mxu0 0.0
      %1057 = vmatpush1.msra.mxu0 %v613
      %1058 = vmatprep.subr.mxu0 0.0
      %1059 = vmatpush1.msra.mxu0 %v614
      %1060 = vmatprep.subr.mxu0 0.0
      %1061 = vmatpush1.msra.mxu0 %v615
      %1062 = vmatprep.subr.mxu0 0.0
      %1063 = vmatpush1.msra.mxu0 %v616
      %1064 = vmatprep.subr.mxu0 0.0
      %1065 = vmatpush1.msra.mxu0 %v617
      %1066 = vmatprep.subr.mxu0 0.0
      %1067 = vmatpush1.msra.mxu0 %v618
      %1068 = vmatprep.subr.mxu0 0.0
      %1069 = vmatpush1.msra.mxu0 %v619
      %1070 = vmatprep.subr.mxu0 0.0
      %1071 = vmatpush1.msra.mxu0 %v620
      %1072 = vmatprep.subr.mxu0 0.0
      %1073 = vmatpush1.msra.mxu0 %v621
      %1074 = vmatprep.subr.mxu0 0.0
      %1075 = vmatpush1.msra.mxu0 %v622
      %1076 = vmatprep.subr.mxu0 0.0
      %1077 = vmatpush1.msra.mxu0 %v623
      %1078 = vmatprep.subr.mxu0 0.0
      %1079 = vmatpush1.msra.mxu0 %v624
      %1080 = vmatprep.subr.mxu0 0.0
      %1081 = vmatpush1.msra.mxu0 %v625
      %1082 = vmatprep.subr.mxu0 0.0
      %1083 = vmatpush1.msra.mxu0 %v626
      %1084 = vmatprep.subr.mxu0 0.0
      %1085 = vmatpush1.msra.mxu0 %v627
      %1086 = vmatprep.subr.mxu0 0.0
      %1087 = vmatpush1.msra.mxu0 %v628
      %1088 = vmatprep.subr.mxu0 0.0
      %1089 = vmatpush1.msra.mxu0 %v629
      %1090 = vmatprep.subr.mxu0 0.0
      %1091 = vmatpush1.msra.mxu0 %v630
      %1092 = vmatprep.subr.mxu0 0.0
      %1093 = vmatpush1.msra.mxu0 %v631
      %1094 = vmatprep.subr.mxu0 0.0
      %1095 = vmatpush1.msra.mxu0 %v632
      %1096 = vmatprep.subr.mxu0 0.0
      %1097 = vmatpush1.msra.mxu0 %v633
      %1098 = vmatprep.subr.mxu0 0.0
      %1099 = vmatpush1.msra.mxu0 %v634
      %1100 = vmatprep.subr.mxu0 0.0
      %1101 = vmatpush1.msra.mxu0 %v635
      %1102 = vmatprep.subr.mxu0 0.0
      %1103 = vmatpush1.msra.mxu0 %v636
      %1104 = vmatprep.subr.mxu0 0.0
      %1105 = vmatpush1.msra.mxu0 %v637
      %1106 = vmatprep.subr.mxu0 0.0
      %1107 = vmatpush1.msra.mxu0 %v638
      %1108 = vmatprep.subr.mxu0 0.0
      %1109 = vmatpush1.msra.mxu0 %v639
      %1110 = vmatprep.subr.mxu0 0.0
      %1111 = vmatpush1.msra.mxu0 %v640
      %1112 = vmatprep.mubr.f32.mxu0 %v178
      %1113 = vmatmul.mubr.f32.gmra.mrb[0].mxu0 %v177
      %v1114 = vpop.f32.mrb[0].mxu0
      %v1115 = vadd.f32 %v1046, %v1114
      %v1116 = vpop.f32.mrb[0].mxu0
      %1117 = vmatprep.mubr.f32.mxu0 %v205
      %1118 = vmatmul.mubr.f32.gmra.mrb[0].mxu0 %v204
      %v1119 = vpop.f32.mrb[0].mxu0
      %v1120 = vadd.f32 %v1046, %v1119
      %v1121 = vpop.f32.mrb[0].mxu0
      %1122 = vmatprep.mubr.f32.mxu0 %v232
      %1123 = vmatmul.mubr.f32.gmra.mrb[0].mxu0 %v231
      %v1124 = vpop.f32.mrb[0].mxu0
      %v1125 = vadd.f32 %v1046, %v1124
      %v1126 = vpop.f32.mrb[0].mxu0
      %1127 = vmatprep.mubr.f32.mxu0 %v259
      %1128 = vmatmul.mubr.f32.gmra.mrb[0].mxu0 %v258
      %v1129 = vpop.f32.mrb[0].mxu0
      %v1130 = vadd.f32 %v1046, %v1129
      %v1131 = vpop.f32.mrb[0].mxu0
      %1132 = vmatprep.mubr.f32.mxu0 %v286
      %1133 = vmatmul.mubr.f32.gmra.mrb[0].mxu0 %v285
      %v1134 = vpop.f32.mrb[0].mxu0
      %v1135 = vadd.f32 %v1046, %v1134
      %v1136 = vpop.f32.mrb[0].mxu0
      %1137 = vmatprep.mubr.f32.mxu0 %v313
      %1138 = vmatmul.mubr.f32.gmra.mrb[0].mxu0 %v312
      %v1139 = vpop.f32.mrb[0].mxu0
      %v1140 = vadd.f32 %v1046, %v1139
      %v1141 = vpop.f32.mrb[0].mxu0
      %1142 = vmatprep.mubr.f32.mxu0 %v340
      %1143 = vmatmul.mubr.f32.gmra.mrb[0].mxu0 %v339
      %v1144 = vpop.f32.mrb[0].mxu0
      %v1145 = vadd.f32 %v1046, %v1144
      %v1146 = vpop.f32.mrb[0].mxu0
      %1147 = vmatprep.mubr.f32.mxu0 %v367
      %1148 = vmatmul.mubr.f32.gmra.mrb[0].mxu0 %v366
      %v1149 = vpop.f32.mrb[0].mxu0
      %v1150 = vadd.f32 %v1046, %v1149
      %v1151 = vpop.f32.mrb[0].mxu0
      %1152 = vmatprep.mubr.f32.mxu0 %v394
      %1153 = vmatmul.mubr.f32.gmra.mrb[0].mxu0 %v393
      %v1154 = vpop.f32.mrb[0].mxu0
      %v1155 = vadd.f32 %v1046, %v1154
      %v1156 = vpop.f32.mrb[0].mxu0
      %1157 = vmatprep.mubr.f32.mxu0 %v421
      %1158 = vmatmul.mubr.f32.gmra.mrb[0].mxu0 %v420
      %v1159 = vpop.f32.mrb[0].mxu0
      %v1160 = vadd.f32 %v1046, %v1159
      %v1161 = vpop.f32.mrb[0].mxu0
      %1162 = vmatprep.mubr.f32.mxu0 %v448
      %1163 = vmatmul.mubr.f32.gmra.mrb[0].mxu0 %v447
      %v1164 = vpop.f32.mrb[0].mxu0
      %v1165 = vadd.f32 %v1046, %v1164
      %v1166 = vpop.f32.mrb[0].mxu0
      %1167 = vmatprep.mubr.f32.mxu0 %v475
      %1168 = vmatmul.mubr.f32.gmra.mrb[0].mxu0 %v474
      %v1169 = vpop.f32.mrb[0].mxu0
      %v1170 = vadd.f32 %v1046, %v1169
      %v1171 = vpop.f32.mrb[0].mxu0
      %1172 = vmatprep.mubr.f32.mxu0 %v502
      %1173 = vmatmul.mubr.f32.gmra.mrb[0].mxu0 %v501
      %v1174 = vpop.f32.mrb[0].mxu0
      %v1175 = vadd.f32 %v1046, %v1174
      %v1176 = vpop.f32.mrb[0].mxu0
      %1177 = vmatprep.mubr.f32.mxu0 %v529
      %1178 = vmatmul.mubr.f32.gmra.mrb[0].mxu0 %v528
      %v1179 = vpop.f32.mrb[0].mxu0
      %v1180 = vadd.f32 %v1046, %v1179
      %v1181 = vpop.f32.mrb[0].mxu0
      %1182 = vmatprep.mubr.f32.mxu0 %v556
      %1183 = vmatmul.mubr.f32.gmra.mrb[0].mxu0 %v555
      %v1184 = vpop.f32.mrb[0].mxu0
      %v1185 = vadd.f32 %v1046, %v1184
      %v1186 = vpop.f32.mrb[0].mxu0
      %1187 = vmatprep.mubr.f32.mxu0 %v583
      %1188 = vmatmul.mubr.f32.gmra.mrb[0].mxu0 %v582
      %v1189 = vpop.f32.mrb[0].mxu0
      %v1190 = vadd.f32 %v1046, %v1189
      %v1191 = vpop.f32.mrb[0].mxu0
      %1192 = vdwg.mxu0
      %1193 = vmatprep.subr.mxu0 0.0
      %1194 = vmatpush1.msra.mxu0 %v641
      %1195 = vmatprep.subr.mxu0 0.0
      %1196 = vmatpush1.msra.mxu0 %v642
      %1197 = vmatprep.subr.mxu0 0.0
      %1198 = vmatpush1.msra.mxu0 %v643
      %1199 = vmatprep.subr.mxu0 0.0
      %1200 = vmatpush1.msra.mxu0 %v644
      %1201 = vmatprep.subr.mxu0 0.0
      %1202 = vmatpush1.msra.mxu0 %v645
      %1203 = vmatprep.subr.mxu0 0.0
      %1204 = vmatpush1.msra.mxu0 %v646
      %1205 = vmatprep.subr.mxu0 0.0
      %1206 = vmatpush1.msra.mxu0 %v647
      %1207 = vmatprep.subr.mxu0 0.0
      %1208 = vmatpush1.msra.mxu0 %v648
      %1209 = vmatprep.subr.mxu0 0.0
      %1210 = vmatpush1.msra.mxu0 %v649
      %1211 = vmatprep.subr.mxu0 0.0
      %1212 = vmatpush1.msra.mxu0 %v650
      %1213 = vmatprep.subr.mxu0 0.0
      %1214 = vmatpush1.msra.mxu0 %v651
      %1215 = vmatprep.subr.mxu0 0.0
      %1216 = vmatpush1.msra.mxu0 %v652
      %1217 = vmatprep.subr.mxu0 0.0
      %1218 = vmatpush1.msra.mxu0 %v653
      %1219 = vmatprep.subr.mxu0 0.0
      %1220 = vmatpush1.msra.mxu0 %v654
      %1221 = vmatprep.subr.mxu0 0.0
      %1222 = vmatpush1.msra.mxu0 %v655
      %1223 = vmatprep.subr.mxu0 0.0
      %1224 = vmatpush1.msra.mxu0 %v656
      %1225 = vmatprep.subr.mxu0 0.0
      %1226 = vmatpush1.msra.mxu0 %v657
      %1227 = vmatprep.subr.mxu0 0.0
      %1228 = vmatpush1.msra.mxu0 %v658
      %1229 = vmatprep.subr.mxu0 0.0
      %1230 = vmatpush1.msra.mxu0 %v659
      %1231 = vmatprep.subr.mxu0 0.0
      %1232 = vmatpush1.msra.mxu0 %v660
      %1233 = vmatprep.subr.mxu0 0.0
      %1234 = vmatpush1.msra.mxu0 %v661
      %1235 = vmatprep.subr.mxu0 0.0
      %1236 = vmatpush1.msra.mxu0 %v662
      %1237 = vmatprep.subr.mxu0 0.0
      %1238 = vmatpush1.msra.mxu0 %v663
      %1239 = vmatprep.subr.mxu0 0.0
      %1240 = vmatpush1.msra.mxu0 %v664
      %1241 = vmatprep.subr.mxu0 0.0
      %1242 = vmatpush1.msra.mxu0 %v665
      %1243 = vmatprep.subr.mxu0 0.0
      %1244 = vmatpush1.msra.mxu0 %v666
      %1245 = vmatprep.subr.mxu0 0.0
      %1246 = vmatpush1.msra.mxu0 %v667
      %1247 = vmatprep.subr.mxu0 0.0
      %1248 = vmatpush1.msra.mxu0 %v668
      %1249 = vmatprep.subr.mxu0 0.0
      %1250 = vmatpush1.msra.mxu0 %v669
      %1251 = vmatprep.subr.mxu0 0.0
      %1252 = vmatpush1.msra.mxu0 %v670
      %1253 = vmatprep.subr.mxu0 0.0
      %1254 = vmatpush1.msra.mxu0 %v671
      %1255 = vmatprep.subr.mxu0 0.0
      %1256 = vmatpush1.msra.mxu0 %v672
      %1257 = vmatprep.mubr.f32.mxu0 %v180
      %1258 = vmatmul.mubr.f32.gmra.mrb[0].mxu0 %v179
      %v1259 = vpop.f32.mrb[0].mxu0
      %v1260 = vadd.f32 %v1115, %v1259
      %v1261 = vpop.f32.mrb[0].mxu0
      %1262 = vmatprep.mubr.f32.mxu0 %v207
      %1263 = vmatmul.mubr.f32.gmra.mrb[0].mxu0 %v206
      %v1264 = vpop.f32.mrb[0].mxu0
      %v1265 = vadd.f32 %v1120, %v1264
      %v1266 = vpop.f32.mrb[0].mxu0
      %1267 = vmatprep.mubr.f32.mxu0 %v234
      %1268 = vmatmul.mubr.f32.gmra.mrb[0].mxu0 %v233
      %v1269 = vpop.f32.mrb[0].mxu0
      %v1270 = vadd.f32 %v1125, %v1269
      %v1271 = vpop.f32.mrb[0].mxu0
      %1272 = vmatprep.mubr.f32.mxu0 %v261
      %1273 = vmatmul.mubr.f32.gmra.mrb[0].mxu0 %v260
      %v1274 = vpop.f32.mrb[0].mxu0
      %v1275 = vadd.f32 %v1130, %v1274
      %v1276 = vpop.f32.mrb[0].mxu0
      %1277 = vmatprep.mubr.f32.mxu0 %v288
      %1278 = vmatmul.mubr.f32.gmra.mrb[0].mxu0 %v287
      %v1279 = vpop.f32.mrb[0].mxu0
      %v1280 = vadd.f32 %v1135, %v1279
      %v1281 = vpop.f32.mrb[0].mxu0
      %1282 = vmatprep.mubr.f32.mxu0 %v315
      %1283 = vmatmul.mubr.f32.gmra.mrb[0].mxu0 %v314
      %v1284 = vpop.f32.mrb[0].mxu0
      %v1285 = vadd.f32 %v1140, %v1284
      %v1286 = vpop.f32.mrb[0].mxu0
      %1287 = vmatprep.mubr.f32.mxu0 %v342
      %1288 = vmatmul.mubr.f32.gmra.mrb[0].mxu0 %v341
      %v1289 = vpop.f32.mrb[0].mxu0
      %v1290 = vadd.f32 %v1145, %v1289
      %v1291 = vpop.f32.mrb[0].mxu0
      %1292 = vmatprep.mubr.f32.mxu0 %v369
      %1293 = vmatmul.mubr.f32.gmra.mrb[0].mxu0 %v368
      %v1294 = vpop.f32.mrb[0].mxu0
      %v1295 = vadd.f32 %v1150, %v1294
      %v1296 = vpop.f32.mrb[0].mxu0
      %1297 = vmatprep.mubr.f32.mxu0 %v396
      %1298 = vmatmul.mubr.f32.gmra.mrb[0].mxu0 %v395
      %v1299 = vpop.f32.mrb[0].mxu0
      %v1300 = vadd.f32 %v1155, %v1299
      %v1301 = vpop.f32.mrb[0].mxu0
      %1302 = vmatprep.mubr.f32.mxu0 %v423
      %1303 = vmatmul.mubr.f32.gmra.mrb[0].mxu0 %v422
      %v1304 = vpop.f32.mrb[0].mxu0
      %v1305 = vadd.f32 %v1160, %v1304
      %v1306 = vpop.f32.mrb[0].mxu0
      %1307 = vmatprep.mubr.f32.mxu0 %v450
      %1308 = vmatmul.mubr.f32.gmra.mrb[0].mxu0 %v449
      %v1309 = vpop.f32.mrb[0].mxu0
      %v1310 = vadd.f32 %v1165, %v1309
      %v1311 = vpop.f32.mrb[0].mxu0
      %1312 = vmatprep.mubr.f32.mxu0 %v477
      %1313 = vmatmul.mubr.f32.gmra.mrb[0].mxu0 %v476
      %v1314 = vpop.f32.mrb[0].mxu0
      %v1315 = vadd.f32 %v1170, %v1314
      %v1316 = vpop.f32.mrb[0].mxu0
      %1317 = vmatprep.mubr.f32.mxu0 %v504
      %1318 = vmatmul.mubr.f32.gmra.mrb[0].mxu0 %v503
      %v1319 = vpop.f32.mrb[0].mxu0
      %v1320 = vadd.f32 %v1175, %v1319
      %v1321 = vpop.f32.mrb[0].mxu0
      %1322 = vmatprep.mubr.f32.mxu0 %v531
      %1323 = vmatmul.mubr.f32.gmra.mrb[0].mxu0 %v530
      %v1324 = vpop.f32.mrb[0].mxu0
      %v1325 = vadd.f32 %v1180, %v1324
      %v1326 = vpop.f32.mrb[0].mxu0
      %1327 = vmatprep.mubr.f32.mxu0 %v558
      %1328 = vmatmul.mubr.f32.gmra.mrb[0].mxu0 %v557
      %v1329 = vpop.f32.mrb[0].mxu0
      %v1330 = vadd.f32 %v1185, %v1329
      %v1331 = vpop.f32.mrb[0].mxu0
      %1332 = vmatprep.mubr.f32.mxu0 %v585
      %1333 = vmatmul.mubr.f32.gmra.mrb[0].mxu0 %v584
      %v1334 = vpop.f32.mrb[0].mxu0
      %v1335 = vadd.f32 %v1190, %v1334
      %v1336 = vpop.f32.mrb[0].mxu0
      %1337 = vdwg.mxu0
      %1338 = vmatprep.subr.mxu0 0.0
      %1339 = vmatpush1.msra.mxu0 %v673
      %1340 = vmatprep.subr.mxu0 0.0
      %1341 = vmatpush1.msra.mxu0 %v674
      %1342 = vmatprep.subr.mxu0 0.0
      %1343 = vmatpush1.msra.mxu0 %v675
      %1344 = vmatprep.subr.mxu0 0.0
      %1345 = vmatpush1.msra.mxu0 %v676
      %1346 = vmatprep.subr.mxu0 0.0
      %1347 = vmatpush1.msra.mxu0 %v677
      %1348 = vmatprep.subr.mxu0 0.0
      %1349 = vmatpush1.msra.mxu0 %v678
      %1350 = vmatprep.subr.mxu0 0.0
      %1351 = vmatpush1.msra.mxu0 %v679
      %1352 = vmatprep.subr.mxu0 0.0
      %1353 = vmatpush1.msra.mxu0 %v680
      %1354 = vmatprep.subr.mxu0 0.0
      %1355 = vmatpush1.msra.mxu0 %v681
      %1356 = vmatprep.subr.mxu0 0.0
      %1357 = vmatpush1.msra.mxu0 %v682
      %1358 = vmatprep.subr.mxu0 0.0
      %1359 = vmatpush1.msra.mxu0 %v683
      %1360 = vmatprep.subr.mxu0 0.0
      %1361 = vmatpush1.msra.mxu0 %v684
      %1362 = vmatprep.subr.mxu0 0.0
      %1363 = vmatpush1.msra.mxu0 %v685
      %1364 = vmatprep.subr.mxu0 0.0
      %1365 = vmatpush1.msra.mxu0 %v686
      %1366 = vmatprep.subr.mxu0 0.0
      %1367 = vmatpush1.msra.mxu0 %v687
      %1368 = vmatprep.subr.mxu0 0.0
      %1369 = vmatpush1.msra.mxu0 %v688
      %1370 = vmatprep.subr.mxu0 0.0
      %1371 = vmatpush1.msra.mxu0 %v689
      %1372 = vmatprep.subr.mxu0 0.0
      %1373 = vmatpush1.msra.mxu0 %v690
      %1374 = vmatprep.subr.mxu0 0.0
      %1375 = vmatpush1.msra.mxu0 %v691
      %1376 = vmatprep.subr.mxu0 0.0
      %1377 = vmatpush1.msra.mxu0 %v692
      %1378 = vmatprep.subr.mxu0 0.0
      %1379 = vmatpush1.msra.mxu0 %v693
      %1380 = vmatprep.subr.mxu0 0.0
      %1381 = vmatpush1.msra.mxu0 %v694
      %1382 = vmatprep.subr.mxu0 0.0
      %1383 = vmatpush1.msra.mxu0 %v695
      %1384 = vmatprep.subr.mxu0 0.0
      %1385 = vmatpush1.msra.mxu0 %v696
      %1386 = vmatprep.subr.mxu0 0.0
      %1387 = vmatpush1.msra.mxu0 %v697
      %1388 = vmatprep.subr.mxu0 0.0
      %1389 = vmatpush1.msra.mxu0 %v698
      %1390 = vmatprep.subr.mxu0 0.0
      %1391 = vmatpush1.msra.mxu0 %v699
      %1392 = vmatprep.subr.mxu0 0.0
      %1393 = vmatpush1.msra.mxu0 %v700
      %1394 = vmatprep.subr.mxu0 0.0
      %1395 = vmatpush1.msra.mxu0 %v701
      %1396 = vmatprep.subr.mxu0 0.0
      %1397 = vmatpush1.msra.mxu0 %v702
      %1398 = vmatprep.subr.mxu0 0.0
      %1399 = vmatpush1.msra.mxu0 %v703
      %1400 = vmatprep.subr.mxu0 0.0
      %1401 = vmatpush1.msra.mxu0 %v704
      %1402 = vmatprep.mubr.f32.mxu0 %v182
      %1403 = vmatmul.mubr.f32.gmra.mrb[0].mxu0 %v181
      %v1404 = vpop.f32.mrb[0].mxu0
      %v1405 = vadd.f32 %v1260, %v1404
      %v1406 = vpop.f32.mrb[0].mxu0
      %1407 = vmatprep.mubr.f32.mxu0 %v209
      %1408 = vmatmul.mubr.f32.gmra.mrb[0].mxu0 %v208
      %v1409 = vpop.f32.mrb[0].mxu0
      %v1410 = vadd.f32 %v1265, %v1409
      %v1411 = vpop.f32.mrb[0].mxu0
      %1412 = vmatprep.mubr.f32.mxu0 %v236
      %1413 = vmatmul.mubr.f32.gmra.mrb[0].mxu0 %v235
      %v1414 = vpop.f32.mrb[0].mxu0
      %v1415 = vadd.f32 %v1270, %v1414
      %v1416 = vpop.f32.mrb[0].mxu0
      %1417 = vmatprep.mubr.f32.mxu0 %v263
      %1418 = vmatmul.mubr.f32.gmra.mrb[0].mxu0 %v262
      %v1419 = vpop.f32.mrb[0].mxu0
      %v1420 = vadd.f32 %v1275, %v1419
      %v1421 = vpop.f32.mrb[0].mxu0
      %1422 = vmatprep.mubr.f32.mxu0 %v290
      %1423 = vmatmul.mubr.f32.gmra.mrb[0].mxu0 %v289
      %v1424 = vpop.f32.mrb[0].mxu0
      %v1425 = vadd.f32 %v1280, %v1424
      %v1426 = vpop.f32.mrb[0].mxu0
      %1427 = vmatprep.mubr.f32.mxu0 %v317
      %1428 = vmatmul.mubr.f32.gmra.mrb[0].mxu0 %v316
      %v1429 = vpop.f32.mrb[0].mxu0
      %v1430 = vadd.f32 %v1285, %v1429
      %v1431 = vpop.f32.mrb[0].mxu0
      %1432 = vmatprep.mubr.f32.mxu0 %v344
      %1433 = vmatmul.mubr.f32.gmra.mrb[0].mxu0 %v343
      %v1434 = vpop.f32.mrb[0].mxu0
      %v1435 = vadd.f32 %v1290, %v1434
      %v1436 = vpop.f32.mrb[0].mxu0
      %1437 = vmatprep.mubr.f32.mxu0 %v371
      %1438 = vmatmul.mubr.f32.gmra.mrb[0].mxu0 %v370
      %v1439 = vpop.f32.mrb[0].mxu0
      %v1440 = vadd.f32 %v1295, %v1439
      %v1441 = vpop.f32.mrb[0].mxu0
      %1442 = vmatprep.mubr.f32.mxu0 %v398
      %1443 = vmatmul.mubr.f32.gmra.mrb[0].mxu0 %v397
      %v1444 = vpop.f32.mrb[0].mxu0
      %v1445 = vadd.f32 %v1300, %v1444
      %v1446 = vpop.f32.mrb[0].mxu0
      %1447 = vmatprep.mubr.f32.mxu0 %v425
      %1448 = vmatmul.mubr.f32.gmra.mrb[0].mxu0 %v424
      %v1449 = vpop.f32.mrb[0].mxu0
      %v1450 = vadd.f32 %v1305, %v1449
      %v1451 = vpop.f32.mrb[0].mxu0
      %1452 = vmatprep.mubr.f32.mxu0 %v452
      %1453 = vmatmul.mubr.f32.gmra.mrb[0].mxu0 %v451
      %v1454 = vpop.f32.mrb[0].mxu0
      %v1455 = vadd.f32 %v1310, %v1454
      %v1456 = vpop.f32.mrb[0].mxu0
      %1457 = vmatprep.mubr.f32.mxu0 %v479
      %1458 = vmatmul.mubr.f32.gmra.mrb[0].mxu0 %v478
      %v1459 = vpop.f32.mrb[0].mxu0
      %v1460 = vadd.f32 %v1315, %v1459
      %v1461 = vpop.f32.mrb[0].mxu0
      %1462 = vmatprep.mubr.f32.mxu0 %v506
      %1463 = vmatmul.mubr.f32.gmra.mrb[0].mxu0 %v505
      %v1464 = vpop.f32.mrb[0].mxu0
      %v1465 = vadd.f32 %v1320, %v1464
      %v1466 = vpop.f32.mrb[0].mxu0
      %1467 = vmatprep.mubr.f32.mxu0 %v533
      %1468 = vmatmul.mubr.f32.gmra.mrb[0].mxu0 %v532
      %v1469 = vpop.f32.mrb[0].mxu0
      %v1470 = vadd.f32 %v1325, %v1469
      %v1471 = vpop.f32.mrb[0].mxu0
      %1472 = vmatprep.mubr.f32.mxu0 %v560
      %1473 = vmatmul.mubr.f32.gmra.mrb[0].mxu0 %v559
      %v1474 = vpop.f32.mrb[0].mxu0
      %v1475 = vadd.f32 %v1330, %v1474
      %v1476 = vpop.f32.mrb[0].mxu0
      %1477 = vmatprep.mubr.f32.mxu0 %v587
      %1478 = vmatmul.mubr.f32.gmra.mrb[0].mxu0 %v586
      %v1479 = vpop.f32.mrb[0].mxu0
      %v1480 = vadd.f32 %v1335, %v1479
      %v1481 = vpop.f32.mrb[0].mxu0
      %1482 = vdwg.mxu0
      %1483 = vmatprep.subr.mxu0 0.0
      %1484 = vmatpush1.msra.mxu0 %v705
      %1485 = vmatprep.subr.mxu0 0.0
      %1486 = vmatpush1.msra.mxu0 %v706
      %1487 = vmatprep.subr.mxu0 0.0
      %1488 = vmatpush1.msra.mxu0 %v707
      %1489 = vmatprep.subr.mxu0 0.0
      %1490 = vmatpush1.msra.mxu0 %v708
      %1491 = vmatprep.subr.mxu0 0.0
      %1492 = vmatpush1.msra.mxu0 %v709
      %1493 = vmatprep.subr.mxu0 0.0
      %1494 = vmatpush1.msra.mxu0 %v710
      %1495 = vmatprep.subr.mxu0 0.0
      %1496 = vmatpush1.msra.mxu0 %v711
      %1497 = vmatprep.subr.mxu0 0.0
      %1498 = vmatpush1.msra.mxu0 %v712
      %1499 = vmatprep.subr.mxu0 0.0
      %1500 = vmatpush1.msra.mxu0 %v713
      %1501 = vmatprep.subr.mxu0 0.0
      %1502 = vmatpush1.msra.mxu0 %v714
      %1503 = vmatprep.subr.mxu0 0.0
      %1504 = vmatpush1.msra.mxu0 %v715
      %1505 = vmatprep.subr.mxu0 0.0
      %1506 = vmatpush1.msra.mxu0 %v716
      %1507 = vmatprep.subr.mxu0 0.0
      %1508 = vmatpush1.msra.mxu0 %v717
      %1509 = vmatprep.subr.mxu0 0.0
      %1510 = vmatpush1.msra.mxu0 %v718
      %1511 = vmatprep.subr.mxu0 0.0
      %1512 = vmatpush1.msra.mxu0 %v719
      %1513 = vmatprep.subr.mxu0 0.0
      %1514 = vmatpush1.msra.mxu0 %v720
      %1515 = vmatprep.subr.mxu0 0.0
      %1516 = vmatpush1.msra.mxu0 %v721
      %1517 = vmatprep.subr.mxu0 0.0
      %1518 = vmatpush1.msra.mxu0 %v722
      %1519 = vmatprep.subr.mxu0 0.0
      %1520 = vmatpush1.msra.mxu0 %v723
      %1521 = vmatprep.subr.mxu0 0.0
      %1522 = vmatpush1.msra.mxu0 %v724
      %1523 = vmatprep.subr.mxu0 0.0
      %1524 = vmatpush1.msra.mxu0 %v725
      %1525 = vmatprep.subr.mxu0 0.0
      %1526 = vmatpush1.msra.mxu0 %v726
      %1527 = vmatprep.subr.mxu0 0.0
      %1528 = vmatpush1.msra.mxu0 %v727
      %1529 = vmatprep.subr.mxu0 0.0
      %1530 = vmatpush1.msra.mxu0 %v728
      %1531 = vmatprep.subr.mxu0 0.0
      %1532 = vmatpush1.msra.mxu0 %v729
      %1533 = vmatprep.subr.mxu0 0.0
      %1534 = vmatpush1.msra.mxu0 %v730
      %1535 = vmatprep.subr.mxu0 0.0
      %1536 = vmatpush1.msra.mxu0 %v731
      %1537 = vmatprep.subr.mxu0 0.0
      %1538 = vmatpush1.msra.mxu0 %v732
      %1539 = vmatprep.subr.mxu0 0.0
      %1540 = vmatpush1.msra.mxu0 %v733
      %1541 = vmatprep.subr.mxu0 0.0
      %1542 = vmatpush1.msra.mxu0 %v734
      %1543 = vmatprep.subr.mxu0 0.0
      %1544 = vmatpush1.msra.mxu0 %v735
      %1545 = vmatprep.subr.mxu0 0.0
      %1546 = vmatpush1.msra.mxu0 %v736
      %1547 = vmatprep.mubr.f32.mxu0 %v184
      %1548 = vmatmul.mubr.f32.gmra.mrb[0].mxu0 %v183
      %v1549 = vpop.f32.mrb[0].mxu0
      %v1550 = vadd.f32 %v1405, %v1549
      %v1551 = vpop.f32.mrb[0].mxu0
      %1552 = vmatprep.mubr.f32.mxu0 %v211
      %1553 = vmatmul.mubr.f32.gmra.mrb[0].mxu0 %v210
      %v1554 = vpop.f32.mrb[0].mxu0
      %v1555 = vadd.f32 %v1410, %v1554
      %v1556 = vpop.f32.mrb[0].mxu0
      %1557 = vmatprep.mubr.f32.mxu0 %v238
      %1558 = vmatmul.mubr.f32.gmra.mrb[0].mxu0 %v237
      %v1559 = vpop.f32.mrb[0].mxu0
      %v1560 = vadd.f32 %v1415, %v1559
      %v1561 = vpop.f32.mrb[0].mxu0
      %1562 = vmatprep.mubr.f32.mxu0 %v265
      %1563 = vmatmul.mubr.f32.gmra.mrb[0].mxu0 %v264
      %v1564 = vpop.f32.mrb[0].mxu0
      %v1565 = vadd.f32 %v1420, %v1564
      %v1566 = vpop.f32.mrb[0].mxu0
      %1567 = vmatprep.mubr.f32.mxu0 %v292
      %1568 = vmatmul.mubr.f32.gmra.mrb[0].mxu0 %v291
      %v1569 = vpop.f32.mrb[0].mxu0
      %v1570 = vadd.f32 %v1425, %v1569
      %v1571 = vpop.f32.mrb[0].mxu0
      %1572 = vmatprep.mubr.f32.mxu0 %v319
      %1573 = vmatmul.mubr.f32.gmra.mrb[0].mxu0 %v318
      %v1574 = vpop.f32.mrb[0].mxu0
      %v1575 = vadd.f32 %v1430, %v1574
      %v1576 = vpop.f32.mrb[0].mxu0
      %1577 = vmatprep.mubr.f32.mxu0 %v346
      %1578 = vmatmul.mubr.f32.gmra.mrb[0].mxu0 %v345
      %v1579 = vpop.f32.mrb[0].mxu0
      %v1580 = vadd.f32 %v1435, %v1579
      %v1581 = vpop.f32.mrb[0].mxu0
      %1582 = vmatprep.mubr.f32.mxu0 %v373
      %1583 = vmatmul.mubr.f32.gmra.mrb[0].mxu0 %v372
      %v1584 = vpop.f32.mrb[0].mxu0
      %v1585 = vadd.f32 %v1440, %v1584
      %v1586 = vpop.f32.mrb[0].mxu0
      %1587 = vmatprep.mubr.f32.mxu0 %v400
      %1588 = vmatmul.mubr.f32.gmra.mrb[0].mxu0 %v399
      %v1589 = vpop.f32.mrb[0].mxu0
      %v1590 = vadd.f32 %v1445, %v1589
      %v1591 = vpop.f32.mrb[0].mxu0
      %1592 = vmatprep.mubr.f32.mxu0 %v427
      %1593 = vmatmul.mubr.f32.gmra.mrb[0].mxu0 %v426
      %v1594 = vpop.f32.mrb[0].mxu0
      %v1595 = vadd.f32 %v1450, %v1594
      %v1596 = vpop.f32.mrb[0].mxu0
      %1597 = vmatprep.mubr.f32.mxu0 %v454
      %1598 = vmatmul.mubr.f32.gmra.mrb[0].mxu0 %v453
      %v1599 = vpop.f32.mrb[0].mxu0
      %v1600 = vadd.f32 %v1455, %v1599
      %v1601 = vpop.f32.mrb[0].mxu0
      %1602 = vmatprep.mubr.f32.mxu0 %v481
      %1603 = vmatmul.mubr.f32.gmra.mrb[0].mxu0 %v480
      %v1604 = vpop.f32.mrb[0].mxu0
      %v1605 = vadd.f32 %v1460, %v1604
      %v1606 = vpop.f32.mrb[0].mxu0
      %1607 = vmatprep.mubr.f32.mxu0 %v508
      %1608 = vmatmul.mubr.f32.gmra.mrb[0].mxu0 %v507
      %v1609 = vpop.f32.mrb[0].mxu0
      %v1610 = vadd.f32 %v1465, %v1609
      %v1611 = vpop.f32.mrb[0].mxu0
      %1612 = vmatprep.mubr.f32.mxu0 %v535
      %1613 = vmatmul.mubr.f32.gmra.mrb[0].mxu0 %v534
      %v1614 = vpop.f32.mrb[0].mxu0
      %v1615 = vadd.f32 %v1470, %v1614
      %v1616 = vpop.f32.mrb[0].mxu0
      %1617 = vmatprep.mubr.f32.mxu0 %v562
      %1618 = vmatmul.mubr.f32.gmra.mrb[0].mxu0 %v561
      %v1619 = vpop.f32.mrb[0].mxu0
      %v1620 = vadd.f32 %v1475, %v1619
      %v1621 = vpop.f32.mrb[0].mxu0
      %1622 = vmatprep.mubr.f32.mxu0 %v589
      %1623 = vmatmul.mubr.f32.gmra.mrb[0].mxu0 %v588
      %v1624 = vpop.f32.mrb[0].mxu0
      %v1625 = vadd.f32 %v1480, %v1624
      %v1626 = vpop.f32.mrb[0].mxu0
      %1627 = vdwg.mxu0
      %1628 = vmatprep.subr.mxu0 0.0
      %1629 = vmatpush1.msra.mxu0 %v737
      %1630 = vmatprep.subr.mxu0 0.0
      %1631 = vmatpush1.msra.mxu0 %v738
      %1632 = vmatprep.subr.mxu0 0.0
      %1633 = vmatpush1.msra.mxu0 %v739
      %1634 = vmatprep.subr.mxu0 0.0
      %1635 = vmatpush1.msra.mxu0 %v740
      %1636 = vmatprep.subr.mxu0 0.0
      %1637 = vmatpush1.msra.mxu0 %v741
      %1638 = vmatprep.subr.mxu0 0.0
      %1639 = vmatpush1.msra.mxu0 %v742
      %1640 = vmatprep.subr.mxu0 0.0
      %1641 = vmatpush1.msra.mxu0 %v743
      %1642 = vmatprep.subr.mxu0 0.0
      %1643 = vmatpush1.msra.mxu0 %v744
      %1644 = vmatprep.subr.mxu0 0.0
      %1645 = vmatpush1.msra.mxu0 %v745
      %1646 = vmatprep.subr.mxu0 0.0
      %1647 = vmatpush1.msra.mxu0 %v746
      %1648 = vmatprep.subr.mxu0 0.0
      %1649 = vmatpush1.msra.mxu0 %v747
      %1650 = vmatprep.subr.mxu0 0.0
      %1651 = vmatpush1.msra.mxu0 %v748
      %1652 = vmatprep.subr.mxu0 0.0
      %1653 = vmatpush1.msra.mxu0 %v749
      %1654 = vmatprep.subr.mxu0 0.0
      %1655 = vmatpush1.msra.mxu0 %v750
      %1656 = vmatprep.subr.mxu0 0.0
      %1657 = vmatpush1.msra.mxu0 %v751
      %1658 = vmatprep.subr.mxu0 0.0
      %1659 = vmatpush1.msra.mxu0 %v752
      %1660 = vmatprep.subr.mxu0 0.0
      %1661 = vmatpush1.msra.mxu0 %v753
      %1662 = vmatprep.subr.mxu0 0.0
      %1663 = vmatpush1.msra.mxu0 %v754
      %1664 = vmatprep.subr.mxu0 0.0
      %1665 = vmatpush1.msra.mxu0 %v755
      %1666 = vmatprep.subr.mxu0 0.0
      %1667 = vmatpush1.msra.mxu0 %v756
      %1668 = vmatprep.subr.mxu0 0.0
      %1669 = vmatpush1.msra.mxu0 %v757
      %1670 = vmatprep.subr.mxu0 0.0
      %1671 = vmatpush1.msra.mxu0 %v758
      %1672 = vmatprep.subr.mxu0 0.0
      %1673 = vmatpush1.msra.mxu0 %v759
      %1674 = vmatprep.subr.mxu0 0.0
      %1675 = vmatpush1.msra.mxu0 %v760
      %1676 = vmatprep.subr.mxu0 0.0
      %1677 = vmatpush1.msra.mxu0 %v761
      %1678 = vmatprep.subr.mxu0 0.0
      %1679 = vmatpush1.msra.mxu0 %v762
      %1680 = vmatprep.subr.mxu0 0.0
      %1681 = vmatpush1.msra.mxu0 %v763
      %1682 = vmatprep.subr.mxu0 0.0
      %1683 = vmatpush1.msra.mxu0 %v764
      %1684 = vmatprep.subr.mxu0 0.0
      %1685 = vmatpush1.msra.mxu0 %v765
      %1686 = vmatprep.subr.mxu0 0.0
      %1687 = vmatpush1.msra.mxu0 %v766
      %1688 = vmatprep.subr.mxu0 0.0
      %1689 = vmatpush1.msra.mxu0 %v767
      %1690 = vmatprep.subr.mxu0 0.0
      %1691 = vmatpush1.msra.mxu0 %v768
      %1692 = vmatprep.mubr.f32.mxu0 %v186
      %1693 = vmatmul.mubr.f32.gmra.mrb[0].mxu0 %v185
      %v1694 = vpop.f32.mrb[0].mxu0
      %v1695 = vadd.f32 %v1550, %v1694
      %v1696 = vpop.f32.mrb[0].mxu0
      %1697 = vmatprep.mubr.f32.mxu0 %v213
      %1698 = vmatmul.mubr.f32.gmra.mrb[0].mxu0 %v212
      %v1699 = vpop.f32.mrb[0].mxu0
      %v1700 = vadd.f32 %v1555, %v1699
      %v1701 = vpop.f32.mrb[0].mxu0
      %1702 = vmatprep.mubr.f32.mxu0 %v240
      %1703 = vmatmul.mubr.f32.gmra.mrb[0].mxu0 %v239
      %v1704 = vpop.f32.mrb[0].mxu0
      %v1705 = vadd.f32 %v1560, %v1704
      %v1706 = vpop.f32.mrb[0].mxu0
      %1707 = vmatprep.mubr.f32.mxu0 %v267
      %1708 = vmatmul.mubr.f32.gmra.mrb[0].mxu0 %v266
      %v1709 = vpop.f32.mrb[0].mxu0
      %v1710 = vadd.f32 %v1565, %v1709
      %v1711 = vpop.f32.mrb[0].mxu0
      %1712 = vmatprep.mubr.f32.mxu0 %v294
      %1713 = vmatmul.mubr.f32.gmra.mrb[0].mxu0 %v293
      %v1714 = vpop.f32.mrb[0].mxu0
      %v1715 = vadd.f32 %v1570, %v1714
      %v1716 = vpop.f32.mrb[0].mxu0
      %1717 = vmatprep.mubr.f32.mxu0 %v321
      %1718 = vmatmul.mubr.f32.gmra.mrb[0].mxu0 %v320
      %v1719 = vpop.f32.mrb[0].mxu0
      %v1720 = vadd.f32 %v1575, %v1719
      %v1721 = vpop.f32.mrb[0].mxu0
      %1722 = vmatprep.mubr.f32.mxu0 %v348
      %1723 = vmatmul.mubr.f32.gmra.mrb[0].mxu0 %v347
      %v1724 = vpop.f32.mrb[0].mxu0
      %v1725 = vadd.f32 %v1580, %v1724
      %v1726 = vpop.f32.mrb[0].mxu0
      %1727 = vmatprep.mubr.f32.mxu0 %v375
      %1728 = vmatmul.mubr.f32.gmra.mrb[0].mxu0 %v374
      %v1729 = vpop.f32.mrb[0].mxu0
      %v1730 = vadd.f32 %v1585, %v1729
      %v1731 = vpop.f32.mrb[0].mxu0
      %1732 = vmatprep.mubr.f32.mxu0 %v402
      %1733 = vmatmul.mubr.f32.gmra.mrb[0].mxu0 %v401
      %v1734 = vpop.f32.mrb[0].mxu0
      %v1735 = vadd.f32 %v1590, %v1734
      %v1736 = vpop.f32.mrb[0].mxu0
      %1737 = vmatprep.mubr.f32.mxu0 %v429
      %1738 = vmatmul.mubr.f32.gmra.mrb[0].mxu0 %v428
      %v1739 = vpop.f32.mrb[0].mxu0
      %v1740 = vadd.f32 %v1595, %v1739
      %v1741 = vpop.f32.mrb[0].mxu0
      %1742 = vmatprep.mubr.f32.mxu0 %v456
      %1743 = vmatmul.mubr.f32.gmra.mrb[0].mxu0 %v455
      %v1744 = vpop.f32.mrb[0].mxu0
      %v1745 = vadd.f32 %v1600, %v1744
      %v1746 = vpop.f32.mrb[0].mxu0
      %1747 = vmatprep.mubr.f32.mxu0 %v483
      %1748 = vmatmul.mubr.f32.gmra.mrb[0].mxu0 %v482
      %v1749 = vpop.f32.mrb[0].mxu0
      %v1750 = vadd.f32 %v1605, %v1749
      %v1751 = vpop.f32.mrb[0].mxu0
      %1752 = vmatprep.mubr.f32.mxu0 %v510
      %1753 = vmatmul.mubr.f32.gmra.mrb[0].mxu0 %v509
      %v1754 = vpop.f32.mrb[0].mxu0
      %v1755 = vadd.f32 %v1610, %v1754
      %v1756 = vpop.f32.mrb[0].mxu0
      %1757 = vmatprep.mubr.f32.mxu0 %v537
      %1758 = vmatmul.mubr.f32.gmra.mrb[0].mxu0 %v536
      %v1759 = vpop.f32.mrb[0].mxu0
      %v1760 = vadd.f32 %v1615, %v1759
      %v1761 = vpop.f32.mrb[0].mxu0
      %1762 = vmatprep.mubr.f32.mxu0 %v564
      %1763 = vmatmul.mubr.f32.gmra.mrb[0].mxu0 %v563
      %v1764 = vpop.f32.mrb[0].mxu0
      %v1765 = vadd.f32 %v1620, %v1764
      %v1766 = vpop.f32.mrb[0].mxu0
      %1767 = vmatprep.mubr.f32.mxu0 %v591
      %1768 = vmatmul.mubr.f32.gmra.mrb[0].mxu0 %v590
      %v1769 = vpop.f32.mrb[0].mxu0
      %v1770 = vadd.f32 %v1625, %v1769
      %v1771 = vpop.f32.mrb[0].mxu0
      %1772 = vdwg.mxu0
      %1773 = vmatprep.subr.mxu0 0.0
      %1774 = vmatpush1.msra.mxu0 %v769
      %1775 = vmatprep.subr.mxu0 0.0
      %1776 = vmatpush1.msra.mxu0 %v770
      %1777 = vmatprep.subr.mxu0 0.0
      %1778 = vmatpush1.msra.mxu0 %v771
      %1779 = vmatprep.subr.mxu0 0.0
      %1780 = vmatpush1.msra.mxu0 %v772
      %1781 = vmatprep.subr.mxu0 0.0
      %1782 = vmatpush1.msra.mxu0 %v773
      %1783 = vmatprep.subr.mxu0 0.0
      %1784 = vmatpush1.msra.mxu0 %v774
      %1785 = vmatprep.subr.mxu0 0.0
      %1786 = vmatpush1.msra.mxu0 %v775
      %1787 = vmatprep.subr.mxu0 0.0
      %1788 = vmatpush1.msra.mxu0 %v776
      %1789 = vmatprep.subr.mxu0 0.0
      %1790 = vmatpush1.msra.mxu0 %v777
      %1791 = vmatprep.subr.mxu0 0.0
      %1792 = vmatpush1.msra.mxu0 %v778
      %1793 = vmatprep.subr.mxu0 0.0
      %1794 = vmatpush1.msra.mxu0 %v779
      %1795 = vmatprep.subr.mxu0 0.0
      %1796 = vmatpush1.msra.mxu0 %v780
      %1797 = vmatprep.subr.mxu0 0.0
      %1798 = vmatpush1.msra.mxu0 %v781
      %1799 = vmatprep.subr.mxu0 0.0
      %1800 = vmatpush1.msra.mxu0 %v782
      %1801 = vmatprep.subr.mxu0 0.0
      %1802 = vmatpush1.msra.mxu0 %v783
      %1803 = vmatprep.subr.mxu0 0.0
      %1804 = vmatpush1.msra.mxu0 %v784
      %1805 = vmatprep.subr.mxu0 0.0
      %1806 = vmatpush1.msra.mxu0 %v785
      %1807 = vmatprep.subr.mxu0 0.0
      %1808 = vmatpush1.msra.mxu0 %v786
      %1809 = vmatprep.subr.mxu0 0.0
      %1810 = vmatpush1.msra.mxu0 %v787
      %1811 = vmatprep.subr.mxu0 0.0
      %1812 = vmatpush1.msra.mxu0 %v788
      %1813 = vmatprep.subr.mxu0 0.0
      %1814 = vmatpush1.msra.mxu0 %v789
      %1815 = vmatprep.subr.mxu0 0.0
      %1816 = vmatpush1.msra.mxu0 %v790
      %1817 = vmatprep.subr.mxu0 0.0
      %1818 = vmatpush1.msra.mxu0 %v791
      %1819 = vmatprep.subr.mxu0 0.0
      %1820 = vmatpush1.msra.mxu0 %v792
      %1821 = vmatprep.subr.mxu0 0.0
      %1822 = vmatpush1.msra.mxu0 %v793
      %1823 = vmatprep.subr.mxu0 0.0
      %1824 = vmatpush1.msra.mxu0 %v794
      %1825 = vmatprep.subr.mxu0 0.0
      %1826 = vmatpush1.msra.mxu0 %v795
      %1827 = vmatprep.subr.mxu0 0.0
      %1828 = vmatpush1.msra.mxu0 %v796
      %1829 = vmatprep.subr.mxu0 0.0
      %1830 = vmatpush1.msra.mxu0 %v797
      %1831 = vmatprep.subr.mxu0 0.0
      %1832 = vmatpush1.msra.mxu0 %v798
      %1833 = vmatprep.subr.mxu0 0.0
      %1834 = vmatpush1.msra.mxu0 %v799
      %1835 = vmatprep.subr.mxu0 0.0
      %1836 = vmatpush1.msra.mxu0 %v800
      %1837 = vmatprep.mubr.f32.mxu0 %v188
      %1838 = vmatmul.mubr.f32.gmra.mrb[0].mxu0 %v187
      %v1839 = vpop.f32.mrb[0].mxu0
      %v1840 = vadd.f32 %v1695, %v1839
      %v1841 = vpop.f32.mrb[0].mxu0
      %1842 = vmatprep.mubr.f32.mxu0 %v215
      %1843 = vmatmul.mubr.f32.gmra.mrb[0].mxu0 %v214
      %v1844 = vpop.f32.mrb[0].mxu0
      %v1845 = vadd.f32 %v1700, %v1844
      %v1846 = vpop.f32.mrb[0].mxu0
      %1847 = vmatprep.mubr.f32.mxu0 %v242
      %1848 = vmatmul.mubr.f32.gmra.mrb[0].mxu0 %v241
      %v1849 = vpop.f32.mrb[0].mxu0
      %v1850 = vadd.f32 %v1705, %v1849
      %v1851 = vpop.f32.mrb[0].mxu0
      %1852 = vmatprep.mubr.f32.mxu0 %v269
      %1853 = vmatmul.mubr.f32.gmra.mrb[0].mxu0 %v268
      %v1854 = vpop.f32.mrb[0].mxu0
      %v1855 = vadd.f32 %v1710, %v1854
      %v1856 = vpop.f32.mrb[0].mxu0
      %1857 = vmatprep.mubr.f32.mxu0 %v296
      %1858 = vmatmul.mubr.f32.gmra.mrb[0].mxu0 %v295
      %v1859 = vpop.f32.mrb[0].mxu0
      %v1860 = vadd.f32 %v1715, %v1859
      %v1861 = vpop.f32.mrb[0].mxu0
      %1862 = vmatprep.mubr.f32.mxu0 %v323
      %1863 = vmatmul.mubr.f32.gmra.mrb[0].mxu0 %v322
      %v1864 = vpop.f32.mrb[0].mxu0
      %v1865 = vadd.f32 %v1720, %v1864
      %v1866 = vpop.f32.mrb[0].mxu0
      %1867 = vmatprep.mubr.f32.mxu0 %v350
      %1868 = vmatmul.mubr.f32.gmra.mrb[0].mxu0 %v349
      %v1869 = vpop.f32.mrb[0].mxu0
      %v1870 = vadd.f32 %v1725, %v1869
      %v1871 = vpop.f32.mrb[0].mxu0
      %1872 = vmatprep.mubr.f32.mxu0 %v377
      %1873 = vmatmul.mubr.f32.gmra.mrb[0].mxu0 %v376
      %v1874 = vpop.f32.mrb[0].mxu0
      %v1875 = vadd.f32 %v1730, %v1874
      %v1876 = vpop.f32.mrb[0].mxu0
      %1877 = vmatprep.mubr.f32.mxu0 %v404
      %1878 = vmatmul.mubr.f32.gmra.mrb[0].mxu0 %v403
      %v1879 = vpop.f32.mrb[0].mxu0
      %v1880 = vadd.f32 %v1735, %v1879
      %v1881 = vpop.f32.mrb[0].mxu0
      %1882 = vmatprep.mubr.f32.mxu0 %v431
      %1883 = vmatmul.mubr.f32.gmra.mrb[0].mxu0 %v430
      %v1884 = vpop.f32.mrb[0].mxu0
      %v1885 = vadd.f32 %v1740, %v1884
      %v1886 = vpop.f32.mrb[0].mxu0
      %1887 = vmatprep.mubr.f32.mxu0 %v458
      %1888 = vmatmul.mubr.f32.gmra.mrb[0].mxu0 %v457
      %v1889 = vpop.f32.mrb[0].mxu0
      %v1890 = vadd.f32 %v1745, %v1889
      %v1891 = vpop.f32.mrb[0].mxu0
      %1892 = vmatprep.mubr.f32.mxu0 %v485
      %1893 = vmatmul.mubr.f32.gmra.mrb[0].mxu0 %v484
      %v1894 = vpop.f32.mrb[0].mxu0
      %v1895 = vadd.f32 %v1750, %v1894
      %v1896 = vpop.f32.mrb[0].mxu0
      %1897 = vmatprep.mubr.f32.mxu0 %v512
      %1898 = vmatmul.mubr.f32.gmra.mrb[0].mxu0 %v511
      %v1899 = vpop.f32.mrb[0].mxu0
      %v1900 = vadd.f32 %v1755, %v1899
      %v1901 = vpop.f32.mrb[0].mxu0
      %1902 = vmatprep.mubr.f32.mxu0 %v539
      %1903 = vmatmul.mubr.f32.gmra.mrb[0].mxu0 %v538
      %v1904 = vpop.f32.mrb[0].mxu0
      %v1905 = vadd.f32 %v1760, %v1904
      %v1906 = vpop.f32.mrb[0].mxu0
      %1907 = vmatprep.mubr.f32.mxu0 %v566
      %1908 = vmatmul.mubr.f32.gmra.mrb[0].mxu0 %v565
      %v1909 = vpop.f32.mrb[0].mxu0
      %v1910 = vadd.f32 %v1765, %v1909
      %v1911 = vpop.f32.mrb[0].mxu0
      %1912 = vmatprep.mubr.f32.mxu0 %v593
      %1913 = vmatmul.mubr.f32.gmra.mrb[0].mxu0 %v592
      %v1914 = vpop.f32.mrb[0].mxu0
      %v1915 = vadd.f32 %v1770, %v1914
      %v1916 = vpop.f32.mrb[0].mxu0
      %1917 = vdwg.mxu0
      %1918 = vmatprep.subr.mxu0 0.0
      %1919 = vmatpush1.msra.mxu0 %v801
      %1920 = vmatprep.subr.mxu0 0.0
      %1921 = vmatpush1.msra.mxu0 %v802
      %1922 = vmatprep.subr.mxu0 0.0
      %1923 = vmatpush1.msra.mxu0 %v803
      %1924 = vmatprep.subr.mxu0 0.0
      %1925 = vmatpush1.msra.mxu0 %v804
      %1926 = vmatprep.subr.mxu0 0.0
      %1927 = vmatpush1.msra.mxu0 %v805
      %1928 = vmatprep.subr.mxu0 0.0
      %1929 = vmatpush1.msra.mxu0 %v806
      %1930 = vmatprep.subr.mxu0 0.0
      %1931 = vmatpush1.msra.mxu0 %v807
      %1932 = vmatprep.subr.mxu0 0.0
      %1933 = vmatpush1.msra.mxu0 %v808
      %1934 = vmatprep.subr.mxu0 0.0
      %1935 = vmatpush1.msra.mxu0 %v809
      %1936 = vmatprep.subr.mxu0 0.0
      %1937 = vmatpush1.msra.mxu0 %v810
      %1938 = vmatprep.subr.mxu0 0.0
      %1939 = vmatpush1.msra.mxu0 %v811
      %1940 = vmatprep.subr.mxu0 0.0
      %1941 = vmatpush1.msra.mxu0 %v812
      %1942 = vmatprep.subr.mxu0 0.0
      %1943 = vmatpush1.msra.mxu0 %v813
      %1944 = vmatprep.subr.mxu0 0.0
      %1945 = vmatpush1.msra.mxu0 %v814
      %1946 = vmatprep.subr.mxu0 0.0
      %1947 = vmatpush1.msra.mxu0 %v815
      %1948 = vmatprep.subr.mxu0 0.0
      %1949 = vmatpush1.msra.mxu0 %v816
      %1950 = vmatprep.subr.mxu0 0.0
      %1951 = vmatpush1.msra.mxu0 %v817
      %1952 = vmatprep.subr.mxu0 0.0
      %1953 = vmatpush1.msra.mxu0 %v818
      %1954 = vmatprep.subr.mxu0 0.0
      %1955 = vmatpush1.msra.mxu0 %v819
      %1956 = vmatprep.subr.mxu0 0.0
      %1957 = vmatpush1.msra.mxu0 %v820
      %1958 = vmatprep.subr.mxu0 0.0
      %1959 = vmatpush1.msra.mxu0 %v821
      %1960 = vmatprep.subr.mxu0 0.0
      %1961 = vmatpush1.msra.mxu0 %v822
      %1962 = vmatprep.subr.mxu0 0.0
      %1963 = vmatpush1.msra.mxu0 %v823
      %1964 = vmatprep.subr.mxu0 0.0
      %1965 = vmatpush1.msra.mxu0 %v824
      %1966 = vmatprep.subr.mxu0 0.0
      %1967 = vmatpush1.msra.mxu0 %v825
      %1968 = vmatprep.subr.mxu0 0.0
      %1969 = vmatpush1.msra.mxu0 %v826
      %1970 = vmatprep.subr.mxu0 0.0
      %1971 = vmatpush1.msra.mxu0 %v827
      %1972 = vmatprep.subr.mxu0 0.0
      %1973 = vmatpush1.msra.mxu0 %v828
      %1974 = vmatprep.subr.mxu0 0.0
      %1975 = vmatpush1.msra.mxu0 %v829
      %1976 = vmatprep.subr.mxu0 0.0
      %1977 = vmatpush1.msra.mxu0 %v830
      %1978 = vmatprep.subr.mxu0 0.0
      %1979 = vmatpush1.msra.mxu0 %v831
      %1980 = vmatprep.subr.mxu0 0.0
      %1981 = vmatpush1.msra.mxu0 %v832
      %1982 = vmatprep.mubr.f32.mxu0 %v190
      %1983 = vmatmul.mubr.f32.gmra.mrb[0].mxu0 %v189
      %v1984 = vpop.f32.mrb[0].mxu0
      %v1985 = vadd.f32 %v1840, %v1984
      %v1986 = vpop.f32.mrb[0].mxu0
      %1987 = vmatprep.mubr.f32.mxu0 %v217
      %1988 = vmatmul.mubr.f32.gmra.mrb[0].mxu0 %v216
      %v1989 = vpop.f32.mrb[0].mxu0
      %v1990 = vadd.f32 %v1845, %v1989
      %v1991 = vpop.f32.mrb[0].mxu0
      %1992 = vmatprep.mubr.f32.mxu0 %v244
      %1993 = vmatmul.mubr.f32.gmra.mrb[0].mxu0 %v243
      %v1994 = vpop.f32.mrb[0].mxu0
      %v1995 = vadd.f32 %v1850, %v1994
      %v1996 = vpop.f32.mrb[0].mxu0
      %1997 = vmatprep.mubr.f32.mxu0 %v271
      %1998 = vmatmul.mubr.f32.gmra.mrb[0].mxu0 %v270
      %v1999 = vpop.f32.mrb[0].mxu0
      %v2000 = vadd.f32 %v1855, %v1999
      %v2001 = vpop.f32.mrb[0].mxu0
      %2002 = vmatprep.mubr.f32.mxu0 %v298
      %2003 = vmatmul.mubr.f32.gmra.mrb[0].mxu0 %v297
      %v2004 = vpop.f32.mrb[0].mxu0
      %v2005 = vadd.f32 %v1860, %v2004
      %v2006 = vpop.f32.mrb[0].mxu0
      %2007 = vmatprep.mubr.f32.mxu0 %v325
      %2008 = vmatmul.mubr.f32.gmra.mrb[0].mxu0 %v324
      %v2009 = vpop.f32.mrb[0].mxu0
      %v2010 = vadd.f32 %v1865, %v2009
      %v2011 = vpop.f32.mrb[0].mxu0
      %2012 = vmatprep.mubr.f32.mxu0 %v352
      %2013 = vmatmul.mubr.f32.gmra.mrb[0].mxu0 %v351
      %v2014 = vpop.f32.mrb[0].mxu0
      %v2015 = vadd.f32 %v1870, %v2014
      %v2016 = vpop.f32.mrb[0].mxu0
      %2017 = vmatprep.mubr.f32.mxu0 %v379
      %2018 = vmatmul.mubr.f32.gmra.mrb[0].mxu0 %v378
      %v2019 = vpop.f32.mrb[0].mxu0
      %v2020 = vadd.f32 %v1875, %v2019
      %v2021 = vpop.f32.mrb[0].mxu0
      %2022 = vmatprep.mubr.f32.mxu0 %v406
      %2023 = vmatmul.mubr.f32.gmra.mrb[0].mxu0 %v405
      %v2024 = vpop.f32.mrb[0].mxu0
      %v2025 = vadd.f32 %v1880, %v2024
      %v2026 = vpop.f32.mrb[0].mxu0
      %2027 = vmatprep.mubr.f32.mxu0 %v433
      %2028 = vmatmul.mubr.f32.gmra.mrb[0].mxu0 %v432
      %v2029 = vpop.f32.mrb[0].mxu0
      %v2030 = vadd.f32 %v1885, %v2029
      %v2031 = vpop.f32.mrb[0].mxu0
      %2032 = vmatprep.mubr.f32.mxu0 %v460
      %2033 = vmatmul.mubr.f32.gmra.mrb[0].mxu0 %v459
      %v2034 = vpop.f32.mrb[0].mxu0
      %v2035 = vadd.f32 %v1890, %v2034
      %v2036 = vpop.f32.mrb[0].mxu0
      %2037 = vmatprep.mubr.f32.mxu0 %v487
      %2038 = vmatmul.mubr.f32.gmra.mrb[0].mxu0 %v486
      %v2039 = vpop.f32.mrb[0].mxu0
      %v2040 = vadd.f32 %v1895, %v2039
      %v2041 = vpop.f32.mrb[0].mxu0
      %2042 = vmatprep.mubr.f32.mxu0 %v514
      %2043 = vmatmul.mubr.f32.gmra.mrb[0].mxu0 %v513
      %v2044 = vpop.f32.mrb[0].mxu0
      %v2045 = vadd.f32 %v1900, %v2044
      %v2046 = vpop.f32.mrb[0].mxu0
      %2047 = vmatprep.mubr.f32.mxu0 %v541
      %2048 = vmatmul.mubr.f32.gmra.mrb[0].mxu0 %v540
      %v2049 = vpop.f32.mrb[0].mxu0
      %v2050 = vadd.f32 %v1905, %v2049
      %v2051 = vpop.f32.mrb[0].mxu0
      %2052 = vmatprep.mubr.f32.mxu0 %v568
      %2053 = vmatmul.mubr.f32.gmra.mrb[0].mxu0 %v567
      %v2054 = vpop.f32.mrb[0].mxu0
      %v2055 = vadd.f32 %v1910, %v2054
      %v2056 = vpop.f32.mrb[0].mxu0
      %2057 = vmatprep.mubr.f32.mxu0 %v595
      %2058 = vmatmul.mubr.f32.gmra.mrb[0].mxu0 %v594
      %v2059 = vpop.f32.mrb[0].mxu0
      %v2060 = vadd.f32 %v1915, %v2059
      %v2061 = vpop.f32.mrb[0].mxu0
      %2062 = vdwg.mxu0
      %2063 = vmatprep.subr.mxu0 0.0
      %2064 = vmatpush1.msra.mxu0 %v833
      %2065 = vmatprep.subr.mxu0 0.0
      %2066 = vmatpush1.msra.mxu0 %v834
      %2067 = vmatprep.subr.mxu0 0.0
      %2068 = vmatpush1.msra.mxu0 %v835
      %2069 = vmatprep.subr.mxu0 0.0
      %2070 = vmatpush1.msra.mxu0 %v836
      %2071 = vmatprep.subr.mxu0 0.0
      %2072 = vmatpush1.msra.mxu0 %v837
      %2073 = vmatprep.subr.mxu0 0.0
      %2074 = vmatpush1.msra.mxu0 %v838
      %2075 = vmatprep.subr.mxu0 0.0
      %2076 = vmatpush1.msra.mxu0 %v839
      %2077 = vmatprep.subr.mxu0 0.0
      %2078 = vmatpush1.msra.mxu0 %v840
      %2079 = vmatprep.subr.mxu0 0.0
      %2080 = vmatpush1.msra.mxu0 %v841
      %2081 = vmatprep.subr.mxu0 0.0
      %2082 = vmatpush1.msra.mxu0 %v842
      %2083 = vmatprep.subr.mxu0 0.0
      %2084 = vmatpush1.msra.mxu0 %v843
      %2085 = vmatprep.subr.mxu0 0.0
      %2086 = vmatpush1.msra.mxu0 %v844
      %2087 = vmatprep.subr.mxu0 0.0
      %2088 = vmatpush1.msra.mxu0 %v845
      %2089 = vmatprep.subr.mxu0 0.0
      %2090 = vmatpush1.msra.mxu0 %v846
      %2091 = vmatprep.subr.mxu0 0.0
      %2092 = vmatpush1.msra.mxu0 %v847
      %2093 = vmatprep.subr.mxu0 0.0
      %2094 = vmatpush1.msra.mxu0 %v848
      %2095 = vmatprep.subr.mxu0 0.0
      %2096 = vmatpush1.msra.mxu0 %v849
      %2097 = vmatprep.subr.mxu0 0.0
      %2098 = vmatpush1.msra.mxu0 %v850
      %2099 = vmatprep.subr.mxu0 0.0
      %2100 = vmatpush1.msra.mxu0 %v851
      %2101 = vmatprep.subr.mxu0 0.0
      %2102 = vmatpush1.msra.mxu0 %v852
      %2103 = vmatprep.subr.mxu0 0.0
      %2104 = vmatpush1.msra.mxu0 %v853
      %2105 = vmatprep.subr.mxu0 0.0
      %2106 = vmatpush1.msra.mxu0 %v854
      %2107 = vmatprep.subr.mxu0 0.0
      %2108 = vmatpush1.msra.mxu0 %v855
      %2109 = vmatprep.subr.mxu0 0.0
      %2110 = vmatpush1.msra.mxu0 %v856
      %2111 = vmatprep.subr.mxu0 0.0
      %2112 = vmatpush1.msra.mxu0 %v857
      %2113 = vmatprep.subr.mxu0 0.0
      %2114 = vmatpush1.msra.mxu0 %v858
      %2115 = vmatprep.subr.mxu0 0.0
      %2116 = vmatpush1.msra.mxu0 %v859
      %2117 = vmatprep.subr.mxu0 0.0
      %2118 = vmatpush1.msra.mxu0 %v860
      %2119 = vmatprep.subr.mxu0 0.0
      %2120 = vmatpush1.msra.mxu0 %v861
      %2121 = vmatprep.subr.mxu0 0.0
      %2122 = vmatpush1.msra.mxu0 %v862
      %2123 = vmatprep.subr.mxu0 0.0
      %2124 = vmatpush1.msra.mxu0 %v863
      %2125 = vmatprep.subr.mxu0 0.0
      %2126 = vmatpush1.msra.mxu0 %v864
      %2127 = vmatprep.mubr.f32.mxu0 %v192
      %2128 = vmatmul.mubr.f32.gmra.mrb[0].mxu0 %v191
      %v2129 = vpop.f32.mrb[0].mxu0
      %v2130 = vadd.f32 %v1985, %v2129
      %v2131 = vpop.f32.mrb[0].mxu0
      %2132 = vmatprep.mubr.f32.mxu0 %v219
      %2133 = vmatmul.mubr.f32.gmra.mrb[0].mxu0 %v218
      %v2134 = vpop.f32.mrb[0].mxu0
      %v2135 = vadd.f32 %v1990, %v2134
      %v2136 = vpop.f32.mrb[0].mxu0
      %2137 = vmatprep.mubr.f32.mxu0 %v246
      %2138 = vmatmul.mubr.f32.gmra.mrb[0].mxu0 %v245
      %v2139 = vpop.f32.mrb[0].mxu0
      %v2140 = vadd.f32 %v1995, %v2139
      %v2141 = vpop.f32.mrb[0].mxu0
      %2142 = vmatprep.mubr.f32.mxu0 %v273
      %2143 = vmatmul.mubr.f32.gmra.mrb[0].mxu0 %v272
      %v2144 = vpop.f32.mrb[0].mxu0
      %v2145 = vadd.f32 %v2000, %v2144
      %v2146 = vpop.f32.mrb[0].mxu0
      %2147 = vmatprep.mubr.f32.mxu0 %v300
      %2148 = vmatmul.mubr.f32.gmra.mrb[0].mxu0 %v299
      %v2149 = vpop.f32.mrb[0].mxu0
      %v2150 = vadd.f32 %v2005, %v2149
      %v2151 = vpop.f32.mrb[0].mxu0
      %2152 = vmatprep.mubr.f32.mxu0 %v327
      %2153 = vmatmul.mubr.f32.gmra.mrb[0].mxu0 %v326
      %v2154 = vpop.f32.mrb[0].mxu0
      %v2155 = vadd.f32 %v2010, %v2154
      %v2156 = vpop.f32.mrb[0].mxu0
      %2157 = vmatprep.mubr.f32.mxu0 %v354
      %2158 = vmatmul.mubr.f32.gmra.mrb[0].mxu0 %v353
      %v2159 = vpop.f32.mrb[0].mxu0
      %v2160 = vadd.f32 %v2015, %v2159
      %v2161 = vpop.f32.mrb[0].mxu0
      %2162 = vmatprep.mubr.f32.mxu0 %v381
      %2163 = vmatmul.mubr.f32.gmra.mrb[0].mxu0 %v380
      %v2164 = vpop.f32.mrb[0].mxu0
      %v2165 = vadd.f32 %v2020, %v2164
      %v2166 = vpop.f32.mrb[0].mxu0
      %2167 = vmatprep.mubr.f32.mxu0 %v408
      %2168 = vmatmul.mubr.f32.gmra.mrb[0].mxu0 %v407
      %v2169 = vpop.f32.mrb[0].mxu0
      %v2170 = vadd.f32 %v2025, %v2169
      %v2171 = vpop.f32.mrb[0].mxu0
      %2172 = vmatprep.mubr.f32.mxu0 %v435
      %2173 = vmatmul.mubr.f32.gmra.mrb[0].mxu0 %v434
      %v2174 = vpop.f32.mrb[0].mxu0
      %v2175 = vadd.f32 %v2030, %v2174
      %v2176 = vpop.f32.mrb[0].mxu0
      %2177 = vmatprep.mubr.f32.mxu0 %v462
      %2178 = vmatmul.mubr.f32.gmra.mrb[0].mxu0 %v461
      %v2179 = vpop.f32.mrb[0].mxu0
      %v2180 = vadd.f32 %v2035, %v2179
      %v2181 = vpop.f32.mrb[0].mxu0
      %2182 = vmatprep.mubr.f32.mxu0 %v489
      %2183 = vmatmul.mubr.f32.gmra.mrb[0].mxu0 %v488
      %v2184 = vpop.f32.mrb[0].mxu0
      %v2185 = vadd.f32 %v2040, %v2184
      %v2186 = vpop.f32.mrb[0].mxu0
      %2187 = vmatprep.mubr.f32.mxu0 %v516
      %2188 = vmatmul.mubr.f32.gmra.mrb[0].mxu0 %v515
      %v2189 = vpop.f32.mrb[0].mxu0
      %v2190 = vadd.f32 %v2045, %v2189
      %v2191 = vpop.f32.mrb[0].mxu0
      %2192 = vmatprep.mubr.f32.mxu0 %v543
      %2193 = vmatmul.mubr.f32.gmra.mrb[0].mxu0 %v542
      %v2194 = vpop.f32.mrb[0].mxu0
      %v2195 = vadd.f32 %v2050, %v2194
      %v2196 = vpop.f32.mrb[0].mxu0
      %2197 = vmatprep.mubr.f32.mxu0 %v570
      %2198 = vmatmul.mubr.f32.gmra.mrb[0].mxu0 %v569
      %v2199 = vpop.f32.mrb[0].mxu0
      %v2200 = vadd.f32 %v2055, %v2199
      %v2201 = vpop.f32.mrb[0].mxu0
      %2202 = vmatprep.mubr.f32.mxu0 %v597
      %2203 = vmatmul.mubr.f32.gmra.mrb[0].mxu0 %v596
      %v2204 = vpop.f32.mrb[0].mxu0
      %v2205 = vadd.f32 %v2060, %v2204
      %v2206 = vpop.f32.mrb[0].mxu0
      %2207 = vdwg.mxu0
      %2208 = vmatprep.subr.mxu0 0.0
      %2209 = vmatpush1.msra.mxu0 %v865
      %2210 = vmatprep.subr.mxu0 0.0
      %2211 = vmatpush1.msra.mxu0 %v866
      %2212 = vmatprep.subr.mxu0 0.0
      %2213 = vmatpush1.msra.mxu0 %v867
      %2214 = vmatprep.subr.mxu0 0.0
      %2215 = vmatpush1.msra.mxu0 %v868
      %2216 = vmatprep.subr.mxu0 0.0
      %2217 = vmatpush1.msra.mxu0 %v869
      %2218 = vmatprep.subr.mxu0 0.0
      %2219 = vmatpush1.msra.mxu0 %v870
      %2220 = vmatprep.subr.mxu0 0.0
      %2221 = vmatpush1.msra.mxu0 %v871
      %2222 = vmatprep.subr.mxu0 0.0
      %2223 = vmatpush1.msra.mxu0 %v872
      %2224 = vmatprep.subr.mxu0 0.0
      %2225 = vmatpush1.msra.mxu0 %v873
      %2226 = vmatprep.subr.mxu0 0.0
      %2227 = vmatpush1.msra.mxu0 %v874
      %2228 = vmatprep.subr.mxu0 0.0
      %2229 = vmatpush1.msra.mxu0 %v875
      %2230 = vmatprep.subr.mxu0 0.0
      %2231 = vmatpush1.msra.mxu0 %v876
      %2232 = vmatprep.subr.mxu0 0.0
      %2233 = vmatpush1.msra.mxu0 %v877
      %2234 = vmatprep.subr.mxu0 0.0
      %2235 = vmatpush1.msra.mxu0 %v878
      %2236 = vmatprep.subr.mxu0 0.0
      %2237 = vmatpush1.msra.mxu0 %v879
      %2238 = vmatprep.subr.mxu0 0.0
      %2239 = vmatpush1.msra.mxu0 %v880
      %2240 = vmatprep.subr.mxu0 0.0
      %2241 = vmatpush1.msra.mxu0 %v881
      %2242 = vmatprep.subr.mxu0 0.0
      %2243 = vmatpush1.msra.mxu0 %v882
      %2244 = vmatprep.subr.mxu0 0.0
      %2245 = vmatpush1.msra.mxu0 %v883
      %2246 = vmatprep.subr.mxu0 0.0
      %2247 = vmatpush1.msra.mxu0 %v884
      %2248 = vmatprep.subr.mxu0 0.0
      %2249 = vmatpush1.msra.mxu0 %v885
      %2250 = vmatprep.subr.mxu0 0.0
      %2251 = vmatpush1.msra.mxu0 %v886
      %2252 = vmatprep.subr.mxu0 0.0
      %2253 = vmatpush1.msra.mxu0 %v887
      %2254 = vmatprep.subr.mxu0 0.0
      %2255 = vmatpush1.msra.mxu0 %v888
      %2256 = vmatprep.subr.mxu0 0.0
      %2257 = vmatpush1.msra.mxu0 %v889
      %2258 = vmatprep.subr.mxu0 0.0
      %2259 = vmatpush1.msra.mxu0 %v890
      %2260 = vmatprep.subr.mxu0 0.0
      %2261 = vmatpush1.msra.mxu0 %v891
      %2262 = vmatprep.subr.mxu0 0.0
      %2263 = vmatpush1.msra.mxu0 %v892
      %2264 = vmatprep.subr.mxu0 0.0
      %2265 = vmatpush1.msra.mxu0 %v893
      %2266 = vmatprep.subr.mxu0 0.0
      %2267 = vmatpush1.msra.mxu0 %v894
      %2268 = vmatprep.subr.mxu0 0.0
      %2269 = vmatpush1.msra.mxu0 %v895
      %2270 = vmatprep.subr.mxu0 0.0
      %2271 = vmatpush1.msra.mxu0 %v896
      %2272 = vmatprep.mubr.f32.mxu0 %v194
      %2273 = vmatmul.mubr.f32.gmra.mrb[0].mxu0 %v193
      %v2274 = vpop.f32.mrb[0].mxu0
      %v2275 = vadd.f32 %v2130, %v2274
      %v2276 = vpop.f32.mrb[0].mxu0
      %2277 = vmatprep.mubr.f32.mxu0 %v221
      %2278 = vmatmul.mubr.f32.gmra.mrb[0].mxu0 %v220
      %v2279 = vpop.f32.mrb[0].mxu0
      %v2280 = vadd.f32 %v2135, %v2279
      %v2281 = vpop.f32.mrb[0].mxu0
      %2282 = vmatprep.mubr.f32.mxu0 %v248
      %2283 = vmatmul.mubr.f32.gmra.mrb[0].mxu0 %v247
      %v2284 = vpop.f32.mrb[0].mxu0
      %v2285 = vadd.f32 %v2140, %v2284
      %v2286 = vpop.f32.mrb[0].mxu0
      %2287 = vmatprep.mubr.f32.mxu0 %v275
      %2288 = vmatmul.mubr.f32.gmra.mrb[0].mxu0 %v274
      %v2289 = vpop.f32.mrb[0].mxu0
      %v2290 = vadd.f32 %v2145, %v2289
      %v2291 = vpop.f32.mrb[0].mxu0
      %2292 = vmatprep.mubr.f32.mxu0 %v302
      %2293 = vmatmul.mubr.f32.gmra.mrb[0].mxu0 %v301
      %v2294 = vpop.f32.mrb[0].mxu0
      %v2295 = vadd.f32 %v2150, %v2294
      %v2296 = vpop.f32.mrb[0].mxu0
      %2297 = vmatprep.mubr.f32.mxu0 %v329
      %2298 = vmatmul.mubr.f32.gmra.mrb[0].mxu0 %v328
      %v2299 = vpop.f32.mrb[0].mxu0
      %v2300 = vadd.f32 %v2155, %v2299
      %v2301 = vpop.f32.mrb[0].mxu0
      %2302 = vmatprep.mubr.f32.mxu0 %v356
      %2303 = vmatmul.mubr.f32.gmra.mrb[0].mxu0 %v355
      %v2304 = vpop.f32.mrb[0].mxu0
      %v2305 = vadd.f32 %v2160, %v2304
      %v2306 = vpop.f32.mrb[0].mxu0
      %2307 = vmatprep.mubr.f32.mxu0 %v383
      %2308 = vmatmul.mubr.f32.gmra.mrb[0].mxu0 %v382
      %v2309 = vpop.f32.mrb[0].mxu0
      %v2310 = vadd.f32 %v2165, %v2309
      %v2311 = vpop.f32.mrb[0].mxu0
      %2312 = vmatprep.mubr.f32.mxu0 %v410
      %2313 = vmatmul.mubr.f32.gmra.mrb[0].mxu0 %v409
      %v2314 = vpop.f32.mrb[0].mxu0
      %v2315 = vadd.f32 %v2170, %v2314
      %v2316 = vpop.f32.mrb[0].mxu0
      %2317 = vmatprep.mubr.f32.mxu0 %v437
      %2318 = vmatmul.mubr.f32.gmra.mrb[0].mxu0 %v436
      %v2319 = vpop.f32.mrb[0].mxu0
      %v2320 = vadd.f32 %v2175, %v2319
      %v2321 = vpop.f32.mrb[0].mxu0
      %2322 = vmatprep.mubr.f32.mxu0 %v464
      %2323 = vmatmul.mubr.f32.gmra.mrb[0].mxu0 %v463
      %v2324 = vpop.f32.mrb[0].mxu0
      %v2325 = vadd.f32 %v2180, %v2324
      %v2326 = vpop.f32.mrb[0].mxu0
      %2327 = vmatprep.mubr.f32.mxu0 %v491
      %2328 = vmatmul.mubr.f32.gmra.mrb[0].mxu0 %v490
      %v2329 = vpop.f32.mrb[0].mxu0
      %v2330 = vadd.f32 %v2185, %v2329
      %v2331 = vpop.f32.mrb[0].mxu0
      %2332 = vmatprep.mubr.f32.mxu0 %v518
      %2333 = vmatmul.mubr.f32.gmra.mrb[0].mxu0 %v517
      %v2334 = vpop.f32.mrb[0].mxu0
      %v2335 = vadd.f32 %v2190, %v2334
      %v2336 = vpop.f32.mrb[0].mxu0
      %2337 = vmatprep.mubr.f32.mxu0 %v545
      %2338 = vmatmul.mubr.f32.gmra.mrb[0].mxu0 %v544
      %v2339 = vpop.f32.mrb[0].mxu0
      %v2340 = vadd.f32 %v2195, %v2339
      %v2341 = vpop.f32.mrb[0].mxu0
      %2342 = vmatprep.mubr.f32.mxu0 %v572
      %2343 = vmatmul.mubr.f32.gmra.mrb[0].mxu0 %v571
      %v2344 = vpop.f32.mrb[0].mxu0
      %v2345 = vadd.f32 %v2200, %v2344
      %v2346 = vpop.f32.mrb[0].mxu0
      %2347 = vmatprep.mubr.f32.mxu0 %v599
      %2348 = vmatmul.mubr.f32.gmra.mrb[0].mxu0 %v598
      %v2349 = vpop.f32.mrb[0].mxu0
      %v2350 = vadd.f32 %v2205, %v2349
      %v2351 = vpop.f32.mrb[0].mxu0
      %2352 = vdwg.mxu0
      %2353 = vmatprep.subr.mxu0 0.0
      %2354 = vmatpush1.msra.mxu0 %v897
      %2355 = vmatprep.subr.mxu0 0.0
      %2356 = vmatpush1.msra.mxu0 %v898
      %2357 = vmatprep.subr.mxu0 0.0
      %2358 = vmatpush1.msra.mxu0 %v899
      %2359 = vmatprep.subr.mxu0 0.0
      %2360 = vmatpush1.msra.mxu0 %v900
      %2361 = vmatprep.subr.mxu0 0.0
      %2362 = vmatpush1.msra.mxu0 %v901
      %2363 = vmatprep.subr.mxu0 0.0
      %2364 = vmatpush1.msra.mxu0 %v902
      %2365 = vmatprep.subr.mxu0 0.0
      %2366 = vmatpush1.msra.mxu0 %v903
      %2367 = vmatprep.subr.mxu0 0.0
      %2368 = vmatpush1.msra.mxu0 %v904
      %2369 = vmatprep.subr.mxu0 0.0
      %2370 = vmatpush1.msra.mxu0 %v905
      %2371 = vmatprep.subr.mxu0 0.0
      %2372 = vmatpush1.msra.mxu0 %v906
      %2373 = vmatprep.subr.mxu0 0.0
      %2374 = vmatpush1.msra.mxu0 %v907
      %2375 = vmatprep.subr.mxu0 0.0
      %2376 = vmatpush1.msra.mxu0 %v908
      %2377 = vmatprep.subr.mxu0 0.0
      %2378 = vmatpush1.msra.mxu0 %v909
      %2379 = vmatprep.subr.mxu0 0.0
      %2380 = vmatpush1.msra.mxu0 %v910
      %2381 = vmatprep.subr.mxu0 0.0
      %2382 = vmatpush1.msra.mxu0 %v911
      %2383 = vmatprep.subr.mxu0 0.0
      %2384 = vmatpush1.msra.mxu0 %v912
      %2385 = vmatprep.subr.mxu0 0.0
      %2386 = vmatpush1.msra.mxu0 %v913
      %2387 = vmatprep.subr.mxu0 0.0
      %2388 = vmatpush1.msra.mxu0 %v914
      %2389 = vmatprep.subr.mxu0 0.0
      %2390 = vmatpush1.msra.mxu0 %v915
      %2391 = vmatprep.subr.mxu0 0.0
      %2392 = vmatpush1.msra.mxu0 %v916
      %2393 = vmatprep.subr.mxu0 0.0
      %2394 = vmatpush1.msra.mxu0 %v917
      %2395 = vmatprep.subr.mxu0 0.0
      %2396 = vmatpush1.msra.mxu0 %v918
      %2397 = vmatprep.subr.mxu0 0.0
      %2398 = vmatpush1.msra.mxu0 %v919
      %2399 = vmatprep.subr.mxu0 0.0
      %2400 = vmatpush1.msra.mxu0 %v920
      %2401 = vmatprep.subr.mxu0 0.0
      %2402 = vmatpush1.msra.mxu0 %v921
      %2403 = vmatprep.subr.mxu0 0.0
      %2404 = vmatpush1.msra.mxu0 %v922
      %2405 = vmatprep.subr.mxu0 0.0
      %2406 = vmatpush1.msra.mxu0 %v923
      %2407 = vmatprep.subr.mxu0 0.0
      %2408 = vmatpush1.msra.mxu0 %v924
      %2409 = vmatprep.subr.mxu0 0.0
      %2410 = vmatpush1.msra.mxu0 %v925
      %2411 = vmatprep.subr.mxu0 0.0
      %2412 = vmatpush1.msra.mxu0 %v926
      %2413 = vmatprep.subr.mxu0 0.0
      %2414 = vmatpush1.msra.mxu0 %v927
      %2415 = vmatprep.subr.mxu0 0.0
      %2416 = vmatpush1.msra.mxu0 %v928
      %2417 = vmatprep.mubr.f32.mxu0 %v196
      %2418 = vmatmul.mubr.f32.gmra.mrb[0].mxu0 %v195
      %v2419 = vpop.f32.mrb[0].mxu0
      %v2420 = vadd.f32 %v2275, %v2419
      %v2421 = vpop.f32.mrb[0].mxu0
      %2422 = vmatprep.mubr.f32.mxu0 %v223
      %2423 = vmatmul.mubr.f32.gmra.mrb[0].mxu0 %v222
      %v2424 = vpop.f32.mrb[0].mxu0
      %v2425 = vadd.f32 %v2280, %v2424
      %v2426 = vpop.f32.mrb[0].mxu0
      %2427 = vmatprep.mubr.f32.mxu0 %v250
      %2428 = vmatmul.mubr.f32.gmra.mrb[0].mxu0 %v249
      %v2429 = vpop.f32.mrb[0].mxu0
      %v2430 = vadd.f32 %v2285, %v2429
      %v2431 = vpop.f32.mrb[0].mxu0
      %2432 = vmatprep.mubr.f32.mxu0 %v277
      %2433 = vmatmul.mubr.f32.gmra.mrb[0].mxu0 %v276
      %v2434 = vpop.f32.mrb[0].mxu0
      %v2435 = vadd.f32 %v2290, %v2434
      %v2436 = vpop.f32.mrb[0].mxu0
      %2437 = vmatprep.mubr.f32.mxu0 %v304
      %2438 = vmatmul.mubr.f32.gmra.mrb[0].mxu0 %v303
      %v2439 = vpop.f32.mrb[0].mxu0
      %v2440 = vadd.f32 %v2295, %v2439
      %v2441 = vpop.f32.mrb[0].mxu0
      %2442 = vmatprep.mubr.f32.mxu0 %v331
      %2443 = vmatmul.mubr.f32.gmra.mrb[0].mxu0 %v330
      %v2444 = vpop.f32.mrb[0].mxu0
      %v2445 = vadd.f32 %v2300, %v2444
      %v2446 = vpop.f32.mrb[0].mxu0
      %2447 = vmatprep.mubr.f32.mxu0 %v358
      %2448 = vmatmul.mubr.f32.gmra.mrb[0].mxu0 %v357
      %v2449 = vpop.f32.mrb[0].mxu0
      %v2450 = vadd.f32 %v2305, %v2449
      %v2451 = vpop.f32.mrb[0].mxu0
      %2452 = vmatprep.mubr.f32.mxu0 %v385
      %2453 = vmatmul.mubr.f32.gmra.mrb[0].mxu0 %v384
      %v2454 = vpop.f32.mrb[0].mxu0
      %v2455 = vadd.f32 %v2310, %v2454
      %v2456 = vpop.f32.mrb[0].mxu0
      %2457 = vmatprep.mubr.f32.mxu0 %v412
      %2458 = vmatmul.mubr.f32.gmra.mrb[0].mxu0 %v411
      %v2459 = vpop.f32.mrb[0].mxu0
      %v2460 = vadd.f32 %v2315, %v2459
      %v2461 = vpop.f32.mrb[0].mxu0
      %2462 = vmatprep.mubr.f32.mxu0 %v439
      %2463 = vmatmul.mubr.f32.gmra.mrb[0].mxu0 %v438
      %v2464 = vpop.f32.mrb[0].mxu0
      %v2465 = vadd.f32 %v2320, %v2464
      %v2466 = vpop.f32.mrb[0].mxu0
      %2467 = vmatprep.mubr.f32.mxu0 %v466
      %2468 = vmatmul.mubr.f32.gmra.mrb[0].mxu0 %v465
      %v2469 = vpop.f32.mrb[0].mxu0
      %v2470 = vadd.f32 %v2325, %v2469
      %v2471 = vpop.f32.mrb[0].mxu0
      %2472 = vmatprep.mubr.f32.mxu0 %v493
      %2473 = vmatmul.mubr.f32.gmra.mrb[0].mxu0 %v492
      %v2474 = vpop.f32.mrb[0].mxu0
      %v2475 = vadd.f32 %v2330, %v2474
      %v2476 = vpop.f32.mrb[0].mxu0
      %2477 = vmatprep.mubr.f32.mxu0 %v520
      %2478 = vmatmul.mubr.f32.gmra.mrb[0].mxu0 %v519
      %v2479 = vpop.f32.mrb[0].mxu0
      %v2480 = vadd.f32 %v2335, %v2479
      %v2481 = vpop.f32.mrb[0].mxu0
      %2482 = vmatprep.mubr.f32.mxu0 %v547
      %2483 = vmatmul.mubr.f32.gmra.mrb[0].mxu0 %v546
      %v2484 = vpop.f32.mrb[0].mxu0
      %v2485 = vadd.f32 %v2340, %v2484
      %v2486 = vpop.f32.mrb[0].mxu0
      %2487 = vmatprep.mubr.f32.mxu0 %v574
      %2488 = vmatmul.mubr.f32.gmra.mrb[0].mxu0 %v573
      %v2489 = vpop.f32.mrb[0].mxu0
      %v2490 = vadd.f32 %v2345, %v2489
      %v2491 = vpop.f32.mrb[0].mxu0
      %2492 = vmatprep.mubr.f32.mxu0 %v601
      %2493 = vmatmul.mubr.f32.gmra.mrb[0].mxu0 %v600
      %v2494 = vpop.f32.mrb[0].mxu0
      %v2495 = vadd.f32 %v2350, %v2494
      %v2496 = vpop.f32.mrb[0].mxu0
      %2497 = vdwg.mxu0
      %2498 = vmatprep.subr.mxu0 0.0
      %2499 = vmatpush1.msra.mxu0 %v929
      %2500 = vmatprep.subr.mxu0 0.0
      %2501 = vmatpush1.msra.mxu0 %v930
      %2502 = vmatprep.subr.mxu0 0.0
      %2503 = vmatpush1.msra.mxu0 %v931
      %2504 = vmatprep.subr.mxu0 0.0
      %2505 = vmatpush1.msra.mxu0 %v932
      %2506 = vmatprep.subr.mxu0 0.0
      %2507 = vmatpush1.msra.mxu0 %v933
      %2508 = vmatprep.subr.mxu0 0.0
      %2509 = vmatpush1.msra.mxu0 %v934
      %2510 = vmatprep.subr.mxu0 0.0
      %2511 = vmatpush1.msra.mxu0 %v935
      %2512 = vmatprep.subr.mxu0 0.0
      %2513 = vmatpush1.msra.mxu0 %v936
      %2514 = vmatprep.subr.mxu0 0.0
      %2515 = vmatpush1.msra.mxu0 %v937
      %2516 = vmatprep.subr.mxu0 0.0
      %2517 = vmatpush1.msra.mxu0 %v938
      %2518 = vmatprep.subr.mxu0 0.0
      %2519 = vmatpush1.msra.mxu0 %v939
      %2520 = vmatprep.subr.mxu0 0.0
      %2521 = vmatpush1.msra.mxu0 %v940
      %2522 = vmatprep.subr.mxu0 0.0
      %2523 = vmatpush1.msra.mxu0 %v941
      %2524 = vmatprep.subr.mxu0 0.0
      %2525 = vmatpush1.msra.mxu0 %v942
      %2526 = vmatprep.subr.mxu0 0.0
      %2527 = vmatpush1.msra.mxu0 %v943
      %2528 = vmatprep.subr.mxu0 0.0
      %2529 = vmatpush1.msra.mxu0 %v944
      %2530 = vmatprep.subr.mxu0 0.0
      %2531 = vmatpush1.msra.mxu0 %v945
      %2532 = vmatprep.subr.mxu0 0.0
      %2533 = vmatpush1.msra.mxu0 %v946
      %2534 = vmatprep.subr.mxu0 0.0
      %2535 = vmatpush1.msra.mxu0 %v947
      %2536 = vmatprep.subr.mxu0 0.0
      %2537 = vmatpush1.msra.mxu0 %v948
      %2538 = vmatprep.subr.mxu0 0.0
      %2539 = vmatpush1.msra.mxu0 %v949
      %2540 = vmatprep.subr.mxu0 0.0
      %2541 = vmatpush1.msra.mxu0 %v950
      %2542 = vmatprep.subr.mxu0 0.0
      %2543 = vmatpush1.msra.mxu0 %v951
      %2544 = vmatprep.subr.mxu0 0.0
      %2545 = vmatpush1.msra.mxu0 %v952
      %2546 = vmatprep.subr.mxu0 0.0
      %2547 = vmatpush1.msra.mxu0 %v953
      %2548 = vmatprep.subr.mxu0 0.0
      %2549 = vmatpush1.msra.mxu0 %v954
      %2550 = vmatprep.subr.mxu0 0.0
      %2551 = vmatpush1.msra.mxu0 %v955
      %2552 = vmatprep.subr.mxu0 0.0
      %2553 = vmatpush1.msra.mxu0 %v956
      %2554 = vmatprep.subr.mxu0 0.0
      %2555 = vmatpush1.msra.mxu0 %v957
      %2556 = vmatprep.subr.mxu0 0.0
      %2557 = vmatpush1.msra.mxu0 %v958
      %2558 = vmatprep.subr.mxu0 0.0
      %2559 = vmatpush1.msra.mxu0 %v959
      %2560 = vmatprep.subr.mxu0 0.0
      %2561 = vmatpush1.msra.mxu0 %v960
      %2562 = vmatprep.mubr.f32.mxu0 %v198
      %2563 = vmatmul.mubr.f32.gmra.mrb[0].mxu0 %v197
      %v2564 = vpop.f32.mrb[0].mxu0
      %v2565 = vadd.f32 %v2420, %v2564
      %v2566 = vpop.f32.mrb[0].mxu0
      %2567 = vmatprep.mubr.f32.mxu0 %v225
      %2568 = vmatmul.mubr.f32.gmra.mrb[0].mxu0 %v224
      %v2569 = vpop.f32.mrb[0].mxu0
      %v2570 = vadd.f32 %v2425, %v2569
      %v2571 = vpop.f32.mrb[0].mxu0
      %2572 = vmatprep.mubr.f32.mxu0 %v252
      %2573 = vmatmul.mubr.f32.gmra.mrb[0].mxu0 %v251
      %v2574 = vpop.f32.mrb[0].mxu0
      %v2575 = vadd.f32 %v2430, %v2574
      %v2576 = vpop.f32.mrb[0].mxu0
      %2577 = vmatprep.mubr.f32.mxu0 %v279
      %2578 = vmatmul.mubr.f32.gmra.mrb[0].mxu0 %v278
      %v2579 = vpop.f32.mrb[0].mxu0
      %v2580 = vadd.f32 %v2435, %v2579
      %v2581 = vpop.f32.mrb[0].mxu0
      %2582 = vmatprep.mubr.f32.mxu0 %v306
      %2583 = vmatmul.mubr.f32.gmra.mrb[0].mxu0 %v305
      %v2584 = vpop.f32.mrb[0].mxu0
      %v2585 = vadd.f32 %v2440, %v2584
      %v2586 = vpop.f32.mrb[0].mxu0
      %2587 = vmatprep.mubr.f32.mxu0 %v333
      %2588 = vmatmul.mubr.f32.gmra.mrb[0].mxu0 %v332
      %v2589 = vpop.f32.mrb[0].mxu0
      %v2590 = vadd.f32 %v2445, %v2589
      %v2591 = vpop.f32.mrb[0].mxu0
      %2592 = vmatprep.mubr.f32.mxu0 %v360
      %2593 = vmatmul.mubr.f32.gmra.mrb[0].mxu0 %v359
      %v2594 = vpop.f32.mrb[0].mxu0
      %v2595 = vadd.f32 %v2450, %v2594
      %v2596 = vpop.f32.mrb[0].mxu0
      %2597 = vmatprep.mubr.f32.mxu0 %v387
      %2598 = vmatmul.mubr.f32.gmra.mrb[0].mxu0 %v386
      %v2599 = vpop.f32.mrb[0].mxu0
      %v2600 = vadd.f32 %v2455, %v2599
      %v2601 = vpop.f32.mrb[0].mxu0
      %2602 = vmatprep.mubr.f32.mxu0 %v414
      %2603 = vmatmul.mubr.f32.gmra.mrb[0].mxu0 %v413
      %v2604 = vpop.f32.mrb[0].mxu0
      %v2605 = vadd.f32 %v2460, %v2604
      %v2606 = vpop.f32.mrb[0].mxu0
      %2607 = vmatprep.mubr.f32.mxu0 %v441
      %2608 = vmatmul.mubr.f32.gmra.mrb[0].mxu0 %v440
      %v2609 = vpop.f32.mrb[0].mxu0
      %v2610 = vadd.f32 %v2465, %v2609
      %v2611 = vpop.f32.mrb[0].mxu0
      %2612 = vmatprep.mubr.f32.mxu0 %v468
      %2613 = vmatmul.mubr.f32.gmra.mrb[0].mxu0 %v467
      %v2614 = vpop.f32.mrb[0].mxu0
      %v2615 = vadd.f32 %v2470, %v2614
      %v2616 = vpop.f32.mrb[0].mxu0
      %2617 = vmatprep.mubr.f32.mxu0 %v495
      %2618 = vmatmul.mubr.f32.gmra.mrb[0].mxu0 %v494
      %v2619 = vpop.f32.mrb[0].mxu0
      %v2620 = vadd.f32 %v2475, %v2619
      %v2621 = vpop.f32.mrb[0].mxu0
      %2622 = vmatprep.mubr.f32.mxu0 %v522
      %2623 = vmatmul.mubr.f32.gmra.mrb[0].mxu0 %v521
      %v2624 = vpop.f32.mrb[0].mxu0
      %v2625 = vadd.f32 %v2480, %v2624
      %v2626 = vpop.f32.mrb[0].mxu0
      %2627 = vmatprep.mubr.f32.mxu0 %v549
      %2628 = vmatmul.mubr.f32.gmra.mrb[0].mxu0 %v548
      %v2629 = vpop.f32.mrb[0].mxu0
      %v2630 = vadd.f32 %v2485, %v2629
      %v2631 = vpop.f32.mrb[0].mxu0
      %2632 = vmatprep.mubr.f32.mxu0 %v576
      %2633 = vmatmul.mubr.f32.gmra.mrb[0].mxu0 %v575
      %v2634 = vpop.f32.mrb[0].mxu0
      %v2635 = vadd.f32 %v2490, %v2634
      %v2636 = vpop.f32.mrb[0].mxu0
      %2637 = vmatprep.mubr.f32.mxu0 %v603
      %2638 = vmatmul.mubr.f32.gmra.mrb[0].mxu0 %v602
      %v2639 = vpop.f32.mrb[0].mxu0
      %v2640 = vadd.f32 %v2495, %v2639
      %v2641 = vpop.f32.mrb[0].mxu0
      %2642 = vdwg.mxu0
      %2643 = vmatprep.subr.mxu0 0.0
      %2644 = vmatpush1.msra.mxu0 %v961
      %2645 = vmatprep.subr.mxu0 0.0
      %2646 = vmatpush1.msra.mxu0 %v962
      %2647 = vmatprep.subr.mxu0 0.0
      %2648 = vmatpush1.msra.mxu0 %v963
      %2649 = vmatprep.subr.mxu0 0.0
      %2650 = vmatpush1.msra.mxu0 %v964
      %2651 = vmatprep.subr.mxu0 0.0
      %2652 = vmatpush1.msra.mxu0 %v965
      %2653 = vmatprep.subr.mxu0 0.0
      %2654 = vmatpush1.msra.mxu0 %v966
      %2655 = vmatprep.subr.mxu0 0.0
      %2656 = vmatpush1.msra.mxu0 %v967
      %2657 = vmatprep.subr.mxu0 0.0
      %2658 = vmatpush1.msra.mxu0 %v968
      %2659 = vmatprep.subr.mxu0 0.0
      %2660 = vmatpush1.msra.mxu0 %v969
      %2661 = vmatprep.subr.mxu0 0.0
      %2662 = vmatpush1.msra.mxu0 %v970
      %2663 = vmatprep.subr.mxu0 0.0
      %2664 = vmatpush1.msra.mxu0 %v971
      %2665 = vmatprep.subr.mxu0 0.0
      %2666 = vmatpush1.msra.mxu0 %v972
      %2667 = vmatprep.subr.mxu0 0.0
      %2668 = vmatpush1.msra.mxu0 %v973
      %2669 = vmatprep.subr.mxu0 0.0
      %2670 = vmatpush1.msra.mxu0 %v974
      %2671 = vmatprep.subr.mxu0 0.0
      %2672 = vmatpush1.msra.mxu0 %v975
      %2673 = vmatprep.subr.mxu0 0.0
      %2674 = vmatpush1.msra.mxu0 %v976
      %2675 = vmatprep.subr.mxu0 0.0
      %2676 = vmatpush1.msra.mxu0 %v977
      %2677 = vmatprep.subr.mxu0 0.0
      %2678 = vmatpush1.msra.mxu0 %v978
      %2679 = vmatprep.subr.mxu0 0.0
      %2680 = vmatpush1.msra.mxu0 %v979
      %2681 = vmatprep.subr.mxu0 0.0
      %2682 = vmatpush1.msra.mxu0 %v980
      %2683 = vmatprep.subr.mxu0 0.0
      %2684 = vmatpush1.msra.mxu0 %v981
      %2685 = vmatprep.subr.mxu0 0.0
      %2686 = vmatpush1.msra.mxu0 %v982
      %2687 = vmatprep.subr.mxu0 0.0
      %2688 = vmatpush1.msra.mxu0 %v983
      %2689 = vmatprep.subr.mxu0 0.0
      %2690 = vmatpush1.msra.mxu0 %v984
      %2691 = vmatprep.subr.mxu0 0.0
      %2692 = vmatpush1.msra.mxu0 %v985
      %2693 = vmatprep.subr.mxu0 0.0
      %2694 = vmatpush1.msra.mxu0 %v986
      %2695 = vmatprep.subr.mxu0 0.0
      %2696 = vmatpush1.msra.mxu0 %v987
      %2697 = vmatprep.subr.mxu0 0.0
      %2698 = vmatpush1.msra.mxu0 %v988
      %2699 = vmatprep.subr.mxu0 0.0
      %2700 = vmatpush1.msra.mxu0 %v989
      %2701 = vmatprep.subr.mxu0 0.0
      %2702 = vmatpush1.msra.mxu0 %v990
      %2703 = vmatprep.subr.mxu0 0.0
      %2704 = vmatpush1.msra.mxu0 %v991
      %2705 = vmatprep.subr.mxu0 0.0
      %2706 = vmatpush1.msra.mxu0 %v992
      %2707 = vmatprep.mubr.f32.mxu0 %v200
      %2708 = vmatmul.mubr.f32.gmra.mrb[0].mxu0 %v199
      %v2709 = vpop.f32.mrb[0].mxu0
      %v2710 = vadd.f32 %v2565, %v2709
      %v2711 = vpop.f32.mrb[0].mxu0
      %2712 = vmatprep.mubr.f32.mxu0 %v227
      %2713 = vmatmul.mubr.f32.gmra.mrb[0].mxu0 %v226
      %v2714 = vpop.f32.mrb[0].mxu0
      %v2715 = vadd.f32 %v2570, %v2714
      %v2716 = vpop.f32.mrb[0].mxu0
      %2717 = vmatprep.mubr.f32.mxu0 %v254
      %2718 = vmatmul.mubr.f32.gmra.mrb[0].mxu0 %v253
      %v2719 = vpop.f32.mrb[0].mxu0
      %v2720 = vadd.f32 %v2575, %v2719
      %v2721 = vpop.f32.mrb[0].mxu0
      %2722 = vmatprep.mubr.f32.mxu0 %v281
      %2723 = vmatmul.mubr.f32.gmra.mrb[0].mxu0 %v280
      %v2724 = vpop.f32.mrb[0].mxu0
      %v2725 = vadd.f32 %v2580, %v2724
      %v2726 = vpop.f32.mrb[0].mxu0
      %2727 = vmatprep.mubr.f32.mxu0 %v308
      %2728 = vmatmul.mubr.f32.gmra.mrb[0].mxu0 %v307
      %v2729 = vpop.f32.mrb[0].mxu0
      %v2730 = vadd.f32 %v2585, %v2729
      %v2731 = vpop.f32.mrb[0].mxu0
      %2732 = vmatprep.mubr.f32.mxu0 %v335
      %2733 = vmatmul.mubr.f32.gmra.mrb[0].mxu0 %v334
      %v2734 = vpop.f32.mrb[0].mxu0
      %v2735 = vadd.f32 %v2590, %v2734
      %v2736 = vpop.f32.mrb[0].mxu0
      %2737 = vmatprep.mubr.f32.mxu0 %v362
      %2738 = vmatmul.mubr.f32.gmra.mrb[0].mxu0 %v361
      %v2739 = vpop.f32.mrb[0].mxu0
      %v2740 = vadd.f32 %v2595, %v2739
      %v2741 = vpop.f32.mrb[0].mxu0
      %2742 = vmatprep.mubr.f32.mxu0 %v389
      %2743 = vmatmul.mubr.f32.gmra.mrb[0].mxu0 %v388
      %v2744 = vpop.f32.mrb[0].mxu0
      %v2745 = vadd.f32 %v2600, %v2744
      %v2746 = vpop.f32.mrb[0].mxu0
      %2747 = vmatprep.mubr.f32.mxu0 %v416
      %2748 = vmatmul.mubr.f32.gmra.mrb[0].mxu0 %v415
      %v2749 = vpop.f32.mrb[0].mxu0
      %v2750 = vadd.f32 %v2605, %v2749
      %v2751 = vpop.f32.mrb[0].mxu0
      %2752 = vmatprep.mubr.f32.mxu0 %v443
      %2753 = vmatmul.mubr.f32.gmra.mrb[0].mxu0 %v442
      %v2754 = vpop.f32.mrb[0].mxu0
      %v2755 = vadd.f32 %v2610, %v2754
      %v2756 = vpop.f32.mrb[0].mxu0
      %2757 = vmatprep.mubr.f32.mxu0 %v470
      %2758 = vmatmul.mubr.f32.gmra.mrb[0].mxu0 %v469
      %v2759 = vpop.f32.mrb[0].mxu0
      %v2760 = vadd.f32 %v2615, %v2759
      %v2761 = vpop.f32.mrb[0].mxu0
      %2762 = vmatprep.mubr.f32.mxu0 %v497
      %2763 = vmatmul.mubr.f32.gmra.mrb[0].mxu0 %v496
      %v2764 = vpop.f32.mrb[0].mxu0
      %v2765 = vadd.f32 %v2620, %v2764
      %v2766 = vpop.f32.mrb[0].mxu0
      %2767 = vmatprep.mubr.f32.mxu0 %v524
      %2768 = vmatmul.mubr.f32.gmra.mrb[0].mxu0 %v523
      %v2769 = vpop.f32.mrb[0].mxu0
      %v2770 = vadd.f32 %v2625, %v2769
      %v2771 = vpop.f32.mrb[0].mxu0
      %2772 = vmatprep.mubr.f32.mxu0 %v551
      %2773 = vmatmul.mubr.f32.gmra.mrb[0].mxu0 %v550
      %v2774 = vpop.f32.mrb[0].mxu0
      %v2775 = vadd.f32 %v2630, %v2774
      %v2776 = vpop.f32.mrb[0].mxu0
      %2777 = vmatprep.mubr.f32.mxu0 %v578
      %2778 = vmatmul.mubr.f32.gmra.mrb[0].mxu0 %v577
      %v2779 = vpop.f32.mrb[0].mxu0
      %v2780 = vadd.f32 %v2635, %v2779
      %v2781 = vpop.f32.mrb[0].mxu0
      %2782 = vmatprep.mubr.f32.mxu0 %v605
      %2783 = vmatmul.mubr.f32.gmra.mrb[0].mxu0 %v604
      %v2784 = vpop.f32.mrb[0].mxu0
      %v2785 = vadd.f32 %v2640, %v2784
      %v2786 = vpop.f32.mrb[0].mxu0
      %2787 = vdwg.mxu0
      %2788 = vmatprep.subr.mxu0 0.0
      %2789 = vmatpush1.msra.mxu0 %v993
      %2790 = vmatprep.subr.mxu0 0.0
      %2791 = vmatpush1.msra.mxu0 %v994
      %2792 = vmatprep.subr.mxu0 0.0
      %2793 = vmatpush1.msra.mxu0 %v995
      %2794 = vmatprep.subr.mxu0 0.0
      %2795 = vmatpush1.msra.mxu0 %v996
      %2796 = vmatprep.subr.mxu0 0.0
      %2797 = vmatpush1.msra.mxu0 %v997
      %2798 = vmatprep.subr.mxu0 0.0
      %2799 = vmatpush1.msra.mxu0 %v998
      %2800 = vmatprep.subr.mxu0 0.0
      %2801 = vmatpush1.msra.mxu0 %v999
      %2802 = vmatprep.subr.mxu0 0.0
      %2803 = vmatpush1.msra.mxu0 %v1000
      %2804 = vmatprep.subr.mxu0 0.0
      %2805 = vmatpush1.msra.mxu0 %v1001
      %2806 = vmatprep.subr.mxu0 0.0
      %2807 = vmatpush1.msra.mxu0 %v1002
      %2808 = vmatprep.subr.mxu0 0.0
      %2809 = vmatpush1.msra.mxu0 %v1003
      %2810 = vmatprep.subr.mxu0 0.0
      %2811 = vmatpush1.msra.mxu0 %v1004
      %2812 = vmatprep.subr.mxu0 0.0
      %2813 = vmatpush1.msra.mxu0 %v1005
      %2814 = vmatprep.subr.mxu0 0.0
      %2815 = vmatpush1.msra.mxu0 %v1006
      %2816 = vmatprep.subr.mxu0 0.0
      %2817 = vmatpush1.msra.mxu0 %v1007
      %2818 = vmatprep.subr.mxu0 0.0
      %2819 = vmatpush1.msra.mxu0 %v1008
      %2820 = vmatprep.subr.mxu0 0.0
      %2821 = vmatpush1.msra.mxu0 %v1009
      %2822 = vmatprep.subr.mxu0 0.0
      %2823 = vmatpush1.msra.mxu0 %v1010
      %2824 = vmatprep.subr.mxu0 0.0
      %2825 = vmatpush1.msra.mxu0 %v1011
      %2826 = vmatprep.subr.mxu0 0.0
      %2827 = vmatpush1.msra.mxu0 %v1012
      %2828 = vmatprep.subr.mxu0 0.0
      %2829 = vmatpush1.msra.mxu0 %v1013
      %2830 = vmatprep.subr.mxu0 0.0
      %2831 = vmatpush1.msra.mxu0 %v1014
      %2832 = vmatprep.subr.mxu0 0.0
      %2833 = vmatpush1.msra.mxu0 %v1015
      %2834 = vmatprep.subr.mxu0 0.0
      %2835 = vmatpush1.msra.mxu0 %v1016
      %2836 = vmatprep.subr.mxu0 0.0
      %2837 = vmatpush1.msra.mxu0 %v1017
      %2838 = vmatprep.subr.mxu0 0.0
      %2839 = vmatpush1.msra.mxu0 %v1018
      %2840 = vmatprep.subr.mxu0 0.0
      %2841 = vmatpush1.msra.mxu0 %v1019
      %2842 = vmatprep.subr.mxu0 0.0
      %2843 = vmatpush1.msra.mxu0 %v1020
      %2844 = vmatprep.subr.mxu0 0.0
      %2845 = vmatpush1.msra.mxu0 %v1021
      %2846 = vmatprep.subr.mxu0 0.0
      %2847 = vmatpush1.msra.mxu0 %v1022
      %2848 = vmatprep.subr.mxu0 0.0
      %2849 = vmatpush1.msra.mxu0 %v1023
      %2850 = vmatprep.subr.mxu0 0.0
      %2851 = vmatpush1.msra.mxu0 %v1024
      %2852 = vmatprep.mubr.f32.mxu0 %v202
      %2853 = vmatmul.mubr.f32.gmra.mrb[0].mxu0 %v201
      %v2854 = vpop.f32.mrb[0].mxu0
      %v2855 = vadd.f32 %v2710, %v2854
      %v2856 = vpop.f32.mrb[0].mxu0
      %2857 = vmatprep.mubr.f32.mxu0 %v229
      %2858 = vmatmul.mubr.f32.gmra.mrb[0].mxu0 %v228
      %v2859 = vpop.f32.mrb[0].mxu0
      %v2860 = vadd.f32 %v2715, %v2859
      %v2861 = vpop.f32.mrb[0].mxu0
      %2862 = vmatprep.mubr.f32.mxu0 %v256
      %2863 = vmatmul.mubr.f32.gmra.mrb[0].mxu0 %v255
      %v2864 = vpop.f32.mrb[0].mxu0
      %v2865 = vadd.f32 %v2720, %v2864
      %v2866 = vpop.f32.mrb[0].mxu0
      %2867 = vmatprep.mubr.f32.mxu0 %v283
      %2868 = vmatmul.mubr.f32.gmra.mrb[0].mxu0 %v282
      %v2869 = vpop.f32.mrb[0].mxu0
      %v2870 = vadd.f32 %v2725, %v2869
      %v2871 = vpop.f32.mrb[0].mxu0
      %2872 = vmatprep.mubr.f32.mxu0 %v310
      %2873 = vmatmul.mubr.f32.gmra.mrb[0].mxu0 %v309
      %v2874 = vpop.f32.mrb[0].mxu0
      %v2875 = vadd.f32 %v2730, %v2874
      %v2876 = vpop.f32.mrb[0].mxu0
      %2877 = vmatprep.mubr.f32.mxu0 %v337
      %2878 = vmatmul.mubr.f32.gmra.mrb[0].mxu0 %v336
      %v2879 = vpop.f32.mrb[0].mxu0
      %v2880 = vadd.f32 %v2735, %v2879
      %v2881 = vpop.f32.mrb[0].mxu0
      %2882 = vmatprep.mubr.f32.mxu0 %v364
      %2883 = vmatmul.mubr.f32.gmra.mrb[0].mxu0 %v363
      %v2884 = vpop.f32.mrb[0].mxu0
      %v2885 = vadd.f32 %v2740, %v2884
      %v2886 = vpop.f32.mrb[0].mxu0
      %2887 = vmatprep.mubr.f32.mxu0 %v391
      %2888 = vmatmul.mubr.f32.gmra.mrb[0].mxu0 %v390
      %v2889 = vpop.f32.mrb[0].mxu0
      %v2890 = vadd.f32 %v2745, %v2889
      %v2891 = vpop.f32.mrb[0].mxu0
      %2892 = vmatprep.mubr.f32.mxu0 %v418
      %2893 = vmatmul.mubr.f32.gmra.mrb[0].mxu0 %v417
      %v2894 = vpop.f32.mrb[0].mxu0
      %v2895 = vadd.f32 %v2750, %v2894
      %v2896 = vpop.f32.mrb[0].mxu0
      %2897 = vmatprep.mubr.f32.mxu0 %v445
      %2898 = vmatmul.mubr.f32.gmra.mrb[0].mxu0 %v444
      %v2899 = vpop.f32.mrb[0].mxu0
      %v2900 = vadd.f32 %v2755, %v2899
      %v2901 = vpop.f32.mrb[0].mxu0
      %2902 = vmatprep.mubr.f32.mxu0 %v472
      %2903 = vmatmul.mubr.f32.gmra.mrb[0].mxu0 %v471
      %v2904 = vpop.f32.mrb[0].mxu0
      %v2905 = vadd.f32 %v2760, %v2904
      %v2906 = vpop.f32.mrb[0].mxu0
      %2907 = vmatprep.mubr.f32.mxu0 %v499
      %2908 = vmatmul.mubr.f32.gmra.mrb[0].mxu0 %v498
      %v2909 = vpop.f32.mrb[0].mxu0
      %v2910 = vadd.f32 %v2765, %v2909
      %v2911 = vpop.f32.mrb[0].mxu0
      %2912 = vmatprep.mubr.f32.mxu0 %v526
      %2913 = vmatmul.mubr.f32.gmra.mrb[0].mxu0 %v525
      %v2914 = vpop.f32.mrb[0].mxu0
      %v2915 = vadd.f32 %v2770, %v2914
      %v2916 = vpop.f32.mrb[0].mxu0
      %2917 = vmatprep.mubr.f32.mxu0 %v553
      %2918 = vmatmul.mubr.f32.gmra.mrb[0].mxu0 %v552
      %v2919 = vpop.f32.mrb[0].mxu0
      %v2920 = vadd.f32 %v2775, %v2919
      %v2921 = vpop.f32.mrb[0].mxu0
      %2922 = vmatprep.mubr.f32.mxu0 %v580
      %2923 = vmatmul.mubr.f32.gmra.mrb[0].mxu0 %v579
      %v2924 = vpop.f32.mrb[0].mxu0
      %v2925 = vadd.f32 %v2780, %v2924
      %v2926 = vpop.f32.mrb[0].mxu0
      %2927 = vmatprep.mubr.f32.mxu0 %v607
      %2928 = vmatmul.mubr.f32.gmra.mrb[0].mxu0 %v606
      %v2929 = vpop.f32.mrb[0].mxu0
      %v2930 = vadd.f32 %v2785, %v2929
      %v2931 = vpop.f32.mrb[0].mxu0
      %2932 = vdwg.mxu0
      %2933 = vmatprep.subr.mxu0 0.0
      %2934 = vmatpush1.msra.mxu0 %v1025
      %2935 = vmatprep.subr.mxu0 0.0
      %2936 = vmatpush1.msra.mxu0 %v1026
      %2937 = vmatprep.subr.mxu0 0.0
      %2938 = vmatpush1.msra.mxu0 %v1027
      %2939 = vmatprep.subr.mxu0 0.0
      %2940 = vmatpush1.msra.mxu0 %v1028
      %2941 = vmatprep.subr.mxu0 0.0
      %2942 = vmatpush1.msra.mxu0 %v1029
      %2943 = vmatprep.subr.mxu0 0.0
      %2944 = vmatpush1.msra.mxu0 %v1030
      %2945 = vmatprep.subr.mxu0 0.0
      %2946 = vmatpush1.msra.mxu0 %v1031
      %2947 = vmatprep.subr.mxu0 0.0
      %2948 = vmatpush1.msra.mxu0 %v1032
      %2949 = vmatprep.subr.mxu0 0.0
      %2950 = vmatpush1.msra.mxu0 %v1033
      %2951 = vmatprep.subr.mxu0 0.0
      %2952 = vmatpush1.msra.mxu0 %v1034
      %2953 = vmatprep.subr.mxu0 0.0
      %2954 = vmatpush1.msra.mxu0 %v1035
      %2955 = vmatprep.subr.mxu0 0.0
      %2956 = vmatpush1.msra.mxu0 %v1036
      %2957 = vmatprep.subr.mxu0 0.0
      %2958 = vmatpush1.msra.mxu0 %v1037
      %2959 = vmatprep.subr.mxu0 0.0
      %2960 = vmatpush1.msra.mxu0 %v1038
      %2961 = vmatprep.subr.mxu0 0.0
      %2962 = vmatpush1.msra.mxu0 %v1039
      %2963 = vmatprep.subr.mxu0 0.0
      %2964 = vmatpush1.msra.mxu0 %v1040
      %2965 = vmatprep.subr.mxu0 0.0
      %2966 = vmatpush1.msra.mxu0 0.0
      %2967 = vmatprep.subr.mxu0 0.0
      %2968 = vmatpush1.msra.mxu0 0.0
      %2969 = vmatprep.subr.mxu0 0.0
      %2970 = vmatpush1.msra.mxu0 0.0
      %2971 = vmatprep.subr.mxu0 0.0
      %2972 = vmatpush1.msra.mxu0 0.0
      %2973 = vmatprep.subr.mxu0 0.0
      %2974 = vmatpush1.msra.mxu0 0.0
      %2975 = vmatprep.subr.mxu0 0.0
      %2976 = vmatpush1.msra.mxu0 0.0
      %2977 = vmatprep.subr.mxu0 0.0
      %2978 = vmatpush1.msra.mxu0 0.0
      %2979 = vmatprep.subr.mxu0 0.0
      %2980 = vmatpush1.msra.mxu0 0.0
      %2981 = vmatprep.subr.mxu0 0.0
      %2982 = vmatpush1.msra.mxu0 0.0
      %2983 = vmatprep.subr.mxu0 0.0
      %2984 = vmatpush1.msra.mxu0 0.0
      %2985 = vmatprep.subr.mxu0 0.0
      %2986 = vmatpush1.msra.mxu0 0.0
      %2987 = vmatprep.subr.mxu0 0.0
      %2988 = vmatpush1.msra.mxu0 0.0
      %2989 = vmatprep.subr.mxu0 0.0
      %2990 = vmatpush1.msra.mxu0 0.0
      %2991 = vmatprep.subr.mxu0 0.0
      %2992 = vmatpush1.msra.mxu0 0.0
      %2993 = vmatprep.subr.mxu0 0.0
      %2994 = vmatpush1.msra.mxu0 0.0
      %2995 = vmatprep.subr.mxu0 0.0
      %2996 = vmatpush1.msra.mxu0 0.0
      %2997 = vmatprep.mubr.f32.mxu0 0.0
      %2998 = vmatmul.mubr.f32.gmra.mrb[0].mxu0 %v203
      %v2999 = vpop.f32.mrb[0].mxu0
      %v3000 = vadd.f32 %v2855, %v2999
      %v3001 = vpop.f32.mrb[0].mxu0
      %3002 = vmatprep.mubr.f32.mxu0 0.0
      %3003 = vmatmul.mubr.f32.gmra.mrb[0].mxu0 %v230
      %v3004 = vpop.f32.mrb[0].mxu0
      %v3005 = vadd.f32 %v2860, %v3004
      %v3006 = vpop.f32.mrb[0].mxu0
      %3007 = vmatprep.mubr.f32.mxu0 0.0
      %3008 = vmatmul.mubr.f32.gmra.mrb[0].mxu0 %v257
      %v3009 = vpop.f32.mrb[0].mxu0
      %v3010 = vadd.f32 %v2865, %v3009
      %v3011 = vpop.f32.mrb[0].mxu0
      %3012 = vmatprep.mubr.f32.mxu0 0.0
      %3013 = vmatmul.mubr.f32.gmra.mrb[0].mxu0 %v284
      %v3014 = vpop.f32.mrb[0].mxu0
      %v3015 = vadd.f32 %v2870, %v3014
      %v3016 = vpop.f32.mrb[0].mxu0
      %3017 = vmatprep.mubr.f32.mxu0 0.0
      %3018 = vmatmul.mubr.f32.gmra.mrb[0].mxu0 %v311
      %v3019 = vpop.f32.mrb[0].mxu0
      %v3020 = vadd.f32 %v2875, %v3019
      %v3021 = vpop.f32.mrb[0].mxu0
      %3022 = vmatprep.mubr.f32.mxu0 0.0
      %3023 = vmatmul.mubr.f32.gmra.mrb[0].mxu0 %v338
      %v3024 = vpop.f32.mrb[0].mxu0
      %v3025 = vadd.f32 %v2880, %v3024
      %v3026 = vpop.f32.mrb[0].mxu0
      %3027 = vmatprep.mubr.f32.mxu0 0.0
      %3028 = vmatmul.mubr.f32.gmra.mrb[0].mxu0 %v365
      %v3029 = vpop.f32.mrb[0].mxu0
      %v3030 = vadd.f32 %v2885, %v3029
      %v3031 = vpop.f32.mrb[0].mxu0
      %3032 = vmatprep.mubr.f32.mxu0 0.0
      %3033 = vmatmul.mubr.f32.gmra.mrb[0].mxu0 %v392
      %v3034 = vpop.f32.mrb[0].mxu0
      %v3035 = vadd.f32 %v2890, %v3034
      %v3036 = vpop.f32.mrb[0].mxu0
      %3037 = vmatprep.mubr.f32.mxu0 0.0
      %3038 = vmatmul.mubr.f32.gmra.mrb[0].mxu0 %v419
      %v3039 = vpop.f32.mrb[0].mxu0
      %v3040 = vadd.f32 %v2895, %v3039
      %v3041 = vpop.f32.mrb[0].mxu0
      %3042 = vmatprep.mubr.f32.mxu0 0.0
      %3043 = vmatmul.mubr.f32.gmra.mrb[0].mxu0 %v446
      %v3044 = vpop.f32.mrb[0].mxu0
      %v3045 = vadd.f32 %v2900, %v3044
      %v3046 = vpop.f32.mrb[0].mxu0
      %3047 = vmatprep.mubr.f32.mxu0 0.0
      %3048 = vmatmul.mubr.f32.gmra.mrb[0].mxu0 %v473
      %v3049 = vpop.f32.mrb[0].mxu0
      %v3050 = vadd.f32 %v2905, %v3049
      %v3051 = vpop.f32.mrb[0].mxu0
      %3052 = vmatprep.mubr.f32.mxu0 0.0
      %3053 = vmatmul.mubr.f32.gmra.mrb[0].mxu0 %v500
      %v3054 = vpop.f32.mrb[0].mxu0
      %v3055 = vadd.f32 %v2910, %v3054
      %v3056 = vpop.f32.mrb[0].mxu0
      %3057 = vmatprep.mubr.f32.mxu0 0.0
      %3058 = vmatmul.mubr.f32.gmra.mrb[0].mxu0 %v527
      %v3059 = vpop.f32.mrb[0].mxu0
      %v3060 = vadd.f32 %v2915, %v3059
      %v3061 = vpop.f32.mrb[0].mxu0
      %3062 = vmatprep.mubr.f32.mxu0 0.0
      %3063 = vmatmul.mubr.f32.gmra.mrb[0].mxu0 %v554
      %v3064 = vpop.f32.mrb[0].mxu0
      %v3065 = vadd.f32 %v2920, %v3064
      %v3066 = vpop.f32.mrb[0].mxu0
      %3067 = vmatprep.mubr.f32.mxu0 0.0
      %3068 = vmatmul.mubr.f32.gmra.mrb[0].mxu0 %v581
      %v3069 = vpop.f32.mrb[0].mxu0
      %v3070 = vadd.f32 %v2925, %v3069
      %v3071 = vpop.f32.mrb[0].mxu0
      %3072 = vmatprep.mubr.f32.mxu0 0.0
      %3073 = vmatmul.mubr.f32.gmra.mrb[0].mxu0 %v608
      %v3074 = vpop.f32.mrb[0].mxu0
      %v3075 = vadd.f32 %v2930, %v3074
      %v3076 = vpop.f32.mrb[0].mxu0
      %3077 = vdwg.mxu0
      %v3078 = vmax.f32 %v3000, 0.0
      %v3079 = vmax.f32 %v3005, 0.0
      %v3080 = vmax.f32 %v3010, 0.0
      %v3081 = vmax.f32 %v3015, 0.0
      %v3082 = vmax.f32 %v3020, 0.0
      %v3083 = vmax.f32 %v3025, 0.0
      %v3084 = vmax.f32 %v3030, 0.0
      %v3085 = vmax.f32 %v3035, 0.0
      %v3086 = vmax.f32 %v3040, 0.0
      %v3087 = vmax.f32 %v3045, 0.0
      %v3088 = vmax.f32 %v3050, 0.0
      %v3089 = vmax.f32 %v3055, 0.0
      %v3090 = vmax.f32 %v3060, 0.0
      %v3091 = vmax.f32 %v3065, 0.0
      %v3092 = vmax.f32 %v3070, 0.0
      %v3093 = vmax.f32 %v3075, 0.0
      %3094 = vst [vmem:[%s175] sm:$0xff] %v3078
      %3095 = vst [vmem:[%s175 + $0x8] sm:$0xff] %v3079
      %3096 = vst [vmem:[%s175 + $0x10] sm:$0xff] %v3080
      %3097 = vst [vmem:[%s175 + $0x18] sm:$0xff] %v3081
      %3098 = vst [vmem:[%s175 + $0x20] sm:$0xff] %v3082
      %3099 = vst [vmem:[%s175 + $0x28] sm:$0xff] %v3083
      %3100 = vst [vmem:[%s175 + $0x30] sm:$0xff] %v3084
      %3101 = vst [vmem:[%s175 + $0x38] sm:$0xff] %v3085
      %3102 = vst [vmem:[%s175 + $0x40] sm:$0xff] %v3086
      %3103 = vst [vmem:[%s175 + $0x48] sm:$0xff] %v3087
      %3104 = vst [vmem:[%s175 + $0x50] sm:$0xff] %v3088
      %3105 = vst [vmem:[%s175 + $0x58] sm:$0xff] %v3089
      %3106 = vst [vmem:[%s175 + $0x60] sm:$0xff] %v3090
      %3107 = vst [vmem:[%s175 + $0x68] sm:$0xff] %v3091
      %3108 = vst [vmem:[%s175 + $0x70] sm:$0xff] %v3092
      %3109 = vst [vmem:[%s175 + $0x78] sm:$0xff] %v3093
      %s3110 = smul.u32 16, %s14
      %p3111 = scmp.lt.s32.totalorder %s3110, 63
      %s3112 = scalar_select %p3111, %s3110, 63
      %s3113 = smul.addr %s3112, 8
      %s3114 = scalar_lea.vmem %s3, %s3113
      // Predicated region
      $region33: #{_lambda_.3} parent=31 // pred_check
        %p3115 = pneg %p100
      $region34: #{_lambda_.3} parent=31 // pred_check_branch
        %3117 = sbr.rel (%p3115) target = $region36
      $region35: #{_lambda_.3} parent=31 // pred_region
        %s3118 = smul.u32 16, %s14
      $region36: #{_lambda_.3} parent=31 // pred_fallthru
        _
    $region32: #{_lambda_.3} parent=5 // pred_fallthru
      _
    %p3119 = scmp.le.s32.totalorder 2, %s9
    // Predicated region
    $region37: #{_lambda_.3} parent=5 // pred_check
      %p3120 = pneg %p3119
    $region38: #{_lambda_.3} parent=5 // pred_check_branch
      %3122 = sbr.rel (%p3120) target = $region40
    $region39: #{_lambda_.3} parent=5 // pred_region
      %s3123 = ssub.s32 %s9, 2
      // Predicated region
      $region41: #{_lambda_.3} parent=39 // pred_check
        %p3124 = pneg %p106
      $region42: #{_lambda_.3} parent=39 // pred_check_branch
        %3126 = sbr.rel (%p3124) target = $region44
      $region43: #{_lambda_.3} parent=39 // pred_region
        %s3127 = smul.u32 16, %s15
        %p3128 = scmp.lt.s32.totalorder %s3127, 63
        %s3129 = scalar_select %p3128, %s3127, 63
        %s3130 = smul.addr %s3129, 8
        %s3131 = scalar_lea.vmem %s3, %s3130
      $region44: #{_lambda_.3} parent=39 // pred_fallthru
        _
    $region40: #{_lambda_.3} parent=5 // pred_fallthru
      _
  $region6: #{_lambda_.3} parent=0 // loop_footer
    %s13 = sadd.s32 1, %s9
  $region7: #{_lambda_.3} parent=0 // loop_footer_branch
    %8 = sbr.rel target = $region3
  $region8: #{_lambda_.3} parent=0 // loop_exit
    _

</llo_original>
